<compile_context>
chip_gen: v7x
topology: tpu7x:2x2x1
jax: 0.10.0
libtpu: 0.0.40
codegen_flags: <defaults>
</compile_context>

<pallas_src>
import math
from functools import partial

import jax
import jax.numpy as jnp
from jax.experimental import pallas as pl
from jax.experimental.pallas import tpu as pltpu

_HIGHEST = jax.lax.Precision.HIGHEST


# ---------------------------------------------------------------------------
# VPU rank-1-update matmul for degenerate MXU shapes (tiny K or tiny M)
# ---------------------------------------------------------------------------
def _vpu_matmul(w, a):
    """w @ a as K unrolled outer-product updates on the VPU (exact f32).

    w: (M, K) tiny weight already in vregs, a: (K, TN) feature-major activation.
    Used for the K = n_in (=3) Fourier projection and the M = d_out (=4) final
    layer, where the MXU would waste >96% of its latch / result tile while the
    VPU has slack (the MXU is the critical unit in this kernel).
    """
    acc = w[:, 0:1] * a[0:1, :]
    for k in range(1, w.shape[1]):
        acc = acc + w[:, k:k + 1] * a[k:k + 1, :]
    return acc


# ---------------------------------------------------------------------------
# Pallas kernel: fused Fourier features + 3-layer Lipschitz MLP, [F, TN] layout
# ---------------------------------------------------------------------------
def _ffn_kernel(x_ref, z_ref,            # (n_in, TN), (nz, TN)   streamed per step
                b2pi_ref,                # (nf, n_in)             VMEM-resident
                w1_ref, b1_ref,          # (d1, 2nf+nz), (d1, 1)
                w2_ref, b2_ref,          # (d2, d1), (d2, 1)
                w3_ref, b3_ref,          # (d_out, d2), (d_out, 1)
                o_ref,                   # (d_out, TN)
                xz_ref):                 # VMEM scratch (2nf+nz, TN)
    nf = b2pi_ref.shape[0]
    nz = z_ref.shape[0]

    # Fourier projection on the VPU (single B; K = n_in would fill <2.5% of an
    # MXU latch and still pay full stream cost).
    xb = _vpu_matmul(b2pi_ref[...], x_ref[...])          # (nf, TN), exact f32

    # Build the fused layer-1 activation [sin | cos | z] in one VMEM scratch so
    # layer 1 becomes a single K = 2nf+nz matmul (one latch/stream per tile).
    xz_ref[0:nf, :] = jnp.sin(xb)
    xz_ref[nf:2 * nf, :] = jnp.cos(xb)
    xz_ref[2 * nf:2 * nf + nz, :] = z_ref[...]

    # Layer 1 (conditional Lipschitz linear; weights pre-scaled & fused in wrapper).
    h = jnp.dot(w1_ref[...], xz_ref[...],
                preferred_element_type=jnp.float32, precision=_HIGHEST)
    h = jax.nn.softplus(h + b1_ref[...])

    # Layer 2 (Lipschitz linear, pre-scaled).
    h = jnp.dot(w2_ref[...], h,
                preferred_element_type=jnp.float32, precision=_HIGHEST)
    h = jax.nn.softplus(h + b2_ref[...])

    # Layer 3 (final Lipschitz linear, no activation): a 4-row output wastes
    # >=96% of the MXU result tile yet streams the full K=d2 LHS -> VPU instead.
    out = _vpu_matmul(w3_ref[...], h) + b3_ref[...]
    o_ref[...] = out.astype(o_ref.dtype)


# ---------------------------------------------------------------------------
# Wrapper
# ---------------------------------------------------------------------------
def lipschitz_conditional_ffn(x, z, params, *, n_ffeat, nz, tn_max=8192,
                              feature_major_output=False):
    N, n_in = x.shape
    nf2 = 2 * n_ffeat
    B = params["B"]
    W1, W2, W3 = params["W"]
    b1, b2, b3 = params["b"]
    c1, c2, c3 = params["c"]
    d1 = W1.shape[0]
    d2 = W2.shape[0]
    d_out = W3.shape[0]

    # ---- batch-invariant preprocessing (hoisted out of the per-step body) ----
    # Lipschitz row scaling min(1, softplus(c) / ||W_row||_1) (lipmlp).
    # No eps guard: an all-zero row gives inf -> min(1, inf) = 1, matching the
    # PyTorch module's behaviour exactly.
    s1 = jnp.minimum(1.0, jax.nn.softplus(c1) / jnp.sum(jnp.abs(W1[:, :nf2]), axis=1))
    # Fused layer-1 weight: scaled Fourier-feature columns + unscaled z columns.
    w1_fused = jnp.concatenate([W1[:, :nf2] * s1[:, None], W1[:, nf2:]], axis=1)
    s2 = jnp.minimum(1.0, jax.nn.softplus(c2) / jnp.sum(jnp.abs(W2), axis=1))
    w2s = W2 * s2[:, None]
    s3 = jnp.minimum(1.0, jax.nn.softplus(c3) / jnp.sum(jnp.abs(W3), axis=1))
    w3s = W3 * s3[:, None]

    b2pi = (2.0 * math.pi) * B                       # (nf, n_in); 2*pi folded once
    b1c, b2c, b3c = b1.reshape(-1, 1), b2.reshape(-1, 1), b3.reshape(-1, 1)

    # ---- batch tiling: lane-aligned, padding-minimizing; >= 2 steps when the
    # batch is large enough so v7x's second TensorCore gets work ---------------
    n_steps = max(1, pl.cdiv(N, tn_max))
    if N >= 256:
        n_steps = max(n_steps, 2)
    TN = 128 * pl.cdiv(pl.cdiv(N, n_steps), 128)
    grid_n = pl.cdiv(N, TN)
    N_pad = TN * grid_n

    xt = jnp.pad(x.T.astype(jnp.float32), ((0, 0), (0, N_pad - N)))   # (n_in, N_pad)
    zt = jnp.pad(z.T.astype(jnp.float32), ((0, 0), (0, N_pad - N)))   # (nz,  N_pad)

    batch_spec = lambda rows: pl.BlockSpec((rows, TN), lambda i: (0, i))
    const_spec = lambda a: pl.BlockSpec(a.shape, lambda i: (0, 0))    # VMEM-resident

    # Advisory cost estimate so XLA schedules the surrounding transposes / pads
    # around a compute-heavy custom call.
    flops = 2 * N * (n_ffeat * n_in + d1 * (nf2 + nz) + d2 * d1 + d_out * W3.shape[1])
    transcendentals = N * (nf2 + 2 * d1 + 2 * d2)
    bytes_accessed = 4 * (N * (n_in + nz + d_out)
                          + w1_fused.size + w2s.size + w3s.size + b2pi.size)
    cost = pl.CostEstimate(flops=int(flops), transcendentals=int(transcendentals),
                           bytes_accessed=int(bytes_accessed))

    # Scoped-VMEM estimate; only raise the limit if we would exceed the v5e
    # 16 MiB scoped default (e.g. very large tn_max). Footprint at TN=8192 is a
    # few MiB — nowhere near the limit on any generation, including v7x's 64 MiB.
    rnd8 = lambda r: ((r + 7) // 8) * 8
    vmem_rows = (2 * (rnd8(n_in) + rnd8(nz) + rnd8(d_out))   # double-buffered I/O
                 + rnd8(nf2 + nz)                            # xz scratch
                 + 4 * rnd8(d1))                             # live intermediates
    vmem_est = 4 * TN * vmem_rows + (2 << 20)
    vmem_limit = int(min(2 * vmem_est, 60 * 2 ** 20)) if vmem_est > 12 * 2 ** 20 else None

    out_t = pl.pallas_call(
        _ffn_kernel,
        out_shape=jax.ShapeDtypeStruct((d_out, N_pad), jnp.float32),
        grid=(grid_n,),
        in_specs=[
            batch_spec(n_in), batch_spec(nz),
            const_spec(b2pi),
            const_spec(w1_fused), const_spec(b1c),
            const_spec(w2s), const_spec(b2c),
            const_spec(w3s), const_spec(b3c),
        ],
        out_specs=pl.BlockSpec((d_out, TN), lambda i: (0, i)),
        scratch_shapes=[pltpu.VMEM((nf2 + nz, TN), jnp.float32)],
        compiler_params=pltpu.CompilerParams(
            dimension_semantics=("parallel",),          # batch axis is truly parallel
            vmem_limit_bytes=vmem_limit),
        cost_estimate=cost,
    )(xt, zt, b2pi, w1_fused, b1c, w2s, b2c, w3s, b3c)

    if feature_major_output:
        return out_t[:, :N]          # (d_out, N): skip the (N,4) lane-pad relayout
    return out_t[:, :N].T            # (N, d_out), matching the PyTorch module


# ---------------------------------------------------------------------------
# Deterministic parameter init (mirrors module __init__ shapes; lipmlp init)
# ---------------------------------------------------------------------------
def init_params(key, layers, nz, n_ffeat, sigma=1.0):
    n_in = layers[0] - nz
    keys = jax.random.split(key, len(layers) + 1)
    B = (sigma ** 2) * jax.random.normal(keys[0], (n_ffeat, n_in), jnp.float32)
    dims = [2 * n_ffeat + nz] + list(layers[1:])
    Ws, bs, cs = [], [], []
    for i, (din, dout) in enumerate(zip(dims[:-1], dims[1:])):
        W = jax.random.normal(keys[i + 1], (dout, din), jnp.float32) * (2.0 / din) ** 0.5
        Ws.append(W)
        bs.append(jnp.zeros((dout,), jnp.float32))
        cs.append(jnp.max(jnp.sum(jnp.abs(W), axis=1)))   # lipmlp c init
    return {"B": B, "W": Ws, "b": bs, "c": cs}


# ---------------------------------------------------------------------------
# Plain-JAX reference (same math, HIGHEST-precision matmuls) for correctness
# ---------------------------------------------------------------------------
def reference(x, z, params, *, n_ffeat, nz):
    B, Ws, bs, cs = params["B"], params["W"], params["b"], params["c"]
    nf2 = 2 * n_ffeat
    x_b = 2.0 * math.pi * jnp.dot(x, B.T, precision=_HIGHEST)
    h = jnp.concatenate([jnp.sin(x_b), jnp.cos(x_b), z], axis=-1)

    W1 = Ws[0]   # conditional layer
    s1 = jnp.minimum(1.0, jax.nn.softplus(cs[0]) / jnp.sum(jnp.abs(W1[:, :nf2]), axis=1))
    W1s = jnp.concatenate([W1[:, :nf2] * s1[:, None], W1[:, nf2:]], axis=1)
    h = jax.nn.softplus(jnp.dot(h, W1s.T, precision=_HIGHEST) + bs[0])

    W2 = Ws[1]
    s2 = jnp.minimum(1.0, jax.nn.softplus(cs[1]) / jnp.sum(jnp.abs(W2), axis=1))
    h = jax.nn.softplus(jnp.dot(h, (W2 * s2[:, None]).T, precision=_HIGHEST) + bs[1])

    W3 = Ws[2]
    s3 = jnp.minimum(1.0, jax.nn.softplus(cs[2]) / jnp.sum(jnp.abs(W3), axis=1))
    return jnp.dot(h, (W3 * s3[:, None]).T, precision=_HIGHEST) + bs[2]


if __name__ == "__main__":
    # Small config consistent with the module: layers = [n_in + nz, h, h, out]
    layers = [7, 32, 32, 4]
    nz = 4
    n_ffeat = 16
    n_in = layers[0] - nz           # 3
    N = 200                         # not a multiple of 128 -> exercises batch padding

    key = jax.random.PRNGKey(0)
    kx, kz, kp = jax.random.split(key, 3)
    x = jax.random.normal(kx, (N, n_in), jnp.float32)
    z = jax.random.normal(kz, (N, nz), jnp.float32)
    params = init_params(kp, layers, nz, n_ffeat, sigma=1.0)

    ref = reference(x, z, params, n_ffeat=n_ffeat, nz=nz)

    # Default tile (single grid step at this size).
    fn = jax.jit(partial(lipschitz_conditional_ffn, n_ffeat=n_ffeat, nz=nz))
    out = jax.block_until_ready(fn(x, z, params))
    assert out.shape == (N, layers[-1])
    assert jnp.allclose(out, ref, atol=2e-4, rtol=2e-4), "mismatch vs reference (single tile)"

    # Force a multi-step grid (TN=128 -> grid=(2,)) to exercise the pipelined /
    # megacore-shardable path.
    fn_tiled = jax.jit(partial(lipschitz_conditional_ffn, n_ffeat=n_ffeat, nz=nz, tn_max=128))
    out_tiled = jax.block_until_ready(fn_tiled(x, z, params))
    assert jnp.allclose(out_tiled, ref, atol=2e-4, rtol=2e-4), "mismatch vs reference (tiled)"

    # Feature-major output path (skips the final transpose / relayout).
    fn_fm = jax.jit(partial(lipschitz_conditional_ffn, n_ffeat=n_ffeat, nz=nz,
                            feature_major_output=True))
    out_fm = jax.block_until_ready(fn_fm(x, z, params))
    assert out_fm.shape == (layers[-1], N)
    assert jnp.allclose(out_fm.T, ref, atol=2e-4, rtol=2e-4), "mismatch vs reference (feat-major)"

    print("KERNEL_OK")
</pallas_src>

<mosaic_0001>
module attributes {stable_mosaic.version = 11 : i64} {
  func.func @_ffn_kernel(%arg0: i32, %arg1: memref<3x256xf32, #tpu.memory_space<vmem>>, %arg2: memref<4x256xf32, #tpu.memory_space<vmem>>, %arg3: memref<16x3xf32, #tpu.memory_space<vmem>>, %arg4: memref<32x36xf32, #tpu.memory_space<vmem>>, %arg5: memref<32x1xf32, #tpu.memory_space<vmem>>, %arg6: memref<32x32xf32, #tpu.memory_space<vmem>>, %arg7: memref<32x1xf32, #tpu.memory_space<vmem>>, %arg8: memref<4x32xf32, #tpu.memory_space<vmem>>, %arg9: memref<4x1xf32, #tpu.memory_space<vmem>>, %arg10: memref<4x256xf32, #tpu.memory_space<vmem>>, %arg11: memref<36x256xf32, #tpu.memory_space<vmem>>) attributes {dimension_semantics = [#tpu.dimension_semantics<parallel>], iteration_bounds = array<i64: 1>, scalar_prefetch = 0 : i64, scratch_operands = 1 : i64, tpu.core_type = #tpu.core_type<tc>, window_params = [{transform_indices = @transform_0, window_bounds = array<i64: 3, 256>}, {transform_indices = @transform_1, window_bounds = array<i64: 4, 256>}, {pipeline_mode = #tpu.pipeline_mode<synchronous>, transform_indices = @transform_2, window_bounds = array<i64: 16, 3>}, {pipeline_mode = #tpu.pipeline_mode<synchronous>, transform_indices = @transform_3, window_bounds = array<i64: 32, 36>}, {pipeline_mode = #tpu.pipeline_mode<synchronous>, transform_indices = @transform_4, window_bounds = array<i64: 32, 1>}, {pipeline_mode = #tpu.pipeline_mode<synchronous>, transform_indices = @transform_5, window_bounds = array<i64: 32, 32>}, {pipeline_mode = #tpu.pipeline_mode<synchronous>, transform_indices = @transform_6, window_bounds = array<i64: 32, 1>}, {pipeline_mode = #tpu.pipeline_mode<synchronous>, transform_indices = @transform_7, window_bounds = array<i64: 4, 32>}, {pipeline_mode = #tpu.pipeline_mode<synchronous>, transform_indices = @transform_8, window_bounds = array<i64: 4, 1>}, {transform_indices = @transform_9, window_bounds = array<i64: 4, 256>}]} {
    %c0 = arith.constant 0 : index
    %c0_0 = arith.constant 0 : index
    %0 = vector.load %arg3[%c0, %c0_0] : memref<16x3xf32, #tpu.memory_space<vmem>>, vector<16x3xf32>
    %c0_1 = arith.constant 0 : index
    %c0_2 = arith.constant 0 : index
    %1 = vector.load %arg1[%c0_1, %c0_2] : memref<3x256xf32, #tpu.memory_space<vmem>>, vector<3x256xf32>
    %2 = vector.extract_strided_slice %0 {offsets = [0, 0], sizes = [16, 1], strides = [1, 1]} : vector<16x3xf32> to vector<16x1xf32>
    %3 = vector.extract_strided_slice %1 {offsets = [0, 0], sizes = [1, 256], strides = [1, 1]} : vector<3x256xf32> to vector<1x256xf32>
    %4 = vector.broadcast %2 : vector<16x1xf32> to vector<16x256xf32>
    %5 = vector.broadcast %3 : vector<1x256xf32> to vector<16x256xf32>
    %6 = arith.mulf %4, %5 : vector<16x256xf32>
    %7 = vector.extract_strided_slice %0 {offsets = [0, 1], sizes = [16, 1], strides = [1, 1]} : vector<16x3xf32> to vector<16x1xf32>
    %8 = vector.extract_strided_slice %1 {offsets = [1, 0], sizes = [1, 256], strides = [1, 1]} : vector<3x256xf32> to vector<1x256xf32>
    %9 = vector.broadcast %7 : vector<16x1xf32> to vector<16x256xf32>
    %10 = vector.broadcast %8 : vector<1x256xf32> to vector<16x256xf32>
    %11 = arith.mulf %9, %10 : vector<16x256xf32>
    %12 = arith.addf %6, %11 : vector<16x256xf32>
    %13 = vector.extract_strided_slice %0 {offsets = [0, 2], sizes = [16, 1], strides = [1, 1]} : vector<16x3xf32> to vector<16x1xf32>
    %14 = vector.extract_strided_slice %1 {offsets = [2, 0], sizes = [1, 256], strides = [1, 1]} : vector<3x256xf32> to vector<1x256xf32>
    %15 = vector.broadcast %13 : vector<16x1xf32> to vector<16x256xf32>
    %16 = vector.broadcast %14 : vector<1x256xf32> to vector<16x256xf32>
    %17 = arith.mulf %15, %16 : vector<16x256xf32>
    %18 = arith.addf %12, %17 : vector<16x256xf32>
    %19 = math.sin %18 : vector<16x256xf32>
    %c0_3 = arith.constant 0 : index
    %c0_4 = arith.constant 0 : index
    %20 = vector.load %arg11[%c0_3, %c0_4] : memref<36x256xf32, #tpu.memory_space<vmem>>, vector<16x256xf32>
    tpu.vector_store %arg11[%c0_3, %c0_4], %19 {strides = array<i32>} : memref<36x256xf32, #tpu.memory_space<vmem>>, vector<16x256xf32>,
    %21 = math.cos %18 : vector<16x256xf32>
    %c16 = arith.constant 16 : index
    %c0_5 = arith.constant 0 : index
    %22 = vector.load %arg11[%c16, %c0_5] : memref<36x256xf32, #tpu.memory_space<vmem>>, vector<16x256xf32>
    tpu.vector_store %arg11[%c16, %c0_5], %21 {strides = array<i32>} : memref<36x256xf32, #tpu.memory_space<vmem>>, vector<16x256xf32>,
    %c0_6 = arith.constant 0 : index
    %c0_7 = arith.constant 0 : index
    %23 = vector.load %arg2[%c0_6, %c0_7] : memref<4x256xf32, #tpu.memory_space<vmem>>, vector<4x256xf32>
    %c32 = arith.constant 32 : index
    %c0_8 = arith.constant 0 : index
    %24 = vector.load %arg11[%c32, %c0_8] : memref<36x256xf32, #tpu.memory_space<vmem>>, vector<4x256xf32>
    tpu.vector_store %arg11[%c32, %c0_8], %23 {strides = array<i32>} : memref<36x256xf32, #tpu.memory_space<vmem>>, vector<4x256xf32>,
    %c0_9 = arith.constant 0 : index
    %c0_10 = arith.constant 0 : index
    %25 = vector.load %arg4[%c0_9, %c0_10] : memref<32x36xf32, #tpu.memory_space<vmem>>, vector<32x36xf32>
    %c0_11 = arith.constant 0 : index
    %c0_12 = arith.constant 0 : index
    %26 = vector.load %arg11[%c0_11, %c0_12] : memref<36x256xf32, #tpu.memory_space<vmem>>, vector<36x256xf32>
    %cst = arith.constant dense<0.000000e+00> : vector<32x256xf32>
    %27 = tpu.matmul %25, %26, %cst {dimension_numbers = #tpu.dot_dimension_numbers<[1], [0], [0], [1], [0, 0, 1, 1], [], []>, precision = #tpu.contract_precision<fp32>} : vector<32x36xf32>, vector<36x256xf32>, vector<32x256xf32> -> vector<32x256xf32>
    %c0_13 = arith.constant 0 : index
    %c0_14 = arith.constant 0 : index
    %28 = vector.load %arg5[%c0_13, %c0_14] : memref<32x1xf32, #tpu.memory_space<vmem>>, vector<32x1xf32>
    %29 = vector.broadcast %28 : vector<32x1xf32> to vector<32x256xf32>
    %30 = arith.addf %27, %29 : vector<32x256xf32>
    %cst_15 = arith.constant 0.000000e+00 : f32
    %31 = vector.broadcast %cst_15 : f32 to vector<32x256xf32>
    %32 = arith.maximumf %30, %31 : vector<32x256xf32>
    %33 = vector.broadcast %cst_15 : f32 to vector<32x256xf32>
    %34 = arith.subf %30, %33 : vector<32x256xf32>
    %35 = arith.cmpf one, %34, %34 : vector<32x256xf32>
    %36 = vector.broadcast %cst_15 : f32 to vector<32x256xf32>
    %37 = arith.addf %30, %36 : vector<32x256xf32>
    %38 = math.absf %34 : vector<32x256xf32>
    %cst_16 = arith.constant 0.000000e+00 : f32
    %39 = vector.broadcast %cst_16 : f32 to vector<32x256xf32>
    %40 = arith.subf %39, %38 : vector<32x256xf32>
    %41 = math.exp %40 : vector<32x256xf32>
    %42 = math.log1p %41 : vector<32x256xf32>
    %43 = arith.addf %32, %42 : vector<32x256xf32>
    %44 = arith.select %35, %37, %43 : vector<32x256xi1>, vector<32x256xf32>
    %c0_17 = arith.constant 0 : index
    %c0_18 = arith.constant 0 : index
    %45 = vector.load %arg6[%c0_17, %c0_18] : memref<32x32xf32, #tpu.memory_space<vmem>>, vector<32x32xf32>
    %cst_19 = arith.constant dense<0.000000e+00> : vector<32x256xf32>
    %46 = tpu.matmul %45, %44, %cst_19 {dimension_numbers = #tpu.dot_dimension_numbers<[1], [0], [0], [1], [0, 0, 1, 1], [], []>, precision = #tpu.contract_precision<fp32>} : vector<32x32xf32>, vector<32x256xf32>, vector<32x256xf32> -> vector<32x256xf32>
    %c0_20 = arith.constant 0 : index
    %c0_21 = arith.constant 0 : index
    %47 = vector.load %arg7[%c0_20, %c0_21] : memref<32x1xf32, #tpu.memory_space<vmem>>, vector<32x1xf32>
    %48 = vector.broadcast %47 : vector<32x1xf32> to vector<32x256xf32>
    %49 = arith.addf %46, %48 : vector<32x256xf32>
    %cst_22 = arith.constant 0.000000e+00 : f32
    %50 = vector.broadcast %cst_22 : f32 to vector<32x256xf32>
    %51 = arith.maximumf %49, %50 : vector<32x256xf32>
    %52 = vector.broadcast %cst_22 : f32 to vector<32x256xf32>
    %53 = arith.subf %49, %52 : vector<32x256xf32>
    %54 = arith.cmpf one, %53, %53 : vector<32x256xf32>
    %55 = vector.broadcast %cst_22 : f32 to vector<32x256xf32>
    %56 = arith.addf %49, %55 : vector<32x256xf32>
    %57 = math.absf %53 : vector<32x256xf32>
    %cst_23 = arith.constant 0.000000e+00 : f32
    %58 = vector.broadcast %cst_23 : f32 to vector<32x256xf32>
    %59 = arith.subf %58, %57 : vector<32x256xf32>
    %60 = math.exp %59 : vector<32x256xf32>
    %61 = math.log1p %60 : vector<32x256xf32>
    %62 = arith.addf %51, %61 : vector<32x256xf32>
    %63 = arith.select %54, %56, %62 : vector<32x256xi1>, vector<32x256xf32>
    %c0_24 = arith.constant 0 : index
    %c0_25 = arith.constant 0 : index
    %64 = vector.load %arg8[%c0_24, %c0_25] : memref<4x32xf32, #tpu.memory_space<vmem>>, vector<4x32xf32>
    %65 = vector.extract_strided_slice %64 {offsets = [0, 0], sizes = [4, 1], strides = [1, 1]} : vector<4x32xf32> to vector<4x1xf32>
    %66 = vector.extract_strided_slice %63 {offsets = [0, 0], sizes = [1, 256], strides = [1, 1]} : vector<32x256xf32> to vector<1x256xf32>
    %67 = vector.broadcast %65 : vector<4x1xf32> to vector<4x256xf32>
    %68 = vector.broadcast %66 : vector<1x256xf32> to vector<4x256xf32>
    %69 = arith.mulf %67, %68 : vector<4x256xf32>
    %70 = vector.extract_strided_slice %64 {offsets = [0, 1], sizes = [4, 1], strides = [1, 1]} : vector<4x32xf32> to vector<4x1xf32>
    %71 = vector.extract_strided_slice %63 {offsets = [1, 0], sizes = [1, 256], strides = [1, 1]} : vector<32x256xf32> to vector<1x256xf32>
    %72 = vector.broadcast %70 : vector<4x1xf32> to vector<4x256xf32>
    %73 = vector.broadcast %71 : vector<1x256xf32> to vector<4x256xf32>
    %74 = arith.mulf %72, %73 : vector<4x256xf32>
    %75 = arith.addf %69, %74 : vector<4x256xf32>
    %76 = vector.extract_strided_slice %64 {offsets = [0, 2], sizes = [4, 1], strides = [1, 1]} : vector<4x32xf32> to vector<4x1xf32>
    %77 = vector.extract_strided_slice %63 {offsets = [2, 0], sizes = [1, 256], strides = [1, 1]} : vector<32x256xf32> to vector<1x256xf32>
    %78 = vector.broadcast %76 : vector<4x1xf32> to vector<4x256xf32>
    %79 = vector.broadcast %77 : vector<1x256xf32> to vector<4x256xf32>
    %80 = arith.mulf %78, %79 : vector<4x256xf32>
    %81 = arith.addf %75, %80 : vector<4x256xf32>
    %82 = vector.extract_strided_slice %64 {offsets = [0, 3], sizes = [4, 1], strides = [1, 1]} : vector<4x32xf32> to vector<4x1xf32>
    %83 = vector.extract_strided_slice %63 {offsets = [3, 0], sizes = [1, 256], strides = [1, 1]} : vector<32x256xf32> to vector<1x256xf32>
    %84 = vector.broadcast %82 : vector<4x1xf32> to vector<4x256xf32>
    %85 = vector.broadcast %83 : vector<1x256xf32> to vector<4x256xf32>
    %86 = arith.mulf %84, %85 : vector<4x256xf32>
    %87 = arith.addf %81, %86 : vector<4x256xf32>
    %88 = vector.extract_strided_slice %64 {offsets = [0, 4], sizes = [4, 1], strides = [1, 1]} : vector<4x32xf32> to vector<4x1xf32>
    %89 = vector.extract_strided_slice %63 {offsets = [4, 0], sizes = [1, 256], strides = [1, 1]} : vector<32x256xf32> to vector<1x256xf32>
    %90 = vector.broadcast %88 : vector<4x1xf32> to vector<4x256xf32>
    %91 = vector.broadcast %89 : vector<1x256xf32> to vector<4x256xf32>
    %92 = arith.mulf %90, %91 : vector<4x256xf32>
    %93 = arith.addf %87, %92 : vector<4x256xf32>
    %94 = vector.extract_strided_slice %64 {offsets = [0, 5], sizes = [4, 1], strides = [1, 1]} : vector<4x32xf32> to vector<4x1xf32>
    %95 = vector.extract_strided_slice %63 {offsets = [5, 0], sizes = [1, 256], strides = [1, 1]} : vector<32x256xf32> to vector<1x256xf32>
    %96 = vector.broadcast %94 : vector<4x1xf32> to vector<4x256xf32>
    %97 = vector.broadcast %95 : vector<1x256xf32> to vector<4x256xf32>
    %98 = arith.mulf %96, %97 : vector<4x256xf32>
    %99 = arith.addf %93, %98 : vector<4x256xf32>
    %100 = vector.extract_strided_slice %64 {offsets = [0, 6], sizes = [4, 1], strides = [1, 1]} : vector<4x32xf32> to vector<4x1xf32>
    %101 = vector.extract_strided_slice %63 {offsets = [6, 0], sizes = [1, 256], strides = [1, 1]} : vector<32x256xf32> to vector<1x256xf32>
    %102 = vector.broadcast %100 : vector<4x1xf32> to vector<4x256xf32>
    %103 = vector.broadcast %101 : vector<1x256xf32> to vector<4x256xf32>
    %104 = arith.mulf %102, %103 : vector<4x256xf32>
    %105 = arith.addf %99, %104 : vector<4x256xf32>
    %106 = vector.extract_strided_slice %64 {offsets = [0, 7], sizes = [4, 1], strides = [1, 1]} : vector<4x32xf32> to vector<4x1xf32>
    %107 = vector.extract_strided_slice %63 {offsets = [7, 0], sizes = [1, 256], strides = [1, 1]} : vector<32x256xf32> to vector<1x256xf32>
    %108 = vector.broadcast %106 : vector<4x1xf32> to vector<4x256xf32>
    %109 = vector.broadcast %107 : vector<1x256xf32> to vector<4x256xf32>
    %110 = arith.mulf %108, %109 : vector<4x256xf32>
    %111 = arith.addf %105, %110 : vector<4x256xf32>
    %112 = vector.extract_strided_slice %64 {offsets = [0, 8], sizes = [4, 1], strides = [1, 1]} : vector<4x32xf32> to vector<4x1xf32>
    %113 = vector.extract_strided_slice %63 {offsets = [8, 0], sizes = [1, 256], strides = [1, 1]} : vector<32x256xf32> to vector<1x256xf32>
    %114 = vector.broadcast %112 : vector<4x1xf32> to vector<4x256xf32>
    %115 = vector.broadcast %113 : vector<1x256xf32> to vector<4x256xf32>
    %116 = arith.mulf %114, %115 : vector<4x256xf32>
    %117 = arith.addf %111, %116 : vector<4x256xf32>
    %118 = vector.extract_strided_slice %64 {offsets = [0, 9], sizes = [4, 1], strides = [1, 1]} : vector<4x32xf32> to vector<4x1xf32>
    %119 = vector.extract_strided_slice %63 {offsets = [9, 0], sizes = [1, 256], strides = [1, 1]} : vector<32x256xf32> to vector<1x256xf32>
    %120 = vector.broadcast %118 : vector<4x1xf32> to vector<4x256xf32>
    %121 = vector.broadcast %119 : vector<1x256xf32> to vector<4x256xf32>
    %122 = arith.mulf %120, %121 : vector<4x256xf32>
    %123 = arith.addf %117, %122 : vector<4x256xf32>
    %124 = vector.extract_strided_slice %64 {offsets = [0, 10], sizes = [4, 1], strides = [1, 1]} : vector<4x32xf32> to vector<4x1xf32>
    %125 = vector.extract_strided_slice %63 {offsets = [10, 0], sizes = [1, 256], strides = [1, 1]} : vector<32x256xf32> to vector<1x256xf32>
    %126 = vector.broadcast %124 : vector<4x1xf32> to vector<4x256xf32>
    %127 = vector.broadcast %125 : vector<1x256xf32> to vector<4x256xf32>
    %128 = arith.mulf %126, %127 : vector<4x256xf32>
    %129 = arith.addf %123, %128 : vector<4x256xf32>
    %130 = vector.extract_strided_slice %64 {offsets = [0, 11], sizes = [4, 1], strides = [1, 1]} : vector<4x32xf32> to vector<4x1xf32>
    %131 = vector.extract_strided_slice %63 {offsets = [11, 0], sizes = [1, 256], strides = [1, 1]} : vector<32x256xf32> to vector<1x256xf32>
    %132 = vector.broadcast %130 : vector<4x1xf32> to vector<4x256xf32>
    %133 = vector.broadcast %131 : vector<1x256xf32> to vector<4x256xf32>
    %134 = arith.mulf %132, %133 : vector<4x256xf32>
    %135 = arith.addf %129, %134 : vector<4x256xf32>
    %136 = vector.extract_strided_slice %64 {offsets = [0, 12], sizes = [4, 1], strides = [1, 1]} : vector<4x32xf32> to vector<4x1xf32>
    %137 = vector.extract_strided_slice %63 {offsets = [12, 0], sizes = [1, 256], strides = [1, 1]} : vector<32x256xf32> to vector<1x256xf32>
    %138 = vector.broadcast %136 : vector<4x1xf32> to vector<4x256xf32>
    %139 = vector.broadcast %137 : vector<1x256xf32> to vector<4x256xf32>
    %140 = arith.mulf %138, %139 : vector<4x256xf32>
    %141 = arith.addf %135, %140 : vector<4x256xf32>
    %142 = vector.extract_strided_slice %64 {offsets = [0, 13], sizes = [4, 1], strides = [1, 1]} : vector<4x32xf32> to vector<4x1xf32>
    %143 = vector.extract_strided_slice %63 {offsets = [13, 0], sizes = [1, 256], strides = [1, 1]} : vector<32x256xf32> to vector<1x256xf32>
    %144 = vector.broadcast %142 : vector<4x1xf32> to vector<4x256xf32>
    %145 = vector.broadcast %143 : vector<1x256xf32> to vector<4x256xf32>
    %146 = arith.mulf %144, %145 : vector<4x256xf32>
    %147 = arith.addf %141, %146 : vector<4x256xf32>
    %148 = vector.extract_strided_slice %64 {offsets = [0, 14], sizes = [4, 1], strides = [1, 1]} : vector<4x32xf32> to vector<4x1xf32>
    %149 = vector.extract_strided_slice %63 {offsets = [14, 0], sizes = [1, 256], strides = [1, 1]} : vector<32x256xf32> to vector<1x256xf32>
    %150 = vector.broadcast %148 : vector<4x1xf32> to vector<4x256xf32>
    %151 = vector.broadcast %149 : vector<1x256xf32> to vector<4x256xf32>
    %152 = arith.mulf %150, %151 : vector<4x256xf32>
    %153 = arith.addf %147, %152 : vector<4x256xf32>
    %154 = vector.extract_strided_slice %64 {offsets = [0, 15], sizes = [4, 1], strides = [1, 1]} : vector<4x32xf32> to vector<4x1xf32>
    %155 = vector.extract_strided_slice %63 {offsets = [15, 0], sizes = [1, 256], strides = [1, 1]} : vector<32x256xf32> to vector<1x256xf32>
    %156 = vector.broadcast %154 : vector<4x1xf32> to vector<4x256xf32>
    %157 = vector.broadcast %155 : vector<1x256xf32> to vector<4x256xf32>
    %158 = arith.mulf %156, %157 : vector<4x256xf32>
    %159 = arith.addf %153, %158 : vector<4x256xf32>
    %160 = vector.extract_strided_slice %64 {offsets = [0, 16], sizes = [4, 1], strides = [1, 1]} : vector<4x32xf32> to vector<4x1xf32>
    %161 = vector.extract_strided_slice %63 {offsets = [16, 0], sizes = [1, 256], strides = [1, 1]} : vector<32x256xf32> to vector<1x256xf32>
    %162 = vector.broadcast %160 : vector<4x1xf32> to vector<4x256xf32>
    %163 = vector.broadcast %161 : vector<1x256xf32> to vector<4x256xf32>
    %164 = arith.mulf %162, %163 : vector<4x256xf32>
    %165 = arith.addf %159, %164 : vector<4x256xf32>
    %166 = vector.extract_strided_slice %64 {offsets = [0, 17], sizes = [4, 1], strides = [1, 1]} : vector<4x32xf32> to vector<4x1xf32>
    %167 = vector.extract_strided_slice %63 {offsets = [17, 0], sizes = [1, 256], strides = [1, 1]} : vector<32x256xf32> to vector<1x256xf32>
    %168 = vector.broadcast %166 : vector<4x1xf32> to vector<4x256xf32>
    %169 = vector.broadcast %167 : vector<1x256xf32> to vector<4x256xf32>
    %170 = arith.mulf %168, %169 : vector<4x256xf32>
    %171 = arith.addf %165, %170 : vector<4x256xf32>
    %172 = vector.extract_strided_slice %64 {offsets = [0, 18], sizes = [4, 1], strides = [1, 1]} : vector<4x32xf32> to vector<4x1xf32>
    %173 = vector.extract_strided_slice %63 {offsets = [18, 0], sizes = [1, 256], strides = [1, 1]} : vector<32x256xf32> to vector<1x256xf32>
    %174 = vector.broadcast %172 : vector<4x1xf32> to vector<4x256xf32>
    %175 = vector.broadcast %173 : vector<1x256xf32> to vector<4x256xf32>
    %176 = arith.mulf %174, %175 : vector<4x256xf32>
    %177 = arith.addf %171, %176 : vector<4x256xf32>
    %178 = vector.extract_strided_slice %64 {offsets = [0, 19], sizes = [4, 1], strides = [1, 1]} : vector<4x32xf32> to vector<4x1xf32>
    %179 = vector.extract_strided_slice %63 {offsets = [19, 0], sizes = [1, 256], strides = [1, 1]} : vector<32x256xf32> to vector<1x256xf32>
    %180 = vector.broadcast %178 : vector<4x1xf32> to vector<4x256xf32>
    %181 = vector.broadcast %179 : vector<1x256xf32> to vector<4x256xf32>
    %182 = arith.mulf %180, %181 : vector<4x256xf32>
    %183 = arith.addf %177, %182 : vector<4x256xf32>
    %184 = vector.extract_strided_slice %64 {offsets = [0, 20], sizes = [4, 1], strides = [1, 1]} : vector<4x32xf32> to vector<4x1xf32>
    %185 = vector.extract_strided_slice %63 {offsets = [20, 0], sizes = [1, 256], strides = [1, 1]} : vector<32x256xf32> to vector<1x256xf32>
    %186 = vector.broadcast %184 : vector<4x1xf32> to vector<4x256xf32>
    %187 = vector.broadcast %185 : vector<1x256xf32> to vector<4x256xf32>
    %188 = arith.mulf %186, %187 : vector<4x256xf32>
    %189 = arith.addf %183, %188 : vector<4x256xf32>
    %190 = vector.extract_strided_slice %64 {offsets = [0, 21], sizes = [4, 1], strides = [1, 1]} : vector<4x32xf32> to vector<4x1xf32>
    %191 = vector.extract_strided_slice %63 {offsets = [21, 0], sizes = [1, 256], strides = [1, 1]} : vector<32x256xf32> to vector<1x256xf32>
    %192 = vector.broadcast %190 : vector<4x1xf32> to vector<4x256xf32>
    %193 = vector.broadcast %191 : vector<1x256xf32> to vector<4x256xf32>
    %194 = arith.mulf %192, %193 : vector<4x256xf32>
    %195 = arith.addf %189, %194 : vector<4x256xf32>
    %196 = vector.extract_strided_slice %64 {offsets = [0, 22], sizes = [4, 1], strides = [1, 1]} : vector<4x32xf32> to vector<4x1xf32>
    %197 = vector.extract_strided_slice %63 {offsets = [22, 0], sizes = [1, 256], strides = [1, 1]} : vector<32x256xf32> to vector<1x256xf32>
    %198 = vector.broadcast %196 : vector<4x1xf32> to vector<4x256xf32>
    %199 = vector.broadcast %197 : vector<1x256xf32> to vector<4x256xf32>
    %200 = arith.mulf %198, %199 : vector<4x256xf32>
    %201 = arith.addf %195, %200 : vector<4x256xf32>
    %202 = vector.extract_strided_slice %64 {offsets = [0, 23], sizes = [4, 1], strides = [1, 1]} : vector<4x32xf32> to vector<4x1xf32>
    %203 = vector.extract_strided_slice %63 {offsets = [23, 0], sizes = [1, 256], strides = [1, 1]} : vector<32x256xf32> to vector<1x256xf32>
    %204 = vector.broadcast %202 : vector<4x1xf32> to vector<4x256xf32>
    %205 = vector.broadcast %203 : vector<1x256xf32> to vector<4x256xf32>
    %206 = arith.mulf %204, %205 : vector<4x256xf32>
    %207 = arith.addf %201, %206 : vector<4x256xf32>
    %208 = vector.extract_strided_slice %64 {offsets = [0, 24], sizes = [4, 1], strides = [1, 1]} : vector<4x32xf32> to vector<4x1xf32>
    %209 = vector.extract_strided_slice %63 {offsets = [24, 0], sizes = [1, 256], strides = [1, 1]} : vector<32x256xf32> to vector<1x256xf32>
    %210 = vector.broadcast %208 : vector<4x1xf32> to vector<4x256xf32>
    %211 = vector.broadcast %209 : vector<1x256xf32> to vector<4x256xf32>
    %212 = arith.mulf %210, %211 : vector<4x256xf32>
    %213 = arith.addf %207, %212 : vector<4x256xf32>
    %214 = vector.extract_strided_slice %64 {offsets = [0, 25], sizes = [4, 1], strides = [1, 1]} : vector<4x32xf32> to vector<4x1xf32>
    %215 = vector.extract_strided_slice %63 {offsets = [25, 0], sizes = [1, 256], strides = [1, 1]} : vector<32x256xf32> to vector<1x256xf32>
    %216 = vector.broadcast %214 : vector<4x1xf32> to vector<4x256xf32>
    %217 = vector.broadcast %215 : vector<1x256xf32> to vector<4x256xf32>
    %218 = arith.mulf %216, %217 : vector<4x256xf32>
    %219 = arith.addf %213, %218 : vector<4x256xf32>
    %220 = vector.extract_strided_slice %64 {offsets = [0, 26], sizes = [4, 1], strides = [1, 1]} : vector<4x32xf32> to vector<4x1xf32>
    %221 = vector.extract_strided_slice %63 {offsets = [26, 0], sizes = [1, 256], strides = [1, 1]} : vector<32x256xf32> to vector<1x256xf32>
    %222 = vector.broadcast %220 : vector<4x1xf32> to vector<4x256xf32>
    %223 = vector.broadcast %221 : vector<1x256xf32> to vector<4x256xf32>
    %224 = arith.mulf %222, %223 : vector<4x256xf32>
    %225 = arith.addf %219, %224 : vector<4x256xf32>
    %226 = vector.extract_strided_slice %64 {offsets = [0, 27], sizes = [4, 1], strides = [1, 1]} : vector<4x32xf32> to vector<4x1xf32>
    %227 = vector.extract_strided_slice %63 {offsets = [27, 0], sizes = [1, 256], strides = [1, 1]} : vector<32x256xf32> to vector<1x256xf32>
    %228 = vector.broadcast %226 : vector<4x1xf32> to vector<4x256xf32>
    %229 = vector.broadcast %227 : vector<1x256xf32> to vector<4x256xf32>
    %230 = arith.mulf %228, %229 : vector<4x256xf32>
    %231 = arith.addf %225, %230 : vector<4x256xf32>
    %232 = vector.extract_strided_slice %64 {offsets = [0, 28], sizes = [4, 1], strides = [1, 1]} : vector<4x32xf32> to vector<4x1xf32>
    %233 = vector.extract_strided_slice %63 {offsets = [28, 0], sizes = [1, 256], strides = [1, 1]} : vector<32x256xf32> to vector<1x256xf32>
    %234 = vector.broadcast %232 : vector<4x1xf32> to vector<4x256xf32>
    %235 = vector.broadcast %233 : vector<1x256xf32> to vector<4x256xf32>
    %236 = arith.mulf %234, %235 : vector<4x256xf32>
    %237 = arith.addf %231, %236 : vector<4x256xf32>
    %238 = vector.extract_strided_slice %64 {offsets = [0, 29], sizes = [4, 1], strides = [1, 1]} : vector<4x32xf32> to vector<4x1xf32>
    %239 = vector.extract_strided_slice %63 {offsets = [29, 0], sizes = [1, 256], strides = [1, 1]} : vector<32x256xf32> to vector<1x256xf32>
    %240 = vector.broadcast %238 : vector<4x1xf32> to vector<4x256xf32>
    %241 = vector.broadcast %239 : vector<1x256xf32> to vector<4x256xf32>
    %242 = arith.mulf %240, %241 : vector<4x256xf32>
    %243 = arith.addf %237, %242 : vector<4x256xf32>
    %244 = vector.extract_strided_slice %64 {offsets = [0, 30], sizes = [4, 1], strides = [1, 1]} : vector<4x32xf32> to vector<4x1xf32>
    %245 = vector.extract_strided_slice %63 {offsets = [30, 0], sizes = [1, 256], strides = [1, 1]} : vector<32x256xf32> to vector<1x256xf32>
    %246 = vector.broadcast %244 : vector<4x1xf32> to vector<4x256xf32>
    %247 = vector.broadcast %245 : vector<1x256xf32> to vector<4x256xf32>
    %248 = arith.mulf %246, %247 : vector<4x256xf32>
    %249 = arith.addf %243, %248 : vector<4x256xf32>
    %250 = vector.extract_strided_slice %64 {offsets = [0, 31], sizes = [4, 1], strides = [1, 1]} : vector<4x32xf32> to vector<4x1xf32>
    %251 = vector.extract_strided_slice %63 {offsets = [31, 0], sizes = [1, 256], strides = [1, 1]} : vector<32x256xf32> to vector<1x256xf32>
    %252 = vector.broadcast %250 : vector<4x1xf32> to vector<4x256xf32>
    %253 = vector.broadcast %251 : vector<1x256xf32> to vector<4x256xf32>
    %254 = arith.mulf %252, %253 : vector<4x256xf32>
    %255 = arith.addf %249, %254 : vector<4x256xf32>
    %c0_26 = arith.constant 0 : index
    %c0_27 = arith.constant 0 : index
    %256 = vector.load %arg9[%c0_26, %c0_27] : memref<4x1xf32, #tpu.memory_space<vmem>>, vector<4x1xf32>
    %257 = vector.broadcast %256 : vector<4x1xf32> to vector<4x256xf32>
    %258 = arith.addf %255, %257 : vector<4x256xf32>
    %c0_28 = arith.constant 0 : index
    %c0_29 = arith.constant 0 : index
    %259 = vector.load %arg10[%c0_28, %c0_29] : memref<4x256xf32, #tpu.memory_space<vmem>>, vector<4x256xf32>
    tpu.vector_store %arg10[%c0_28, %c0_29], %258 {strides = array<i32>} : memref<4x256xf32, #tpu.memory_space<vmem>>, vector<4x256xf32>,
    return
  }
  func.func @transform_0(%arg0: i32) -> (i32, i32) {
    %c0_i32 = arith.constant 0 : i32
    %c0_i32_0 = arith.constant 0 : i32
    return %c0_i32, %arg0 : i32, i32
  }
  func.func @transform_1(%arg0: i32) -> (i32, i32) {
    %c0_i32 = arith.constant 0 : i32
    %c0_i32_0 = arith.constant 0 : i32
    return %c0_i32, %arg0 : i32, i32
  }
  func.func @transform_2(%arg0: i32) -> (i32, i32) {
    %c0_i32 = arith.constant 0 : i32
    %c0_i32_0 = arith.constant 0 : i32
    %c0_i32_1 = arith.constant 0 : i32
    return %c0_i32, %c0_i32_0 : i32, i32
  }
  func.func @transform_3(%arg0: i32) -> (i32, i32) {
    %c0_i32 = arith.constant 0 : i32
    %c0_i32_0 = arith.constant 0 : i32
    %c0_i32_1 = arith.constant 0 : i32
    return %c0_i32, %c0_i32_0 : i32, i32
  }
  func.func @transform_4(%arg0: i32) -> (i32, i32) {
    %c0_i32 = arith.constant 0 : i32
    %c0_i32_0 = arith.constant 0 : i32
    %c0_i32_1 = arith.constant 0 : i32
    return %c0_i32, %c0_i32_0 : i32, i32
  }
  func.func @transform_5(%arg0: i32) -> (i32, i32) {
    %c0_i32 = arith.constant 0 : i32
    %c0_i32_0 = arith.constant 0 : i32
    %c0_i32_1 = arith.constant 0 : i32
    return %c0_i32, %c0_i32_0 : i32, i32
  }
  func.func @transform_6(%arg0: i32) -> (i32, i32) {
    %c0_i32 = arith.constant 0 : i32
    %c0_i32_0 = arith.constant 0 : i32
    %c0_i32_1 = arith.constant 0 : i32
    return %c0_i32, %c0_i32_0 : i32, i32
  }
  func.func @transform_7(%arg0: i32) -> (i32, i32) {
    %c0_i32 = arith.constant 0 : i32
    %c0_i32_0 = arith.constant 0 : i32
    %c0_i32_1 = arith.constant 0 : i32
    return %c0_i32, %c0_i32_0 : i32, i32
  }
  func.func @transform_8(%arg0: i32) -> (i32, i32) {
    %c0_i32 = arith.constant 0 : i32
    %c0_i32_0 = arith.constant 0 : i32
    %c0_i32_1 = arith.constant 0 : i32
    return %c0_i32, %c0_i32_0 : i32, i32
  }
  func.func @transform_9(%arg0: i32) -> (i32, i32) {
    %c0_i32 = arith.constant 0 : i32
    %c0_i32_0 = arith.constant 0 : i32
    return %c0_i32, %arg0 : i32, i32
  }
}

</mosaic_0001>

<llo_original>
// kernel: lipschitz_conditional_ffn.1
$region0: #{lipschitz_conditional_ffn.1}
  #allocation0 [shape = 'u32[]', space=smem, size = 0x4, offset = 0x4, fixed_abs, tag = 'smem constant byte address 0x4 - core index']
  #allocation1 [shape = 'u32[144,128]{1,0:T(1,128)}', space=vmem, size = 0x12000, scoped, tag = 'internal scratch']
  #allocation2 [shape = 'f32[36,256]{1,0:T(8,128)}', space=vmem, size = 0xa000, scoped, tag = 'scratch operand']
  %s0 = inlined_call_operand.vmem [shape: f32[3,256], index: 0, kind: input, shape index: {}]
  %s1 = inlined_call_operand.vmem [shape: f32[4,256], index: 1, kind: input, shape index: {}]
  %s2 = inlined_call_operand.vmem [shape: f32[16,3], index: 2, kind: input, shape index: {}]
  %s3 = inlined_call_operand.vmem [shape: f32[32,36], index: 3, kind: input, shape index: {}]
  %s4 = inlined_call_operand.vmem [shape: f32[32,1], index: 4, kind: input, shape index: {}]
  %s5 = inlined_call_operand.vmem [shape: f32[32,32], index: 5, kind: input, shape index: {}]
  %s6 = inlined_call_operand.vmem [shape: f32[32,1], index: 6, kind: input, shape index: {}]
  %s7 = inlined_call_operand.vmem [shape: f32[4,32], index: 7, kind: input, shape index: {}]
  %s8 = inlined_call_operand.vmem [shape: f32[4,1], index: 8, kind: input, shape index: {}]
  %s9 = inlined_call_operand.vmem [shape: f32[4,256], index: 9, kind: output, shape index: {}]
  %s10 = sld [smem:[#allocation0]]
  $region46: #{lipschitz_conditional_ffn.1} parent=0
    _
  %s12 = ssub.s32 1, %s10
  %s13 = scalar_select 0, %s12, %s10
  // Predicated region
  $region2: #{lipschitz_conditional_ffn.1} parent=0 // pred_check
    _
  $region3: #{lipschitz_conditional_ffn.1} parent=0 // pred_check_branch
    %15 = sbr.rel (0) target = $region5
  $region4: #{lipschitz_conditional_ffn.1} parent=0 // pred_region
    _
  $region5: #{lipschitz_conditional_ffn.1} parent=0 // pred_fallthru
    _
  // Predicated region
  $region6: #{lipschitz_conditional_ffn.1} parent=0 // pred_check
    _
  $region7: #{lipschitz_conditional_ffn.1} parent=0 // pred_check_branch
    %17 = sbr.rel (0) target = $region9
  $region8: #{lipschitz_conditional_ffn.1} parent=0 // pred_region
    _
  $region9: #{lipschitz_conditional_ffn.1} parent=0 // pred_fallthru
    _
  // Predicated region
  $region10: #{lipschitz_conditional_ffn.1} parent=0 // pred_check
    _
  $region11: #{lipschitz_conditional_ffn.1} parent=0 // pred_check_branch
    %19 = sbr.rel (0) target = $region13
  $region12: #{lipschitz_conditional_ffn.1} parent=0 // pred_region
    _
  $region13: #{lipschitz_conditional_ffn.1} parent=0 // pred_fallthru
    _
  // Predicated region
  $region14: #{lipschitz_conditional_ffn.1} parent=0 // pred_check
    _
  $region15: #{lipschitz_conditional_ffn.1} parent=0 // pred_check_branch
    %21 = sbr.rel (0) target = $region17
  $region16: #{lipschitz_conditional_ffn.1} parent=0 // pred_region
    _
  $region17: #{lipschitz_conditional_ffn.1} parent=0 // pred_fallthru
    _
  // Predicated region
  $region18: #{lipschitz_conditional_ffn.1} parent=0 // pred_check
    _
  $region19: #{lipschitz_conditional_ffn.1} parent=0 // pred_check_branch
    %23 = sbr.rel (0) target = $region21
  $region20: #{lipschitz_conditional_ffn.1} parent=0 // pred_region
    _
  $region21: #{lipschitz_conditional_ffn.1} parent=0 // pred_fallthru
    _
  // Predicated region
  $region22: #{lipschitz_conditional_ffn.1} parent=0 // pred_check
    _
  $region23: #{lipschitz_conditional_ffn.1} parent=0 // pred_check_branch
    %25 = sbr.rel (0) target = $region25
  $region24: #{lipschitz_conditional_ffn.1} parent=0 // pred_region
    _
  $region25: #{lipschitz_conditional_ffn.1} parent=0 // pred_fallthru
    _
  // Predicated region
  $region26: #{lipschitz_conditional_ffn.1} parent=0 // pred_check
    _
  $region27: #{lipschitz_conditional_ffn.1} parent=0 // pred_check_branch
    %27 = sbr.rel (0) target = $region29
  $region28: #{lipschitz_conditional_ffn.1} parent=0 // pred_region
    _
  $region29: #{lipschitz_conditional_ffn.1} parent=0 // pred_fallthru
    _
  // Predicated region
  $region30: #{lipschitz_conditional_ffn.1} parent=0 // pred_check
    _
  $region31: #{lipschitz_conditional_ffn.1} parent=0 // pred_check_branch
    %29 = sbr.rel (0) target = $region33
  $region32: #{lipschitz_conditional_ffn.1} parent=0 // pred_region
    _
  $region33: #{lipschitz_conditional_ffn.1} parent=0 // pred_fallthru
    _
  // Predicated region
  $region34: #{lipschitz_conditional_ffn.1} parent=0 // pred_check
    _
  $region35: #{lipschitz_conditional_ffn.1} parent=0 // pred_check_branch
    %31 = sbr.rel (0) target = $region37
  $region36: #{lipschitz_conditional_ffn.1} parent=0 // pred_region
    _
  $region37: #{lipschitz_conditional_ffn.1} parent=0 // pred_fallthru
    _
  %v32 = vld [vmem:[%s2] sm:$0xff]
  %v33 = vld [vmem:[%s2 + $0x8] sm:$0xff]
  %v34 = vld [vmem:[%s0] sm:$0x77]
  %36 = vset.pattern.permute.xlu0 0
  %37 = vperm.xlu0 %36, %v32
  %v38 = vpop.permute.xlu0 %37
  %41 = vset.pattern.permute.xlu0 0
  %42 = vperm.xlu0 %41, %v33
  %v43 = vpop.permute.xlu0 %42
  %v46 = vlaneseq
  %v47 = vshrl.u32 %v46, 7
  %v48 = vsub.s32 0, %v47
  %v49 = vrot.slane %v34, %v48
  %v50 = vlaneseq
  %v51 = vshrl.u32 %v50, 7
  %v52 = vsub.s32 4, %v51
  %v53 = vrot.slane %v34, %v52
  %v56 = vlaneseq
  %v57 = vshrl.u32 %v56, 7
  %v58 = vsub.s32 0, %v57
  %v59 = vrot.slane %v49, %v58
  %v60 = vlaneseq
  %v61 = vshrl.u32 %v60, 7
  %v62 = vsub.s32 0, %v61
  %v63 = vrot.slane %v53, %v62
  %v64 = vmul.f32 %v38, %v59
  %v65 = vmul.f32 %v38, %v63
  %v66 = vmul.f32 %v43, %v59
  %v67 = vmul.f32 %v43, %v63
  %68 = vset.pattern.permute.xlu0 1
  %69 = vperm.xlu0 %68, %v32
  %v70 = vpop.permute.xlu0 %69
  %72 = vset.pattern.permute.xlu0 1
  %73 = vperm.xlu0 %72, %v33
  %v74 = vpop.permute.xlu0 %73
  %v76 = vlaneseq
  %v77 = vshrl.u32 %v76, 7
  %v78 = vsub.s32 1, %v77
  %v79 = vrot.slane %v34, %v78
  %v80 = vlaneseq
  %v81 = vshrl.u32 %v80, 7
  %v82 = vsub.s32 5, %v81
  %v83 = vrot.slane %v34, %v82
  %v86 = vlaneseq
  %v87 = vshrl.u32 %v86, 7
  %v88 = vsub.s32 1, %v87
  %v89 = vrot.slane %v79, %v88
  %v90 = vlaneseq
  %v91 = vshrl.u32 %v90, 7
  %v92 = vsub.s32 1, %v91
  %v93 = vrot.slane %v83, %v92
  %v94 = vmul.f32 %v70, %v89
  %v95 = vmul.f32 %v70, %v93
  %v96 = vmul.f32 %v74, %v89
  %v97 = vmul.f32 %v74, %v93
  %v98 = vadd.f32 %v64, %v94
  %v99 = vadd.f32 %v65, %v95
  %v100 = vadd.f32 %v66, %v96
  %v101 = vadd.f32 %v67, %v97
  %102 = vset.pattern.permute.xlu0 2
  %103 = vperm.xlu0 %102, %v32
  %v104 = vpop.permute.xlu0 %103
  %106 = vset.pattern.permute.xlu0 2
  %107 = vperm.xlu0 %106, %v33
  %v108 = vpop.permute.xlu0 %107
  %v110 = vlaneseq
  %v111 = vshrl.u32 %v110, 7
  %v112 = vsub.s32 2, %v111
  %v113 = vrot.slane %v34, %v112
  %v114 = vlaneseq
  %v115 = vshrl.u32 %v114, 7
  %v116 = vsub.s32 6, %v115
  %v117 = vrot.slane %v34, %v116
  %v120 = vlaneseq
  %v121 = vshrl.u32 %v120, 7
  %v122 = vsub.s32 2, %v121
  %v123 = vrot.slane %v113, %v122
  %v124 = vlaneseq
  %v125 = vshrl.u32 %v124, 7
  %v126 = vsub.s32 2, %v125
  %v127 = vrot.slane %v117, %v126
  %v128 = vmul.f32 %v104, %v123
  %v129 = vmul.f32 %v104, %v127
  %v130 = vmul.f32 %v108, %v123
  %v131 = vmul.f32 %v108, %v127
  %v132 = vadd.f32 %v98, %v128
  %v133 = vadd.f32 %v99, %v129
  %v134 = vadd.f32 %v100, %v130
  %v135 = vadd.f32 %v101, %v131
  %v136 = vand.u32 2147483647, %v132
  %vm137 = vcmp.le.f32.partialorder %v136, 0.7853982
  %vm138 = vcmp.lt.s32.totalorder %v132, 0
  %v139 = vand.u32 %v132, 2139095040
  %v140 = vshrl.u32 %v139, 23
  %v141 = vsub.s32 %v140, 127
  %v142 = vand.u32 2147483647, %v132
  %v143 = vand.u32 %v142, 8388607
  %v144 = vor.u32 %v143, 8388608
  %v145 = vsub.s32 0, %v144
  %v146 = vadd.s32 %v141, 1
  %vm147 = vcmp.gt.s32.totalorder %v146, 0
  %v148 = vsel %vm147, %v146, 0
  %v149 = vshrl.u32 %v148, 5
  %v150 = vand.u32 %v148, 31
  %v151 = vsub.s32 32, %v150
  %v152 = vshrl.u32 683565275, %v151
  %v153 = vshll.u32 683565275, %v150
  %v154 = vshrl.u32 2475754826, %v151
  %v155 = vor.u32 %v153, %v154
  %v156 = vshll.u32 2475754826, %v150
  %v157 = vshrl.u32 2131351028, %v151
  %v158 = vor.u32 %v156, %v157
  %v159 = vshll.u32 2131351028, %v150
  %v160 = vshrl.u32 2102212464, %v151
  %v161 = vor.u32 %v159, %v160
  %v162 = vshll.u32 2102212464, %v150
  %v163 = vshrl.u32 920167782, %v151
  %v164 = vor.u32 %v162, %v163
  %v165 = vshll.u32 920167782, %v150
  %v166 = vshrl.u32 1326507024, %v151
  %v167 = vor.u32 %v165, %v166
  %vm168 = vcmp.lt.s32.totalorder %v149, 1
  %vm169 = vcmp.lt.s32.totalorder %v149, 2
  %vm170 = vcmp.lt.s32.totalorder %v149, 3
  %vm171 = vcmp.lt.s32.totalorder %v149, 4
  %v172 = vsel %vm168, %v152, %v155
  %v173 = vsel %vm171, %v161, 2102212464
  %v174 = vsel %vm170, %v158, %v173
  %v175 = vsel %vm169, %v172, %v174
  %v176 = vsel %vm168, %v155, %v158
  %v177 = vsel %vm171, %v164, 920167782
  %v178 = vsel %vm170, %v161, %v177
  %v179 = vsel %vm169, %v176, %v178
  %v180 = vsel %vm168, %v158, %v161
  %v181 = vsel %vm171, %v167, 1326507024
  %v182 = vsel %vm170, %v164, %v181
  %v183 = vsel %vm169, %v180, %v182
  %v184 = vshll.u32 %v144, 8
  %v185 = vmul.u32.u64.compose %v184, %v183
  %v186 = vextract.low.u32 %v185
  %v187 = vextract.high.u32 %v185
  %v188 = vmul.u32.u64.compose %v184, %v179
  %v189 = vextract.low.u32 %v188
  %v190 = vextract.high.u32 %v188
  %v191 = vmul.u32 %v184, %v175
  %v192 = vadd.s32 %v187, %v189
  %vm193 = vc.u32 %v187, %v189
  %v194 = vadd.s32 %v190, 1
  %v195 = vsel %vm193, %v194, %v190
  %v196 = vadd.s32 %v191, %v195
  %v197 = vadd.s32 %v196, 536870912
  %v198 = vshrl.u32 %v197, 30
  %v199 = vshll.u32 %v198, 30
  %v200 = vsub.s32 %v196, %v199
  %vm201 = vcmp.lt.s32.totalorder %v200, 0
  %v202 = vsub.s32 0, %v200
  %v203 = vsel %vm201, %v202, %v200
  %v204 = vclz %v203
  %v205 = vsub.s32 %v204, 2
  %vm206 = vcmp.gt.s32.totalorder 0, %v205
  %v207 = vsel %vm206, 0, %v205
  %v208 = vsub.s32 32, %v207
  %v209 = vshll.u32 %v200, %v207
  %v210 = vshrl.u32 %v192, %v208
  %v211 = vor.u32 %v209, %v210
  %v212 = vsub.s32 4294967266, %v207
  %v213 = vadd.s32 %v212, 127
  %v214 = vshll.u32 %v213, 23
  %v215 = vor.u32 4788187, %v214
  %v216 = vand.u32 2147483647, %v215
  %v218 = vcvt.s32.f32 %v211
  %v219 = vmul.f32 %v218, %v216
  %v220 = vxor.u32 %v219, 2147483648
  %v221 = vsel %vm138, %v220, %v219
  %v222 = vsub.s32 4, %v198
  %v223 = vsel %vm138, %v222, %v198
  %v224 = vsel %vm137, %v132, %v221
  %v225 = vsel %vm137, 0, %v223
  %v226 = vcosq.f32.pop %v224
  %v227 = vsinq.f32.pop %v224
  %vm228 = vweird.f32 %v132
  %v229 = vadd.s32 %v225, 3
  %v230 = vand.u32 %v229, 3
  %vm231 = vcmp.lt.s32.totalorder %v230, 2
  %vm232 = vcmp.eq.s32.totalorder %v230, 0
  %v233 = vxor.u32 %v227, 2147483648
  %v234 = vsel %vm232, %v226, %v233
  %vm235 = vcmp.eq.s32.totalorder %v230, 2
  %v236 = vxor.u32 %v226, 2147483648
  %v237 = vsel %vm235, %v236, %v227
  %v238 = vsel %vm231, %v234, %v237
  %v239 = vsel %vm228, nan, %v238
  %v240 = vand.u32 2147483647, %v133
  %vm241 = vcmp.le.f32.partialorder %v240, 0.7853982
  %vm242 = vcmp.lt.s32.totalorder %v133, 0
  %v243 = vand.u32 %v133, 2139095040
  %v244 = vshrl.u32 %v243, 23
  %v245 = vsub.s32 %v244, 127
  %v246 = vand.u32 2147483647, %v133
  %v247 = vand.u32 %v246, 8388607
  %v248 = vor.u32 %v247, 8388608
  %v249 = vsub.s32 0, %v248
  %v250 = vadd.s32 %v245, 1
  %vm251 = vcmp.gt.s32.totalorder %v250, 0
  %v252 = vsel %vm251, %v250, 0
  %v253 = vshrl.u32 %v252, 5
  %v254 = vand.u32 %v252, 31
  %v255 = vsub.s32 32, %v254
  %v256 = vshrl.u32 683565275, %v255
  %v257 = vshll.u32 683565275, %v254
  %v258 = vshrl.u32 2475754826, %v255
  %v259 = vor.u32 %v257, %v258
  %v260 = vshll.u32 2475754826, %v254
  %v261 = vshrl.u32 2131351028, %v255
  %v262 = vor.u32 %v260, %v261
  %v263 = vshll.u32 2131351028, %v254
  %v264 = vshrl.u32 2102212464, %v255
  %v265 = vor.u32 %v263, %v264
  %v266 = vshll.u32 2102212464, %v254
  %v267 = vshrl.u32 920167782, %v255
  %v268 = vor.u32 %v266, %v267
  %v269 = vshll.u32 920167782, %v254
  %v270 = vshrl.u32 1326507024, %v255
  %v271 = vor.u32 %v269, %v270
  %vm272 = vcmp.lt.s32.totalorder %v253, 1
  %vm273 = vcmp.lt.s32.totalorder %v253, 2
  %vm274 = vcmp.lt.s32.totalorder %v253, 3
  %vm275 = vcmp.lt.s32.totalorder %v253, 4
  %v276 = vsel %vm272, %v256, %v259
  %v277 = vsel %vm275, %v265, 2102212464
  %v278 = vsel %vm274, %v262, %v277
  %v279 = vsel %vm273, %v276, %v278
  %v280 = vsel %vm272, %v259, %v262
  %v281 = vsel %vm275, %v268, 920167782
  %v282 = vsel %vm274, %v265, %v281
  %v283 = vsel %vm273, %v280, %v282
  %v284 = vsel %vm272, %v262, %v265
  %v285 = vsel %vm275, %v271, 1326507024
  %v286 = vsel %vm274, %v268, %v285
  %v287 = vsel %vm273, %v284, %v286
  %v288 = vshll.u32 %v248, 8
  %v289 = vmul.u32.u64.compose %v288, %v287
  %v290 = vextract.low.u32 %v289
  %v291 = vextract.high.u32 %v289
  %v292 = vmul.u32.u64.compose %v288, %v283
  %v293 = vextract.low.u32 %v292
  %v294 = vextract.high.u32 %v292
  %v295 = vmul.u32 %v288, %v279
  %v296 = vadd.s32 %v291, %v293
  %vm297 = vc.u32 %v291, %v293
  %v298 = vadd.s32 %v294, 1
  %v299 = vsel %vm297, %v298, %v294
  %v300 = vadd.s32 %v295, %v299
  %v301 = vadd.s32 %v300, 536870912
  %v302 = vshrl.u32 %v301, 30
  %v303 = vshll.u32 %v302, 30
  %v304 = vsub.s32 %v300, %v303
  %vm305 = vcmp.lt.s32.totalorder %v304, 0
  %v306 = vsub.s32 0, %v304
  %v307 = vsel %vm305, %v306, %v304
  %v308 = vclz %v307
  %v309 = vsub.s32 %v308, 2
  %vm310 = vcmp.gt.s32.totalorder 0, %v309
  %v311 = vsel %vm310, 0, %v309
  %v312 = vsub.s32 32, %v311
  %v313 = vshll.u32 %v304, %v311
  %v314 = vshrl.u32 %v296, %v312
  %v315 = vor.u32 %v313, %v314
  %v316 = vsub.s32 4294967266, %v311
  %v317 = vadd.s32 %v316, 127
  %v318 = vshll.u32 %v317, 23
  %v319 = vor.u32 4788187, %v318
  %v320 = vand.u32 2147483647, %v319
  %v322 = vcvt.s32.f32 %v315
  %v323 = vmul.f32 %v322, %v320
  %v324 = vxor.u32 %v323, 2147483648
  %v325 = vsel %vm242, %v324, %v323
  %v326 = vsub.s32 4, %v302
  %v327 = vsel %vm242, %v326, %v302
  %v328 = vsel %vm241, %v133, %v325
  %v329 = vsel %vm241, 0, %v327
  %v330 = vcosq.f32.pop %v328
  %v331 = vsinq.f32.pop %v328
  %vm332 = vweird.f32 %v133
  %v333 = vadd.s32 %v329, 3
  %v334 = vand.u32 %v333, 3
  %vm335 = vcmp.lt.s32.totalorder %v334, 2
  %vm336 = vcmp.eq.s32.totalorder %v334, 0
  %v337 = vxor.u32 %v331, 2147483648
  %v338 = vsel %vm336, %v330, %v337
  %vm339 = vcmp.eq.s32.totalorder %v334, 2
  %v340 = vxor.u32 %v330, 2147483648
  %v341 = vsel %vm339, %v340, %v331
  %v342 = vsel %vm335, %v338, %v341
  %v343 = vsel %vm332, nan, %v342
  %v344 = vand.u32 2147483647, %v134
  %vm345 = vcmp.le.f32.partialorder %v344, 0.7853982
  %vm346 = vcmp.lt.s32.totalorder %v134, 0
  %v347 = vand.u32 %v134, 2139095040
  %v348 = vshrl.u32 %v347, 23
  %v349 = vsub.s32 %v348, 127
  %v350 = vand.u32 2147483647, %v134
  %v351 = vand.u32 %v350, 8388607
  %v352 = vor.u32 %v351, 8388608
  %v353 = vsub.s32 0, %v352
  %v354 = vadd.s32 %v349, 1
  %vm355 = vcmp.gt.s32.totalorder %v354, 0
  %v356 = vsel %vm355, %v354, 0
  %v357 = vshrl.u32 %v356, 5
  %v358 = vand.u32 %v356, 31
  %v359 = vsub.s32 32, %v358
  %v360 = vshrl.u32 683565275, %v359
  %v361 = vshll.u32 683565275, %v358
  %v362 = vshrl.u32 2475754826, %v359
  %v363 = vor.u32 %v361, %v362
  %v364 = vshll.u32 2475754826, %v358
  %v365 = vshrl.u32 2131351028, %v359
  %v366 = vor.u32 %v364, %v365
  %v367 = vshll.u32 2131351028, %v358
  %v368 = vshrl.u32 2102212464, %v359
  %v369 = vor.u32 %v367, %v368
  %v370 = vshll.u32 2102212464, %v358
  %v371 = vshrl.u32 920167782, %v359
  %v372 = vor.u32 %v370, %v371
  %v373 = vshll.u32 920167782, %v358
  %v374 = vshrl.u32 1326507024, %v359
  %v375 = vor.u32 %v373, %v374
  %vm376 = vcmp.lt.s32.totalorder %v357, 1
  %vm377 = vcmp.lt.s32.totalorder %v357, 2
  %vm378 = vcmp.lt.s32.totalorder %v357, 3
  %vm379 = vcmp.lt.s32.totalorder %v357, 4
  %v380 = vsel %vm376, %v360, %v363
  %v381 = vsel %vm379, %v369, 2102212464
  %v382 = vsel %vm378, %v366, %v381
  %v383 = vsel %vm377, %v380, %v382
  %v384 = vsel %vm376, %v363, %v366
  %v385 = vsel %vm379, %v372, 920167782
  %v386 = vsel %vm378, %v369, %v385
  %v387 = vsel %vm377, %v384, %v386
  %v388 = vsel %vm376, %v366, %v369
  %v389 = vsel %vm379, %v375, 1326507024
  %v390 = vsel %vm378, %v372, %v389
  %v391 = vsel %vm377, %v388, %v390
  %v392 = vshll.u32 %v352, 8
  %v393 = vmul.u32.u64.compose %v392, %v391
  %v394 = vextract.low.u32 %v393
  %v395 = vextract.high.u32 %v393
  %v396 = vmul.u32.u64.compose %v392, %v387
  %v397 = vextract.low.u32 %v396
  %v398 = vextract.high.u32 %v396
  %v399 = vmul.u32 %v392, %v383
  %v400 = vadd.s32 %v395, %v397
  %vm401 = vc.u32 %v395, %v397
  %v402 = vadd.s32 %v398, 1
  %v403 = vsel %vm401, %v402, %v398
  %v404 = vadd.s32 %v399, %v403
  %v405 = vadd.s32 %v404, 536870912
  %v406 = vshrl.u32 %v405, 30
  %v407 = vshll.u32 %v406, 30
  %v408 = vsub.s32 %v404, %v407
  %vm409 = vcmp.lt.s32.totalorder %v408, 0
  %v410 = vsub.s32 0, %v408
  %v411 = vsel %vm409, %v410, %v408
  %v412 = vclz %v411
  %v413 = vsub.s32 %v412, 2
  %vm414 = vcmp.gt.s32.totalorder 0, %v413
  %v415 = vsel %vm414, 0, %v413
  %v416 = vsub.s32 32, %v415
  %v417 = vshll.u32 %v408, %v415
  %v418 = vshrl.u32 %v400, %v416
  %v419 = vor.u32 %v417, %v418
  %v420 = vsub.s32 4294967266, %v415
  %v421 = vadd.s32 %v420, 127
  %v422 = vshll.u32 %v421, 23
  %v423 = vor.u32 4788187, %v422
  %v424 = vand.u32 2147483647, %v423
  %v426 = vcvt.s32.f32 %v419
  %v427 = vmul.f32 %v426, %v424
  %v428 = vxor.u32 %v427, 2147483648
  %v429 = vsel %vm346, %v428, %v427
  %v430 = vsub.s32 4, %v406
  %v431 = vsel %vm346, %v430, %v406
  %v432 = vsel %vm345, %v134, %v429
  %v433 = vsel %vm345, 0, %v431
  %v434 = vcosq.f32.pop %v432
  %v435 = vsinq.f32.pop %v432
  %vm436 = vweird.f32 %v134
  %v437 = vadd.s32 %v433, 3
  %v438 = vand.u32 %v437, 3
  %vm439 = vcmp.lt.s32.totalorder %v438, 2
  %vm440 = vcmp.eq.s32.totalorder %v438, 0
  %v441 = vxor.u32 %v435, 2147483648
  %v442 = vsel %vm440, %v434, %v441
  %vm443 = vcmp.eq.s32.totalorder %v438, 2
  %v444 = vxor.u32 %v434, 2147483648
  %v445 = vsel %vm443, %v444, %v435
  %v446 = vsel %vm439, %v442, %v445
  %v447 = vsel %vm436, nan, %v446
  %v448 = vand.u32 2147483647, %v135
  %vm449 = vcmp.le.f32.partialorder %v448, 0.7853982
  %vm450 = vcmp.lt.s32.totalorder %v135, 0
  %v451 = vand.u32 %v135, 2139095040
  %v452 = vshrl.u32 %v451, 23
  %v453 = vsub.s32 %v452, 127
  %v454 = vand.u32 2147483647, %v135
  %v455 = vand.u32 %v454, 8388607
  %v456 = vor.u32 %v455, 8388608
  %v457 = vsub.s32 0, %v456
  %v458 = vadd.s32 %v453, 1
  %vm459 = vcmp.gt.s32.totalorder %v458, 0
  %v460 = vsel %vm459, %v458, 0
  %v461 = vshrl.u32 %v460, 5
  %v462 = vand.u32 %v460, 31
  %v463 = vsub.s32 32, %v462
  %v464 = vshrl.u32 683565275, %v463
  %v465 = vshll.u32 683565275, %v462
  %v466 = vshrl.u32 2475754826, %v463
  %v467 = vor.u32 %v465, %v466
  %v468 = vshll.u32 2475754826, %v462
  %v469 = vshrl.u32 2131351028, %v463
  %v470 = vor.u32 %v468, %v469
  %v471 = vshll.u32 2131351028, %v462
  %v472 = vshrl.u32 2102212464, %v463
  %v473 = vor.u32 %v471, %v472
  %v474 = vshll.u32 2102212464, %v462
  %v475 = vshrl.u32 920167782, %v463
  %v476 = vor.u32 %v474, %v475
  %v477 = vshll.u32 920167782, %v462
  %v478 = vshrl.u32 1326507024, %v463
  %v479 = vor.u32 %v477, %v478
  %vm480 = vcmp.lt.s32.totalorder %v461, 1
  %vm481 = vcmp.lt.s32.totalorder %v461, 2
  %vm482 = vcmp.lt.s32.totalorder %v461, 3
  %vm483 = vcmp.lt.s32.totalorder %v461, 4
  %v484 = vsel %vm480, %v464, %v467
  %v485 = vsel %vm483, %v473, 2102212464
  %v486 = vsel %vm482, %v470, %v485
  %v487 = vsel %vm481, %v484, %v486
  %v488 = vsel %vm480, %v467, %v470
  %v489 = vsel %vm483, %v476, 920167782
  %v490 = vsel %vm482, %v473, %v489
  %v491 = vsel %vm481, %v488, %v490
  %v492 = vsel %vm480, %v470, %v473
  %v493 = vsel %vm483, %v479, 1326507024
  %v494 = vsel %vm482, %v476, %v493
  %v495 = vsel %vm481, %v492, %v494
  %v496 = vshll.u32 %v456, 8
  %v497 = vmul.u32.u64.compose %v496, %v495
  %v498 = vextract.low.u32 %v497
  %v499 = vextract.high.u32 %v497
  %v500 = vmul.u32.u64.compose %v496, %v491
  %v501 = vextract.low.u32 %v500
  %v502 = vextract.high.u32 %v500
  %v503 = vmul.u32 %v496, %v487
  %v504 = vadd.s32 %v499, %v501
  %vm505 = vc.u32 %v499, %v501
  %v506 = vadd.s32 %v502, 1
  %v507 = vsel %vm505, %v506, %v502
  %v508 = vadd.s32 %v503, %v507
  %v509 = vadd.s32 %v508, 536870912
  %v510 = vshrl.u32 %v509, 30
  %v511 = vshll.u32 %v510, 30
  %v512 = vsub.s32 %v508, %v511
  %vm513 = vcmp.lt.s32.totalorder %v512, 0
  %v514 = vsub.s32 0, %v512
  %v515 = vsel %vm513, %v514, %v512
  %v516 = vclz %v515
  %v517 = vsub.s32 %v516, 2
  %vm518 = vcmp.gt.s32.totalorder 0, %v517
  %v519 = vsel %vm518, 0, %v517
  %v520 = vsub.s32 32, %v519
  %v521 = vshll.u32 %v512, %v519
  %v522 = vshrl.u32 %v504, %v520
  %v523 = vor.u32 %v521, %v522
  %v524 = vsub.s32 4294967266, %v519
  %v525 = vadd.s32 %v524, 127
  %v526 = vshll.u32 %v525, 23
  %v527 = vor.u32 4788187, %v526
  %v528 = vand.u32 2147483647, %v527
  %v530 = vcvt.s32.f32 %v523
  %v531 = vmul.f32 %v530, %v528
  %v532 = vxor.u32 %v531, 2147483648
  %v533 = vsel %vm450, %v532, %v531
  %v534 = vsub.s32 4, %v510
  %v535 = vsel %vm450, %v534, %v510
  %v536 = vsel %vm449, %v135, %v533
  %v537 = vsel %vm449, 0, %v535
  %v538 = vcosq.f32.pop %v536
  %v539 = vsinq.f32.pop %v536
  %vm540 = vweird.f32 %v135
  %v541 = vadd.s32 %v537, 3
  %v542 = vand.u32 %v541, 3
  %vm543 = vcmp.lt.s32.totalorder %v542, 2
  %vm544 = vcmp.eq.s32.totalorder %v542, 0
  %v545 = vxor.u32 %v539, 2147483648
  %v546 = vsel %vm544, %v538, %v545
  %vm547 = vcmp.eq.s32.totalorder %v542, 2
  %v548 = vxor.u32 %v538, 2147483648
  %v549 = vsel %vm547, %v548, %v539
  %v550 = vsel %vm543, %v546, %v549
  %v551 = vsel %vm540, nan, %v550
  %552 = vst [vmem:[#allocation2] sm:$0xff] %v239
  %553 = vst [vmem:[#allocation2 + $0x8] sm:$0xff] %v343
  %554 = vst [vmem:[#allocation2 + $0x10] sm:$0xff] %v447
  %555 = vst [vmem:[#allocation2 + $0x18] sm:$0xff] %v551
  %v556 = vand.u32 2147483647, %v132
  %vm557 = vcmp.le.f32.partialorder %v556, 0.7853982
  %vm558 = vcmp.lt.s32.totalorder %v132, 0
  %v559 = vand.u32 %v132, 2139095040
  %v560 = vshrl.u32 %v559, 23
  %v561 = vsub.s32 %v560, 127
  %v562 = vand.u32 2147483647, %v132
  %v563 = vand.u32 %v562, 8388607
  %v564 = vor.u32 %v563, 8388608
  %v565 = vsub.s32 0, %v564
  %v566 = vadd.s32 %v561, 1
  %vm567 = vcmp.gt.s32.totalorder %v566, 0
  %v568 = vsel %vm567, %v566, 0
  %v569 = vshrl.u32 %v568, 5
  %v570 = vand.u32 %v568, 31
  %v571 = vsub.s32 32, %v570
  %v572 = vshrl.u32 683565275, %v571
  %v573 = vshll.u32 683565275, %v570
  %v574 = vshrl.u32 2475754826, %v571
  %v575 = vor.u32 %v573, %v574
  %v576 = vshll.u32 2475754826, %v570
  %v577 = vshrl.u32 2131351028, %v571
  %v578 = vor.u32 %v576, %v577
  %v579 = vshll.u32 2131351028, %v570
  %v580 = vshrl.u32 2102212464, %v571
  %v581 = vor.u32 %v579, %v580
  %v582 = vshll.u32 2102212464, %v570
  %v583 = vshrl.u32 920167782, %v571
  %v584 = vor.u32 %v582, %v583
  %v585 = vshll.u32 920167782, %v570
  %v586 = vshrl.u32 1326507024, %v571
  %v587 = vor.u32 %v585, %v586
  %vm588 = vcmp.lt.s32.totalorder %v569, 1
  %vm589 = vcmp.lt.s32.totalorder %v569, 2
  %vm590 = vcmp.lt.s32.totalorder %v569, 3
  %vm591 = vcmp.lt.s32.totalorder %v569, 4
  %v592 = vsel %vm588, %v572, %v575
  %v593 = vsel %vm591, %v581, 2102212464
  %v594 = vsel %vm590, %v578, %v593
  %v595 = vsel %vm589, %v592, %v594
  %v596 = vsel %vm588, %v575, %v578
  %v597 = vsel %vm591, %v584, 920167782
  %v598 = vsel %vm590, %v581, %v597
  %v599 = vsel %vm589, %v596, %v598
  %v600 = vsel %vm588, %v578, %v581
  %v601 = vsel %vm591, %v587, 1326507024
  %v602 = vsel %vm590, %v584, %v601
  %v603 = vsel %vm589, %v600, %v602
  %v604 = vshll.u32 %v564, 8
  %v605 = vmul.u32.u64.compose %v604, %v603
  %v606 = vextract.low.u32 %v605
  %v607 = vextract.high.u32 %v605
  %v608 = vmul.u32.u64.compose %v604, %v599
  %v609 = vextract.low.u32 %v608
  %v610 = vextract.high.u32 %v608
  %v611 = vmul.u32 %v604, %v595
  %v612 = vadd.s32 %v607, %v609
  %vm613 = vc.u32 %v607, %v609
  %v614 = vadd.s32 %v610, 1
  %v615 = vsel %vm613, %v614, %v610
  %v616 = vadd.s32 %v611, %v615
  %v617 = vadd.s32 %v616, 536870912
  %v618 = vshrl.u32 %v617, 30
  %v619 = vshll.u32 %v618, 30
  %v620 = vsub.s32 %v616, %v619
  %vm621 = vcmp.lt.s32.totalorder %v620, 0
  %v622 = vsub.s32 0, %v620
  %v623 = vsel %vm621, %v622, %v620
  %v624 = vclz %v623
  %v625 = vsub.s32 %v624, 2
  %vm626 = vcmp.gt.s32.totalorder 0, %v625
  %v627 = vsel %vm626, 0, %v625
  %v628 = vsub.s32 32, %v627
  %v629 = vshll.u32 %v620, %v627
  %v630 = vshrl.u32 %v612, %v628
  %v631 = vor.u32 %v629, %v630
  %v632 = vsub.s32 4294967266, %v627
  %v633 = vadd.s32 %v632, 127
  %v634 = vshll.u32 %v633, 23
  %v635 = vor.u32 4788187, %v634
  %v636 = vand.u32 2147483647, %v635
  %v638 = vcvt.s32.f32 %v631
  %v639 = vmul.f32 %v638, %v636
  %v640 = vxor.u32 %v639, 2147483648
  %v641 = vsel %vm558, %v640, %v639
  %v642 = vsub.s32 4, %v618
  %v643 = vsel %vm558, %v642, %v618
  %v644 = vsel %vm557, %v132, %v641
  %v645 = vsel %vm557, 0, %v643
  %v646 = vcosq.f32.pop %v644
  %v647 = vsinq.f32.pop %v644
  %vm648 = vweird.f32 %v132
  %v649 = vand.u32 %v645, 3
  %vm650 = vcmp.lt.s32.totalorder %v649, 2
  %vm651 = vcmp.eq.s32.totalorder %v649, 0
  %v652 = vxor.u32 %v647, 2147483648
  %v653 = vsel %vm651, %v646, %v652
  %vm654 = vcmp.eq.s32.totalorder %v649, 2
  %v655 = vxor.u32 %v646, 2147483648
  %v656 = vsel %vm654, %v655, %v647
  %v657 = vsel %vm650, %v653, %v656
  %v658 = vsel %vm648, nan, %v657
  %v659 = vand.u32 2147483647, %v133
  %vm660 = vcmp.le.f32.partialorder %v659, 0.7853982
  %vm661 = vcmp.lt.s32.totalorder %v133, 0
  %v662 = vand.u32 %v133, 2139095040
  %v663 = vshrl.u32 %v662, 23
  %v664 = vsub.s32 %v663, 127
  %v665 = vand.u32 2147483647, %v133
  %v666 = vand.u32 %v665, 8388607
  %v667 = vor.u32 %v666, 8388608
  %v668 = vsub.s32 0, %v667
  %v669 = vadd.s32 %v664, 1
  %vm670 = vcmp.gt.s32.totalorder %v669, 0
  %v671 = vsel %vm670, %v669, 0
  %v672 = vshrl.u32 %v671, 5
  %v673 = vand.u32 %v671, 31
  %v674 = vsub.s32 32, %v673
  %v675 = vshrl.u32 683565275, %v674
  %v676 = vshll.u32 683565275, %v673
  %v677 = vshrl.u32 2475754826, %v674
  %v678 = vor.u32 %v676, %v677
  %v679 = vshll.u32 2475754826, %v673
  %v680 = vshrl.u32 2131351028, %v674
  %v681 = vor.u32 %v679, %v680
  %v682 = vshll.u32 2131351028, %v673
  %v683 = vshrl.u32 2102212464, %v674
  %v684 = vor.u32 %v682, %v683
  %v685 = vshll.u32 2102212464, %v673
  %v686 = vshrl.u32 920167782, %v674
  %v687 = vor.u32 %v685, %v686
  %v688 = vshll.u32 920167782, %v673
  %v689 = vshrl.u32 1326507024, %v674
  %v690 = vor.u32 %v688, %v689
  %vm691 = vcmp.lt.s32.totalorder %v672, 1
  %vm692 = vcmp.lt.s32.totalorder %v672, 2
  %vm693 = vcmp.lt.s32.totalorder %v672, 3
  %vm694 = vcmp.lt.s32.totalorder %v672, 4
  %v695 = vsel %vm691, %v675, %v678
  %v696 = vsel %vm694, %v684, 2102212464
  %v697 = vsel %vm693, %v681, %v696
  %v698 = vsel %vm692, %v695, %v697
  %v699 = vsel %vm691, %v678, %v681
  %v700 = vsel %vm694, %v687, 920167782
  %v701 = vsel %vm693, %v684, %v700
  %v702 = vsel %vm692, %v699, %v701
  %v703 = vsel %vm691, %v681, %v684
  %v704 = vsel %vm694, %v690, 1326507024
  %v705 = vsel %vm693, %v687, %v704
  %v706 = vsel %vm692, %v703, %v705
  %v707 = vshll.u32 %v667, 8
  %v708 = vmul.u32.u64.compose %v707, %v706
  %v709 = vextract.low.u32 %v708
  %v710 = vextract.high.u32 %v708
  %v711 = vmul.u32.u64.compose %v707, %v702
  %v712 = vextract.low.u32 %v711
  %v713 = vextract.high.u32 %v711
  %v714 = vmul.u32 %v707, %v698
  %v715 = vadd.s32 %v710, %v712
  %vm716 = vc.u32 %v710, %v712
  %v717 = vadd.s32 %v713, 1
  %v718 = vsel %vm716, %v717, %v713
  %v719 = vadd.s32 %v714, %v718
  %v720 = vadd.s32 %v719, 536870912
  %v721 = vshrl.u32 %v720, 30
  %v722 = vshll.u32 %v721, 30
  %v723 = vsub.s32 %v719, %v722
  %vm724 = vcmp.lt.s32.totalorder %v723, 0
  %v725 = vsub.s32 0, %v723
  %v726 = vsel %vm724, %v725, %v723
  %v727 = vclz %v726
  %v728 = vsub.s32 %v727, 2
  %vm729 = vcmp.gt.s32.totalorder 0, %v728
  %v730 = vsel %vm729, 0, %v728
  %v731 = vsub.s32 32, %v730
  %v732 = vshll.u32 %v723, %v730
  %v733 = vshrl.u32 %v715, %v731
  %v734 = vor.u32 %v732, %v733
  %v735 = vsub.s32 4294967266, %v730
  %v736 = vadd.s32 %v735, 127
  %v737 = vshll.u32 %v736, 23
  %v738 = vor.u32 4788187, %v737
  %v739 = vand.u32 2147483647, %v738
  %v741 = vcvt.s32.f32 %v734
  %v742 = vmul.f32 %v741, %v739
  %v743 = vxor.u32 %v742, 2147483648
  %v744 = vsel %vm661, %v743, %v742
  %v745 = vsub.s32 4, %v721
  %v746 = vsel %vm661, %v745, %v721
  %v747 = vsel %vm660, %v133, %v744
  %v748 = vsel %vm660, 0, %v746
  %v749 = vcosq.f32.pop %v747
  %v750 = vsinq.f32.pop %v747
  %vm751 = vweird.f32 %v133
  %v752 = vand.u32 %v748, 3
  %vm753 = vcmp.lt.s32.totalorder %v752, 2
  %vm754 = vcmp.eq.s32.totalorder %v752, 0
  %v755 = vxor.u32 %v750, 2147483648
  %v756 = vsel %vm754, %v749, %v755
  %vm757 = vcmp.eq.s32.totalorder %v752, 2
  %v758 = vxor.u32 %v749, 2147483648
  %v759 = vsel %vm757, %v758, %v750
  %v760 = vsel %vm753, %v756, %v759
  %v761 = vsel %vm751, nan, %v760
  %v762 = vand.u32 2147483647, %v134
  %vm763 = vcmp.le.f32.partialorder %v762, 0.7853982
  %vm764 = vcmp.lt.s32.totalorder %v134, 0
  %v765 = vand.u32 %v134, 2139095040
  %v766 = vshrl.u32 %v765, 23
  %v767 = vsub.s32 %v766, 127
  %v768 = vand.u32 2147483647, %v134
  %v769 = vand.u32 %v768, 8388607
  %v770 = vor.u32 %v769, 8388608
  %v771 = vsub.s32 0, %v770
  %v772 = vadd.s32 %v767, 1
  %vm773 = vcmp.gt.s32.totalorder %v772, 0
  %v774 = vsel %vm773, %v772, 0
  %v775 = vshrl.u32 %v774, 5
  %v776 = vand.u32 %v774, 31
  %v777 = vsub.s32 32, %v776
  %v778 = vshrl.u32 683565275, %v777
  %v779 = vshll.u32 683565275, %v776
  %v780 = vshrl.u32 2475754826, %v777
  %v781 = vor.u32 %v779, %v780
  %v782 = vshll.u32 2475754826, %v776
  %v783 = vshrl.u32 2131351028, %v777
  %v784 = vor.u32 %v782, %v783
  %v785 = vshll.u32 2131351028, %v776
  %v786 = vshrl.u32 2102212464, %v777
  %v787 = vor.u32 %v785, %v786
  %v788 = vshll.u32 2102212464, %v776
  %v789 = vshrl.u32 920167782, %v777
  %v790 = vor.u32 %v788, %v789
  %v791 = vshll.u32 920167782, %v776
  %v792 = vshrl.u32 1326507024, %v777
  %v793 = vor.u32 %v791, %v792
  %vm794 = vcmp.lt.s32.totalorder %v775, 1
  %vm795 = vcmp.lt.s32.totalorder %v775, 2
  %vm796 = vcmp.lt.s32.totalorder %v775, 3
  %vm797 = vcmp.lt.s32.totalorder %v775, 4
  %v798 = vsel %vm794, %v778, %v781
  %v799 = vsel %vm797, %v787, 2102212464
  %v800 = vsel %vm796, %v784, %v799
  %v801 = vsel %vm795, %v798, %v800
  %v802 = vsel %vm794, %v781, %v784
  %v803 = vsel %vm797, %v790, 920167782
  %v804 = vsel %vm796, %v787, %v803
  %v805 = vsel %vm795, %v802, %v804
  %v806 = vsel %vm794, %v784, %v787
  %v807 = vsel %vm797, %v793, 1326507024
  %v808 = vsel %vm796, %v790, %v807
  %v809 = vsel %vm795, %v806, %v808
  %v810 = vshll.u32 %v770, 8
  %v811 = vmul.u32.u64.compose %v810, %v809
  %v812 = vextract.low.u32 %v811
  %v813 = vextract.high.u32 %v811
  %v814 = vmul.u32.u64.compose %v810, %v805
  %v815 = vextract.low.u32 %v814
  %v816 = vextract.high.u32 %v814
  %v817 = vmul.u32 %v810, %v801
  %v818 = vadd.s32 %v813, %v815
  %vm819 = vc.u32 %v813, %v815
  %v820 = vadd.s32 %v816, 1
  %v821 = vsel %vm819, %v820, %v816
  %v822 = vadd.s32 %v817, %v821
  %v823 = vadd.s32 %v822, 536870912
  %v824 = vshrl.u32 %v823, 30
  %v825 = vshll.u32 %v824, 30
  %v826 = vsub.s32 %v822, %v825
  %vm827 = vcmp.lt.s32.totalorder %v826, 0
  %v828 = vsub.s32 0, %v826
  %v829 = vsel %vm827, %v828, %v826
  %v830 = vclz %v829
  %v831 = vsub.s32 %v830, 2
  %vm832 = vcmp.gt.s32.totalorder 0, %v831
  %v833 = vsel %vm832, 0, %v831
  %v834 = vsub.s32 32, %v833
  %v835 = vshll.u32 %v826, %v833
  %v836 = vshrl.u32 %v818, %v834
  %v837 = vor.u32 %v835, %v836
  %v838 = vsub.s32 4294967266, %v833
  %v839 = vadd.s32 %v838, 127
  %v840 = vshll.u32 %v839, 23
  %v841 = vor.u32 4788187, %v840
  %v842 = vand.u32 2147483647, %v841
  %v844 = vcvt.s32.f32 %v837
  %v845 = vmul.f32 %v844, %v842
  %v846 = vxor.u32 %v845, 2147483648
  %v847 = vsel %vm764, %v846, %v845
  %v848 = vsub.s32 4, %v824
  %v849 = vsel %vm764, %v848, %v824
  %v850 = vsel %vm763, %v134, %v847
  %v851 = vsel %vm763, 0, %v849
  %v852 = vcosq.f32.pop %v850
  %v853 = vsinq.f32.pop %v850
  %vm854 = vweird.f32 %v134
  %v855 = vand.u32 %v851, 3
  %vm856 = vcmp.lt.s32.totalorder %v855, 2
  %vm857 = vcmp.eq.s32.totalorder %v855, 0
  %v858 = vxor.u32 %v853, 2147483648
  %v859 = vsel %vm857, %v852, %v858
  %vm860 = vcmp.eq.s32.totalorder %v855, 2
  %v861 = vxor.u32 %v852, 2147483648
  %v862 = vsel %vm860, %v861, %v853
  %v863 = vsel %vm856, %v859, %v862
  %v864 = vsel %vm854, nan, %v863
  %v865 = vand.u32 2147483647, %v135
  %vm866 = vcmp.le.f32.partialorder %v865, 0.7853982
  %vm867 = vcmp.lt.s32.totalorder %v135, 0
  %v868 = vand.u32 %v135, 2139095040
  %v869 = vshrl.u32 %v868, 23
  %v870 = vsub.s32 %v869, 127
  %v871 = vand.u32 2147483647, %v135
  %v872 = vand.u32 %v871, 8388607
  %v873 = vor.u32 %v872, 8388608
  %v874 = vsub.s32 0, %v873
  %v875 = vadd.s32 %v870, 1
  %vm876 = vcmp.gt.s32.totalorder %v875, 0
  %v877 = vsel %vm876, %v875, 0
  %v878 = vshrl.u32 %v877, 5
  %v879 = vand.u32 %v877, 31
  %v880 = vsub.s32 32, %v879
  %v881 = vshrl.u32 683565275, %v880
  %v882 = vshll.u32 683565275, %v879
  %v883 = vshrl.u32 2475754826, %v880
  %v884 = vor.u32 %v882, %v883
  %v885 = vshll.u32 2475754826, %v879
  %v886 = vshrl.u32 2131351028, %v880
  %v887 = vor.u32 %v885, %v886
  %v888 = vshll.u32 2131351028, %v879
  %v889 = vshrl.u32 2102212464, %v880
  %v890 = vor.u32 %v888, %v889
  %v891 = vshll.u32 2102212464, %v879
  %v892 = vshrl.u32 920167782, %v880
  %v893 = vor.u32 %v891, %v892
  %v894 = vshll.u32 920167782, %v879
  %v895 = vshrl.u32 1326507024, %v880
  %v896 = vor.u32 %v894, %v895
  %vm897 = vcmp.lt.s32.totalorder %v878, 1
  %vm898 = vcmp.lt.s32.totalorder %v878, 2
  %vm899 = vcmp.lt.s32.totalorder %v878, 3
  %vm900 = vcmp.lt.s32.totalorder %v878, 4
  %v901 = vsel %vm897, %v881, %v884
  %v902 = vsel %vm900, %v890, 2102212464
  %v903 = vsel %vm899, %v887, %v902
  %v904 = vsel %vm898, %v901, %v903
  %v905 = vsel %vm897, %v884, %v887
  %v906 = vsel %vm900, %v893, 920167782
  %v907 = vsel %vm899, %v890, %v906
  %v908 = vsel %vm898, %v905, %v907
  %v909 = vsel %vm897, %v887, %v890
  %v910 = vsel %vm900, %v896, 1326507024
  %v911 = vsel %vm899, %v893, %v910
  %v912 = vsel %vm898, %v909, %v911
  %v913 = vshll.u32 %v873, 8
  %v914 = vmul.u32.u64.compose %v913, %v912
  %v915 = vextract.low.u32 %v914
  %v916 = vextract.high.u32 %v914
  %v917 = vmul.u32.u64.compose %v913, %v908
  %v918 = vextract.low.u32 %v917
  %v919 = vextract.high.u32 %v917
  %v920 = vmul.u32 %v913, %v904
  %v921 = vadd.s32 %v916, %v918
  %vm922 = vc.u32 %v916, %v918
  %v923 = vadd.s32 %v919, 1
  %v924 = vsel %vm922, %v923, %v919
  %v925 = vadd.s32 %v920, %v924
  %v926 = vadd.s32 %v925, 536870912
  %v927 = vshrl.u32 %v926, 30
  %v928 = vshll.u32 %v927, 30
  %v929 = vsub.s32 %v925, %v928
  %vm930 = vcmp.lt.s32.totalorder %v929, 0
  %v931 = vsub.s32 0, %v929
  %v932 = vsel %vm930, %v931, %v929
  %v933 = vclz %v932
  %v934 = vsub.s32 %v933, 2
  %vm935 = vcmp.gt.s32.totalorder 0, %v934
  %v936 = vsel %vm935, 0, %v934
  %v937 = vsub.s32 32, %v936
  %v938 = vshll.u32 %v929, %v936
  %v939 = vshrl.u32 %v921, %v937
  %v940 = vor.u32 %v938, %v939
  %v941 = vsub.s32 4294967266, %v936
  %v942 = vadd.s32 %v941, 127
  %v943 = vshll.u32 %v942, 23
  %v944 = vor.u32 4788187, %v943
  %v945 = vand.u32 2147483647, %v944
  %v947 = vcvt.s32.f32 %v940
  %v948 = vmul.f32 %v947, %v945
  %v949 = vxor.u32 %v948, 2147483648
  %v950 = vsel %vm867, %v949, %v948
  %v951 = vsub.s32 4, %v927
  %v952 = vsel %vm867, %v951, %v927
  %v953 = vsel %vm866, %v135, %v950
  %v954 = vsel %vm866, 0, %v952
  %v955 = vcosq.f32.pop %v953
  %v956 = vsinq.f32.pop %v953
  %vm957 = vweird.f32 %v135
  %v958 = vand.u32 %v954, 3
  %vm959 = vcmp.lt.s32.totalorder %v958, 2
  %vm960 = vcmp.eq.s32.totalorder %v958, 0
  %v961 = vxor.u32 %v956, 2147483648
  %v962 = vsel %vm960, %v955, %v961
  %vm963 = vcmp.eq.s32.totalorder %v958, 2
  %v964 = vxor.u32 %v955, 2147483648
  %v965 = vsel %vm963, %v964, %v956
  %v966 = vsel %vm959, %v962, %v965
  %v967 = vsel %vm957, nan, %v966
  %968 = vst [vmem:[#allocation2 + $0x20] sm:$0xff] %v658
  %969 = vst [vmem:[#allocation2 + $0x28] sm:$0xff] %v761
  %970 = vst [vmem:[#allocation2 + $0x30] sm:$0xff] %v864
  %971 = vst [vmem:[#allocation2 + $0x38] sm:$0xff] %v967
  %v972 = vld [vmem:[%s1] sm:$0xff]
  %v974 = vcombine.high %v972, %v972
  %976 = vst [vmem:[#allocation2 + $0x40] sm:$0xf] %v972
  %977 = vst [vmem:[#allocation2 + $0x48] sm:$0xf] %v974
  %v978 = vld [vmem:[%s3] sm:$0xff]
  %v979 = vld [vmem:[%s3 + $0x8] sm:$0xff]
  %v980 = vld [vmem:[%s3 + $0x10] sm:$0xff]
  %v981 = vld [vmem:[%s3 + $0x18] sm:$0xff]
  %v982 = vld [vmem:[#allocation2] sm:$0xff]
  %v983 = vld [vmem:[#allocation2 + $0x8] sm:$0xff]
  %v984 = vld [vmem:[#allocation2 + $0x10] sm:$0xff]
  %v985 = vld [vmem:[#allocation2 + $0x18] sm:$0xff]
  %v986 = vld [vmem:[#allocation2 + $0x20] sm:$0xff]
  %v987 = vld [vmem:[#allocation2 + $0x28] sm:$0xff]
  %v988 = vld [vmem:[#allocation2 + $0x30] sm:$0xff]
  %v989 = vld [vmem:[#allocation2 + $0x38] sm:$0xff]
  %v990 = vld [vmem:[#allocation2 + $0x40] sm:$0xf]
  %v991 = vld [vmem:[#allocation2 + $0x48] sm:$0xf]
  %v992 = vld [vmem:[%s4] sm:$0xff]
  %v993 = vld [vmem:[%s4 + $0x8] sm:$0xff]
  %v994 = vld [vmem:[%s4 + $0x10] sm:$0xff]
  %v995 = vld [vmem:[%s4 + $0x18] sm:$0xff]
  %997 = vset.pattern.permute.xlu0 0
  %998 = vperm.xlu0 %997, %v992
  %v999 = vpop.permute.xlu0 %998
  %1002 = vset.pattern.permute.xlu0 0
  %1003 = vperm.xlu0 %1002, %v993
  %v1004 = vpop.permute.xlu0 %1003
  %1007 = vset.pattern.permute.xlu0 0
  %1008 = vperm.xlu0 %1007, %v994
  %v1009 = vpop.permute.xlu0 %1008
  %1012 = vset.pattern.permute.xlu0 0
  %1013 = vperm.xlu0 %1012, %v995
  %v1014 = vpop.permute.xlu0 %1013
  %vm1016 = vcmask 293888
  %v1018 = vsel %vm1016, %v978, 0
  %v1021 = vsel %vm1016, %v979, 0
  %v1024 = vsel %vm1016, %v980, 0
  %v1027 = vsel %vm1016, %v981, 0
  %vm1029 = vcmask 1043456
  %v1031 = vsel %vm1029, %v990, 0
  %v1034 = vsel %vm1029, %v991, 0
  %v1036 = vand.u32 %v983, 4294901760
  %1037 = vmatprep.subr.mxu0 %v1036
  %v1038 = vand.u32 %v982, 4294901760
  %1039 = vmatpush1.msra.mxu0 %v1038
  %v1040 = vand.u32 %v985, 4294901760
  %1041 = vmatprep.subr.mxu0 %v1040
  %v1042 = vand.u32 %v984, 4294901760
  %1043 = vmatpush1.msra.mxu0 %v1042
  %v1044 = vand.u32 %v987, 4294901760
  %1045 = vmatprep.subr.mxu0 %v1044
  %v1046 = vand.u32 %v986, 4294901760
  %1047 = vmatpush1.msra.mxu0 %v1046
  %v1048 = vand.u32 %v989, 4294901760
  %1049 = vmatprep.subr.mxu0 %v1048
  %v1050 = vand.u32 %v988, 4294901760
  %1051 = vmatpush1.msra.mxu0 %v1050
  %v1052 = vand.u32 %v1034, 4294901760
  %1053 = vmatprep.subr.mxu0 %v1052
  %v1054 = vand.u32 %v1031, 4294901760
  %1055 = vmatpush1.msra.mxu0 %v1054
  %1056 = vmatprep.subr.mxu0 0.0
  %1057 = vmatpush1.msra.mxu0 0.0
  %1058 = vmatprep.subr.mxu0 0.0
  %1059 = vmatpush1.msra.mxu0 0.0
  %1060 = vmatprep.subr.mxu0 0.0
  %1061 = vmatpush1.msra.mxu0 0.0
  %1062 = vmatprep.subr.mxu0 0.0
  %1063 = vmatpush1.msra.mxu0 0.0
  %1064 = vmatprep.subr.mxu0 0.0
  %1065 = vmatpush1.msra.mxu0 0.0
  %1066 = vmatprep.subr.mxu0 0.0
  %1067 = vmatpush1.msra.mxu0 0.0
  %1068 = vmatprep.subr.mxu0 0.0
  %1069 = vmatpush1.msra.mxu0 0.0
  %1070 = vmatprep.subr.mxu0 0.0
  %1071 = vmatpush1.msra.mxu0 0.0
  %1072 = vmatprep.subr.mxu0 0.0
  %1073 = vmatpush1.msra.mxu0 0.0
  %1074 = vmatprep.subr.mxu0 0.0
  %1075 = vmatpush1.msra.mxu0 0.0
  %1076 = vmatprep.subr.mxu0 0.0
  %1077 = vmatpush1.msra.mxu0 0.0
  %1078 = vmatprep.subr.mxu0 0.0
  %1079 = vmatpush1.msra.mxu0 0.0
  %1080 = vmatprep.subr.mxu0 0.0
  %1081 = vmatpush1.msra.mxu0 0.0
  %1082 = vmatprep.subr.mxu0 0.0
  %1083 = vmatpush1.msra.mxu0 0.0
  %1084 = vmatprep.subr.mxu0 0.0
  %1085 = vmatpush1.msra.mxu0 0.0
  %1086 = vmatprep.subr.mxu0 0.0
  %1087 = vmatpush1.msra.mxu0 0.0
  %1088 = vmatprep.subr.mxu0 0.0
  %1089 = vmatpush1.msra.mxu0 0.0
  %1090 = vmatprep.subr.mxu0 0.0
  %1091 = vmatpush1.msra.mxu0 0.0
  %1092 = vmatprep.subr.mxu0 0.0
  %1093 = vmatpush1.msra.mxu0 0.0
  %1094 = vmatprep.subr.mxu0 0.0
  %1095 = vmatpush1.msra.mxu0 0.0
  %1096 = vmatprep.subr.mxu0 0.0
  %1097 = vmatpush1.msra.mxu0 0.0
  %1098 = vmatprep.subr.mxu0 0.0
  %1099 = vmatpush1.msra.mxu0 0.0
  %1100 = vmatprep.subr.mxu0 0.0
  %1101 = vmatpush1.msra.mxu0 0.0
  %1102 = vmatprep.subr.mxu0 0.0
  %1103 = vmatpush1.msra.mxu0 0.0
  %1104 = vmatprep.subr.mxu0 0.0
  %1105 = vmatpush1.msra.mxu0 0.0
  %1106 = vmatprep.subr.mxu0 0.0
  %1107 = vmatpush1.msra.mxu0 0.0
  %1108 = vmatprep.subr.mxu0 0.0
  %1109 = vmatpush1.msra.mxu0 0.0
  %1110 = vmatprep.mubr.f32.mxu0 0.0
  %v1111 = vand.u32 %v1018, 4294901760
  %v1112 = vsub.f32 %v1018, %v1111
  %v1113 = vand.u32 %v1112, 4294901760
  %v1114 = vsub.f32 %v1112, %v1113
  %v1115 = vand.u32 %v1114, 4294901760
  %1116 = vmatmul.mubr.f32.gmra.mrb[0].mxu0 %v1115
  %v1117 = vpop.f32.mrb[0].mxu0
  %v1118 = vadd.f32 %v999, %v1117
  %v1119 = vpop.f32.mrb[0].mxu0
  %v1120 = vadd.f32 %v999, %v1119
  %1121 = vmatprep.mubr.f32.mxu0 0.0
  %v1122 = vand.u32 %v1021, 4294901760
  %v1123 = vsub.f32 %v1021, %v1122
  %v1124 = vand.u32 %v1123, 4294901760
  %v1125 = vsub.f32 %v1123, %v1124
  %v1126 = vand.u32 %v1125, 4294901760
  %1127 = vmatmul.mubr.f32.gmra.mrb[0].mxu0 %v1126
  %v1128 = vpop.f32.mrb[0].mxu0
  %v1129 = vadd.f32 %v1004, %v1128
  %v1130 = vpop.f32.mrb[0].mxu0
  %v1131 = vadd.f32 %v1004, %v1130
  %1132 = vmatprep.mubr.f32.mxu0 0.0
  %v1133 = vand.u32 %v1024, 4294901760
  %v1134 = vsub.f32 %v1024, %v1133
  %v1135 = vand.u32 %v1134, 4294901760
  %v1136 = vsub.f32 %v1134, %v1135
  %v1137 = vand.u32 %v1136, 4294901760
  %1138 = vmatmul.mubr.f32.gmra.mrb[0].mxu0 %v1137
  %v1139 = vpop.f32.mrb[0].mxu0
  %v1140 = vadd.f32 %v1009, %v1139
  %v1141 = vpop.f32.mrb[0].mxu0
  %v1142 = vadd.f32 %v1009, %v1141
  %1143 = vmatprep.mubr.f32.mxu0 0.0
  %v1144 = vand.u32 %v1027, 4294901760
  %v1145 = vsub.f32 %v1027, %v1144
  %v1146 = vand.u32 %v1145, 4294901760
  %v1147 = vsub.f32 %v1145, %v1146
  %v1148 = vand.u32 %v1147, 4294901760
  %1149 = vmatmul.mubr.f32.gmra.mrb[0].mxu0 %v1148
  %v1150 = vpop.f32.mrb[0].mxu0
  %v1151 = vadd.f32 %v1014, %v1150
  %v1152 = vpop.f32.mrb[0].mxu0
  %v1153 = vadd.f32 %v1014, %v1152
  %1154 = vdwg.mxu0
  %v1155 = vand.u32 %v983, 4294901760
  %v1156 = vsub.f32 %v983, %v1155
  %v1157 = vand.u32 %v1156, 4294901760
  %v1158 = vsub.f32 %v1156, %v1157
  %v1159 = vand.u32 %v1158, 4294901760
  %1160 = vmatprep.subr.mxu0 %v1159
  %v1161 = vand.u32 %v982, 4294901760
  %v1162 = vsub.f32 %v982, %v1161
  %v1163 = vand.u32 %v1162, 4294901760
  %v1164 = vsub.f32 %v1162, %v1163
  %v1165 = vand.u32 %v1164, 4294901760
  %1166 = vmatpush1.msra.mxu0 %v1165
  %v1167 = vand.u32 %v985, 4294901760
  %v1168 = vsub.f32 %v985, %v1167
  %v1169 = vand.u32 %v1168, 4294901760
  %v1170 = vsub.f32 %v1168, %v1169
  %v1171 = vand.u32 %v1170, 4294901760
  %1172 = vmatprep.subr.mxu0 %v1171
  %v1173 = vand.u32 %v984, 4294901760
  %v1174 = vsub.f32 %v984, %v1173
  %v1175 = vand.u32 %v1174, 4294901760
  %v1176 = vsub.f32 %v1174, %v1175
  %v1177 = vand.u32 %v1176, 4294901760
  %1178 = vmatpush1.msra.mxu0 %v1177
  %v1179 = vand.u32 %v987, 4294901760
  %v1180 = vsub.f32 %v987, %v1179
  %v1181 = vand.u32 %v1180, 4294901760
  %v1182 = vsub.f32 %v1180, %v1181
  %v1183 = vand.u32 %v1182, 4294901760
  %1184 = vmatprep.subr.mxu0 %v1183
  %v1185 = vand.u32 %v986, 4294901760
  %v1186 = vsub.f32 %v986, %v1185
  %v1187 = vand.u32 %v1186, 4294901760
  %v1188 = vsub.f32 %v1186, %v1187
  %v1189 = vand.u32 %v1188, 4294901760
  %1190 = vmatpush1.msra.mxu0 %v1189
  %v1191 = vand.u32 %v989, 4294901760
  %v1192 = vsub.f32 %v989, %v1191
  %v1193 = vand.u32 %v1192, 4294901760
  %v1194 = vsub.f32 %v1192, %v1193
  %v1195 = vand.u32 %v1194, 4294901760
  %1196 = vmatprep.subr.mxu0 %v1195
  %v1197 = vand.u32 %v988, 4294901760
  %v1198 = vsub.f32 %v988, %v1197
  %v1199 = vand.u32 %v1198, 4294901760
  %v1200 = vsub.f32 %v1198, %v1199
  %v1201 = vand.u32 %v1200, 4294901760
  %1202 = vmatpush1.msra.mxu0 %v1201
  %v1203 = vand.u32 %v1034, 4294901760
  %v1204 = vsub.f32 %v1034, %v1203
  %v1205 = vand.u32 %v1204, 4294901760
  %v1206 = vsub.f32 %v1204, %v1205
  %v1207 = vand.u32 %v1206, 4294901760
  %1208 = vmatprep.subr.mxu0 %v1207
  %v1209 = vand.u32 %v1031, 4294901760
  %v1210 = vsub.f32 %v1031, %v1209
  %v1211 = vand.u32 %v1210, 4294901760
  %v1212 = vsub.f32 %v1210, %v1211
  %v1213 = vand.u32 %v1212, 4294901760
  %1214 = vmatpush1.msra.mxu0 %v1213
  %1215 = vmatprep.subr.mxu0 0.0
  %1216 = vmatpush1.msra.mxu0 0.0
  %1217 = vmatprep.subr.mxu0 0.0
  %1218 = vmatpush1.msra.mxu0 0.0
  %1219 = vmatprep.subr.mxu0 0.0
  %1220 = vmatpush1.msra.mxu0 0.0
  %1221 = vmatprep.subr.mxu0 0.0
  %1222 = vmatpush1.msra.mxu0 0.0
  %1223 = vmatprep.subr.mxu0 0.0
  %1224 = vmatpush1.msra.mxu0 0.0
  %1225 = vmatprep.subr.mxu0 0.0
  %1226 = vmatpush1.msra.mxu0 0.0
  %1227 = vmatprep.subr.mxu0 0.0
  %1228 = vmatpush1.msra.mxu0 0.0
  %1229 = vmatprep.subr.mxu0 0.0
  %1230 = vmatpush1.msra.mxu0 0.0
  %1231 = vmatprep.subr.mxu0 0.0
  %1232 = vmatpush1.msra.mxu0 0.0
  %1233 = vmatprep.subr.mxu0 0.0
  %1234 = vmatpush1.msra.mxu0 0.0
  %1235 = vmatprep.subr.mxu0 0.0
  %1236 = vmatpush1.msra.mxu0 0.0
  %1237 = vmatprep.subr.mxu0 0.0
  %1238 = vmatpush1.msra.mxu0 0.0
  %1239 = vmatprep.subr.mxu0 0.0
  %1240 = vmatpush1.msra.mxu0 0.0
  %1241 = vmatprep.subr.mxu0 0.0
  %1242 = vmatpush1.msra.mxu0 0.0
  %1243 = vmatprep.subr.mxu0 0.0
  %1244 = vmatpush1.msra.mxu0 0.0
  %1245 = vmatprep.subr.mxu0 0.0
  %1246 = vmatpush1.msra.mxu0 0.0
  %1247 = vmatprep.subr.mxu0 0.0
  %1248 = vmatpush1.msra.mxu0 0.0
  %1249 = vmatprep.subr.mxu0 0.0
  %1250 = vmatpush1.msra.mxu0 0.0
  %1251 = vmatprep.subr.mxu0 0.0
  %1252 = vmatpush1.msra.mxu0 0.0
  %1253 = vmatprep.subr.mxu0 0.0
  %1254 = vmatpush1.msra.mxu0 0.0
  %1255 = vmatprep.subr.mxu0 0.0
  %1256 = vmatpush1.msra.mxu0 0.0
  %1257 = vmatprep.subr.mxu0 0.0
  %1258 = vmatpush1.msra.mxu0 0.0
  %1259 = vmatprep.subr.mxu0 0.0
  %1260 = vmatpush1.msra.mxu0 0.0
  %1261 = vmatprep.subr.mxu0 0.0
  %1262 = vmatpush1.msra.mxu0 0.0
  %1263 = vmatprep.subr.mxu0 0.0
  %1264 = vmatpush1.msra.mxu0 0.0
  %1265 = vmatprep.subr.mxu0 0.0
  %1266 = vmatpush1.msra.mxu0 0.0
  %1267 = vmatprep.subr.mxu0 0.0
  %1268 = vmatpush1.msra.mxu0 0.0
  %1269 = vmatprep.mubr.f32.mxu0 0.0
  %v1270 = vand.u32 %v1018, 4294901760
  %1271 = vmatmul.mubr.f32.gmra.mrb[0].mxu0 %v1270
  %v1272 = vpop.f32.mrb[0].mxu0
  %v1273 = vadd.f32 %v1118, %v1272
  %v1274 = vpop.f32.mrb[0].mxu0
  %v1275 = vadd.f32 %v1120, %v1274
  %1276 = vmatprep.mubr.f32.mxu0 0.0
  %v1277 = vand.u32 %v1021, 4294901760
  %1278 = vmatmul.mubr.f32.gmra.mrb[0].mxu0 %v1277
  %v1279 = vpop.f32.mrb[0].mxu0
  %v1280 = vadd.f32 %v1129, %v1279
  %v1281 = vpop.f32.mrb[0].mxu0
  %v1282 = vadd.f32 %v1131, %v1281
  %1283 = vmatprep.mubr.f32.mxu0 0.0
  %v1284 = vand.u32 %v1024, 4294901760
  %1285 = vmatmul.mubr.f32.gmra.mrb[0].mxu0 %v1284
  %v1286 = vpop.f32.mrb[0].mxu0
  %v1287 = vadd.f32 %v1140, %v1286
  %v1288 = vpop.f32.mrb[0].mxu0
  %v1289 = vadd.f32 %v1142, %v1288
  %1290 = vmatprep.mubr.f32.mxu0 0.0
  %v1291 = vand.u32 %v1027, 4294901760
  %1292 = vmatmul.mubr.f32.gmra.mrb[0].mxu0 %v1291
  %v1293 = vpop.f32.mrb[0].mxu0
  %v1294 = vadd.f32 %v1151, %v1293
  %v1295 = vpop.f32.mrb[0].mxu0
  %v1296 = vadd.f32 %v1153, %v1295
  %1297 = vdwg.mxu0
  %v1298 = vand.u32 %v983, 4294901760
  %v1299 = vsub.f32 %v983, %v1298
  %1300 = vmatprep.subr.mxu0 %v1299
  %v1301 = vand.u32 %v982, 4294901760
  %v1302 = vsub.f32 %v982, %v1301
  %1303 = vmatpush1.msra.mxu0 %v1302
  %v1304 = vand.u32 %v985, 4294901760
  %v1305 = vsub.f32 %v985, %v1304
  %1306 = vmatprep.subr.mxu0 %v1305
  %v1307 = vand.u32 %v984, 4294901760
  %v1308 = vsub.f32 %v984, %v1307
  %1309 = vmatpush1.msra.mxu0 %v1308
  %v1310 = vand.u32 %v987, 4294901760
  %v1311 = vsub.f32 %v987, %v1310
  %1312 = vmatprep.subr.mxu0 %v1311
  %v1313 = vand.u32 %v986, 4294901760
  %v1314 = vsub.f32 %v986, %v1313
  %1315 = vmatpush1.msra.mxu0 %v1314
  %v1316 = vand.u32 %v989, 4294901760
  %v1317 = vsub.f32 %v989, %v1316
  %1318 = vmatprep.subr.mxu0 %v1317
  %v1319 = vand.u32 %v988, 4294901760
  %v1320 = vsub.f32 %v988, %v1319
  %1321 = vmatpush1.msra.mxu0 %v1320
  %v1322 = vand.u32 %v1034, 4294901760
  %v1323 = vsub.f32 %v1034, %v1322
  %1324 = vmatprep.subr.mxu0 %v1323
  %v1325 = vand.u32 %v1031, 4294901760
  %v1326 = vsub.f32 %v1031, %v1325
  %1327 = vmatpush1.msra.mxu0 %v1326
  %1328 = vmatprep.subr.mxu0 0.0
  %1329 = vmatpush1.msra.mxu0 0.0
  %1330 = vmatprep.subr.mxu0 0.0
  %1331 = vmatpush1.msra.mxu0 0.0
  %1332 = vmatprep.subr.mxu0 0.0
  %1333 = vmatpush1.msra.mxu0 0.0
  %1334 = vmatprep.subr.mxu0 0.0
  %1335 = vmatpush1.msra.mxu0 0.0
  %1336 = vmatprep.subr.mxu0 0.0
  %1337 = vmatpush1.msra.mxu0 0.0
  %1338 = vmatprep.subr.mxu0 0.0
  %1339 = vmatpush1.msra.mxu0 0.0
  %1340 = vmatprep.subr.mxu0 0.0
  %1341 = vmatpush1.msra.mxu0 0.0
  %1342 = vmatprep.subr.mxu0 0.0
  %1343 = vmatpush1.msra.mxu0 0.0
  %1344 = vmatprep.subr.mxu0 0.0
  %1345 = vmatpush1.msra.mxu0 0.0
  %1346 = vmatprep.subr.mxu0 0.0
  %1347 = vmatpush1.msra.mxu0 0.0
  %1348 = vmatprep.subr.mxu0 0.0
  %1349 = vmatpush1.msra.mxu0 0.0
  %1350 = vmatprep.subr.mxu0 0.0
  %1351 = vmatpush1.msra.mxu0 0.0
  %1352 = vmatprep.subr.mxu0 0.0
  %1353 = vmatpush1.msra.mxu0 0.0
  %1354 = vmatprep.subr.mxu0 0.0
  %1355 = vmatpush1.msra.mxu0 0.0
  %1356 = vmatprep.subr.mxu0 0.0
  %1357 = vmatpush1.msra.mxu0 0.0
  %1358 = vmatprep.subr.mxu0 0.0
  %1359 = vmatpush1.msra.mxu0 0.0
  %1360 = vmatprep.subr.mxu0 0.0
  %1361 = vmatpush1.msra.mxu0 0.0
  %1362 = vmatprep.subr.mxu0 0.0
  %1363 = vmatpush1.msra.mxu0 0.0
  %1364 = vmatprep.subr.mxu0 0.0
  %1365 = vmatpush1.msra.mxu0 0.0
  %1366 = vmatprep.subr.mxu0 0.0
  %1367 = vmatpush1.msra.mxu0 0.0
  %1368 = vmatprep.subr.mxu0 0.0
  %1369 = vmatpush1.msra.mxu0 0.0
  %1370 = vmatprep.subr.mxu0 0.0
  %1371 = vmatpush1.msra.mxu0 0.0
  %1372 = vmatprep.subr.mxu0 0.0
  %1373 = vmatpush1.msra.mxu0 0.0
  %1374 = vmatprep.subr.mxu0 0.0
  %1375 = vmatpush1.msra.mxu0 0.0
  %1376 = vmatprep.subr.mxu0 0.0
  %1377 = vmatpush1.msra.mxu0 0.0
  %1378 = vmatprep.subr.mxu0 0.0
  %1379 = vmatpush1.msra.mxu0 0.0
  %1380 = vmatprep.subr.mxu0 0.0
  %1381 = vmatpush1.msra.mxu0 0.0
  %1382 = vmatprep.mubr.f32.mxu0 0.0
  %v1383 = vand.u32 %v1018, 4294901760
  %v1384 = vsub.f32 %v1018, %v1383
  %1385 = vmatmul.mubr.f32.gmra.mrb[0].mxu0 %v1384
  %v1386 = vpop.f32.mrb[0].mxu0
  %v1387 = vadd.f32 %v1273, %v1386
  %v1388 = vpop.f32.mrb[0].mxu0
  %v1389 = vadd.f32 %v1275, %v1388
  %1390 = vmatprep.mubr.f32.mxu0 0.0
  %v1391 = vand.u32 %v1021, 4294901760
  %v1392 = vsub.f32 %v1021, %v1391
  %1393 = vmatmul.mubr.f32.gmra.mrb[0].mxu0 %v1392
  %v1394 = vpop.f32.mrb[0].mxu0
  %v1395 = vadd.f32 %v1280, %v1394
  %v1396 = vpop.f32.mrb[0].mxu0
  %v1397 = vadd.f32 %v1282, %v1396
  %1398 = vmatprep.mubr.f32.mxu0 0.0
  %v1399 = vand.u32 %v1024, 4294901760
  %v1400 = vsub.f32 %v1024, %v1399
  %1401 = vmatmul.mubr.f32.gmra.mrb[0].mxu0 %v1400
  %v1402 = vpop.f32.mrb[0].mxu0
  %v1403 = vadd.f32 %v1287, %v1402
  %v1404 = vpop.f32.mrb[0].mxu0
  %v1405 = vadd.f32 %v1289, %v1404
  %1406 = vmatprep.mubr.f32.mxu0 0.0
  %v1407 = vand.u32 %v1027, 4294901760
  %v1408 = vsub.f32 %v1027, %v1407
  %1409 = vmatmul.mubr.f32.gmra.mrb[0].mxu0 %v1408
  %v1410 = vpop.f32.mrb[0].mxu0
  %v1411 = vadd.f32 %v1294, %v1410
  %v1412 = vpop.f32.mrb[0].mxu0
  %v1413 = vadd.f32 %v1296, %v1412
  %1414 = vdwg.mxu0
  %v1415 = vand.u32 %v983, 4294901760
  %1416 = vmatprep.subr.mxu0 %v1415
  %v1417 = vand.u32 %v982, 4294901760
  %1418 = vmatpush1.msra.mxu0 %v1417
  %v1419 = vand.u32 %v985, 4294901760
  %1420 = vmatprep.subr.mxu0 %v1419
  %v1421 = vand.u32 %v984, 4294901760
  %1422 = vmatpush1.msra.mxu0 %v1421
  %v1423 = vand.u32 %v987, 4294901760
  %1424 = vmatprep.subr.mxu0 %v1423
  %v1425 = vand.u32 %v986, 4294901760
  %1426 = vmatpush1.msra.mxu0 %v1425
  %v1427 = vand.u32 %v989, 4294901760
  %1428 = vmatprep.subr.mxu0 %v1427
  %v1429 = vand.u32 %v988, 4294901760
  %1430 = vmatpush1.msra.mxu0 %v1429
  %v1431 = vand.u32 %v1034, 4294901760
  %1432 = vmatprep.subr.mxu0 %v1431
  %v1433 = vand.u32 %v1031, 4294901760
  %1434 = vmatpush1.msra.mxu0 %v1433
  %1435 = vmatprep.subr.mxu0 0.0
  %1436 = vmatpush1.msra.mxu0 0.0
  %1437 = vmatprep.subr.mxu0 0.0
  %1438 = vmatpush1.msra.mxu0 0.0
  %1439 = vmatprep.subr.mxu0 0.0
  %1440 = vmatpush1.msra.mxu0 0.0
  %1441 = vmatprep.subr.mxu0 0.0
  %1442 = vmatpush1.msra.mxu0 0.0
  %1443 = vmatprep.subr.mxu0 0.0
  %1444 = vmatpush1.msra.mxu0 0.0
  %1445 = vmatprep.subr.mxu0 0.0
  %1446 = vmatpush1.msra.mxu0 0.0
  %1447 = vmatprep.subr.mxu0 0.0
  %1448 = vmatpush1.msra.mxu0 0.0
  %1449 = vmatprep.subr.mxu0 0.0
  %1450 = vmatpush1.msra.mxu0 0.0
  %1451 = vmatprep.subr.mxu0 0.0
  %1452 = vmatpush1.msra.mxu0 0.0
  %1453 = vmatprep.subr.mxu0 0.0
  %1454 = vmatpush1.msra.mxu0 0.0
  %1455 = vmatprep.subr.mxu0 0.0
  %1456 = vmatpush1.msra.mxu0 0.0
  %1457 = vmatprep.subr.mxu0 0.0
  %1458 = vmatpush1.msra.mxu0 0.0
  %1459 = vmatprep.subr.mxu0 0.0
  %1460 = vmatpush1.msra.mxu0 0.0
  %1461 = vmatprep.subr.mxu0 0.0
  %1462 = vmatpush1.msra.mxu0 0.0
  %1463 = vmatprep.subr.mxu0 0.0
  %1464 = vmatpush1.msra.mxu0 0.0
  %1465 = vmatprep.subr.mxu0 0.0
  %1466 = vmatpush1.msra.mxu0 0.0
  %1467 = vmatprep.subr.mxu0 0.0
  %1468 = vmatpush1.msra.mxu0 0.0
  %1469 = vmatprep.subr.mxu0 0.0
  %1470 = vmatpush1.msra.mxu0 0.0
  %1471 = vmatprep.subr.mxu0 0.0
  %1472 = vmatpush1.msra.mxu0 0.0
  %1473 = vmatprep.subr.mxu0 0.0
  %1474 = vmatpush1.msra.mxu0 0.0
  %1475 = vmatprep.subr.mxu0 0.0
  %1476 = vmatpush1.msra.mxu0 0.0
  %1477 = vmatprep.subr.mxu0 0.0
  %1478 = vmatpush1.msra.mxu0 0.0
  %1479 = vmatprep.subr.mxu0 0.0
  %1480 = vmatpush1.msra.mxu0 0.0
  %1481 = vmatprep.subr.mxu0 0.0
  %1482 = vmatpush1.msra.mxu0 0.0
  %1483 = vmatprep.subr.mxu0 0.0
  %1484 = vmatpush1.msra.mxu0 0.0
  %1485 = vmatprep.subr.mxu0 0.0
  %1486 = vmatpush1.msra.mxu0 0.0
  %1487 = vmatprep.subr.mxu0 0.0
  %1488 = vmatpush1.msra.mxu0 0.0
  %1489 = vmatprep.mubr.f32.mxu0 0.0
  %v1490 = vand.u32 %v1018, 4294901760
  %v1491 = vsub.f32 %v1018, %v1490
  %v1492 = vand.u32 %v1491, 4294901760
  %1493 = vmatmul.mubr.f32.gmra.mrb[0].mxu0 %v1492
  %v1494 = vpop.f32.mrb[0].mxu0
  %v1495 = vadd.f32 %v1387, %v1494
  %v1496 = vpop.f32.mrb[0].mxu0
  %v1497 = vadd.f32 %v1389, %v1496
  %1498 = vmatprep.mubr.f32.mxu0 0.0
  %v1499 = vand.u32 %v1021, 4294901760
  %v1500 = vsub.f32 %v1021, %v1499
  %v1501 = vand.u32 %v1500, 4294901760
  %1502 = vmatmul.mubr.f32.gmra.mrb[0].mxu0 %v1501
  %v1503 = vpop.f32.mrb[0].mxu0
  %v1504 = vadd.f32 %v1395, %v1503
  %v1505 = vpop.f32.mrb[0].mxu0
  %v1506 = vadd.f32 %v1397, %v1505
  %1507 = vmatprep.mubr.f32.mxu0 0.0
  %v1508 = vand.u32 %v1024, 4294901760
  %v1509 = vsub.f32 %v1024, %v1508
  %v1510 = vand.u32 %v1509, 4294901760
  %1511 = vmatmul.mubr.f32.gmra.mrb[0].mxu0 %v1510
  %v1512 = vpop.f32.mrb[0].mxu0
  %v1513 = vadd.f32 %v1403, %v1512
  %v1514 = vpop.f32.mrb[0].mxu0
  %v1515 = vadd.f32 %v1405, %v1514
  %1516 = vmatprep.mubr.f32.mxu0 0.0
  %v1517 = vand.u32 %v1027, 4294901760
  %v1518 = vsub.f32 %v1027, %v1517
  %v1519 = vand.u32 %v1518, 4294901760
  %1520 = vmatmul.mubr.f32.gmra.mrb[0].mxu0 %v1519
  %v1521 = vpop.f32.mrb[0].mxu0
  %v1522 = vadd.f32 %v1411, %v1521
  %v1523 = vpop.f32.mrb[0].mxu0
  %v1524 = vadd.f32 %v1413, %v1523
  %1525 = vdwg.mxu0
  %v1526 = vand.u32 %v983, 4294901760
  %v1527 = vsub.f32 %v983, %v1526
  %v1528 = vand.u32 %v1527, 4294901760
  %1529 = vmatprep.subr.mxu0 %v1528
  %v1530 = vand.u32 %v982, 4294901760
  %v1531 = vsub.f32 %v982, %v1530
  %v1532 = vand.u32 %v1531, 4294901760
  %1533 = vmatpush1.msra.mxu0 %v1532
  %v1534 = vand.u32 %v985, 4294901760
  %v1535 = vsub.f32 %v985, %v1534
  %v1536 = vand.u32 %v1535, 4294901760
  %1537 = vmatprep.subr.mxu0 %v1536
  %v1538 = vand.u32 %v984, 4294901760
  %v1539 = vsub.f32 %v984, %v1538
  %v1540 = vand.u32 %v1539, 4294901760
  %1541 = vmatpush1.msra.mxu0 %v1540
  %v1542 = vand.u32 %v987, 4294901760
  %v1543 = vsub.f32 %v987, %v1542
  %v1544 = vand.u32 %v1543, 4294901760
  %1545 = vmatprep.subr.mxu0 %v1544
  %v1546 = vand.u32 %v986, 4294901760
  %v1547 = vsub.f32 %v986, %v1546
  %v1548 = vand.u32 %v1547, 4294901760
  %1549 = vmatpush1.msra.mxu0 %v1548
  %v1550 = vand.u32 %v989, 4294901760
  %v1551 = vsub.f32 %v989, %v1550
  %v1552 = vand.u32 %v1551, 4294901760
  %1553 = vmatprep.subr.mxu0 %v1552
  %v1554 = vand.u32 %v988, 4294901760
  %v1555 = vsub.f32 %v988, %v1554
  %v1556 = vand.u32 %v1555, 4294901760
  %1557 = vmatpush1.msra.mxu0 %v1556
  %v1558 = vand.u32 %v1034, 4294901760
  %v1559 = vsub.f32 %v1034, %v1558
  %v1560 = vand.u32 %v1559, 4294901760
  %1561 = vmatprep.subr.mxu0 %v1560
  %v1562 = vand.u32 %v1031, 4294901760
  %v1563 = vsub.f32 %v1031, %v1562
  %v1564 = vand.u32 %v1563, 4294901760
  %1565 = vmatpush1.msra.mxu0 %v1564
  %1566 = vmatprep.subr.mxu0 0.0
  %1567 = vmatpush1.msra.mxu0 0.0
  %1568 = vmatprep.subr.mxu0 0.0
  %1569 = vmatpush1.msra.mxu0 0.0
  %1570 = vmatprep.subr.mxu0 0.0
  %1571 = vmatpush1.msra.mxu0 0.0
  %1572 = vmatprep.subr.mxu0 0.0
  %1573 = vmatpush1.msra.mxu0 0.0
  %1574 = vmatprep.subr.mxu0 0.0
  %1575 = vmatpush1.msra.mxu0 0.0
  %1576 = vmatprep.subr.mxu0 0.0
  %1577 = vmatpush1.msra.mxu0 0.0
  %1578 = vmatprep.subr.mxu0 0.0
  %1579 = vmatpush1.msra.mxu0 0.0
  %1580 = vmatprep.subr.mxu0 0.0
  %1581 = vmatpush1.msra.mxu0 0.0
  %1582 = vmatprep.subr.mxu0 0.0
  %1583 = vmatpush1.msra.mxu0 0.0
  %1584 = vmatprep.subr.mxu0 0.0
  %1585 = vmatpush1.msra.mxu0 0.0
  %1586 = vmatprep.subr.mxu0 0.0
  %1587 = vmatpush1.msra.mxu0 0.0
  %1588 = vmatprep.subr.mxu0 0.0
  %1589 = vmatpush1.msra.mxu0 0.0
  %1590 = vmatprep.subr.mxu0 0.0
  %1591 = vmatpush1.msra.mxu0 0.0
  %1592 = vmatprep.subr.mxu0 0.0
  %1593 = vmatpush1.msra.mxu0 0.0
  %1594 = vmatprep.subr.mxu0 0.0
  %1595 = vmatpush1.msra.mxu0 0.0
  %1596 = vmatprep.subr.mxu0 0.0
  %1597 = vmatpush1.msra.mxu0 0.0
  %1598 = vmatprep.subr.mxu0 0.0
  %1599 = vmatpush1.msra.mxu0 0.0
  %1600 = vmatprep.subr.mxu0 0.0
  %1601 = vmatpush1.msra.mxu0 0.0
  %1602 = vmatprep.subr.mxu0 0.0
  %1603 = vmatpush1.msra.mxu0 0.0
  %1604 = vmatprep.subr.mxu0 0.0
  %1605 = vmatpush1.msra.mxu0 0.0
  %1606 = vmatprep.subr.mxu0 0.0
  %1607 = vmatpush1.msra.mxu0 0.0
  %1608 = vmatprep.subr.mxu0 0.0
  %1609 = vmatpush1.msra.mxu0 0.0
  %1610 = vmatprep.subr.mxu0 0.0
  %1611 = vmatpush1.msra.mxu0 0.0
  %1612 = vmatprep.subr.mxu0 0.0
  %1613 = vmatpush1.msra.mxu0 0.0
  %1614 = vmatprep.subr.mxu0 0.0
  %1615 = vmatpush1.msra.mxu0 0.0
  %1616 = vmatprep.subr.mxu0 0.0
  %1617 = vmatpush1.msra.mxu0 0.0
  %1618 = vmatprep.subr.mxu0 0.0
  %1619 = vmatpush1.msra.mxu0 0.0
  %1620 = vmatprep.mubr.f32.mxu0 0.0
  %v1621 = vand.u32 %v1018, 4294901760
  %1622 = vmatmul.mubr.f32.gmra.mrb[0].mxu0 %v1621
  %v1623 = vpop.f32.mrb[0].mxu0
  %v1624 = vadd.f32 %v1495, %v1623
  %v1625 = vpop.f32.mrb[0].mxu0
  %v1626 = vadd.f32 %v1497, %v1625
  %1627 = vmatprep.mubr.f32.mxu0 0.0
  %v1628 = vand.u32 %v1021, 4294901760
  %1629 = vmatmul.mubr.f32.gmra.mrb[0].mxu0 %v1628
  %v1630 = vpop.f32.mrb[0].mxu0
  %v1631 = vadd.f32 %v1504, %v1630
  %v1632 = vpop.f32.mrb[0].mxu0
  %v1633 = vadd.f32 %v1506, %v1632
  %1634 = vmatprep.mubr.f32.mxu0 0.0
  %v1635 = vand.u32 %v1024, 4294901760
  %1636 = vmatmul.mubr.f32.gmra.mrb[0].mxu0 %v1635
  %v1637 = vpop.f32.mrb[0].mxu0
  %v1638 = vadd.f32 %v1513, %v1637
  %v1639 = vpop.f32.mrb[0].mxu0
  %v1640 = vadd.f32 %v1515, %v1639
  %1641 = vmatprep.mubr.f32.mxu0 0.0
  %v1642 = vand.u32 %v1027, 4294901760
  %1643 = vmatmul.mubr.f32.gmra.mrb[0].mxu0 %v1642
  %v1644 = vpop.f32.mrb[0].mxu0
  %v1645 = vadd.f32 %v1522, %v1644
  %v1646 = vpop.f32.mrb[0].mxu0
  %v1647 = vadd.f32 %v1524, %v1646
  %1648 = vdwg.mxu0
  %v1649 = vand.u32 %v983, 4294901760
  %1650 = vmatprep.subr.mxu0 %v1649
  %v1651 = vand.u32 %v982, 4294901760
  %1652 = vmatpush1.msra.mxu0 %v1651
  %v1653 = vand.u32 %v985, 4294901760
  %1654 = vmatprep.subr.mxu0 %v1653
  %v1655 = vand.u32 %v984, 4294901760
  %1656 = vmatpush1.msra.mxu0 %v1655
  %v1657 = vand.u32 %v987, 4294901760
  %1658 = vmatprep.subr.mxu0 %v1657
  %v1659 = vand.u32 %v986, 4294901760
  %1660 = vmatpush1.msra.mxu0 %v1659
  %v1661 = vand.u32 %v989, 4294901760
  %1662 = vmatprep.subr.mxu0 %v1661
  %v1663 = vand.u32 %v988, 4294901760
  %1664 = vmatpush1.msra.mxu0 %v1663
  %v1665 = vand.u32 %v1034, 4294901760
  %1666 = vmatprep.subr.mxu0 %v1665
  %v1667 = vand.u32 %v1031, 4294901760
  %1668 = vmatpush1.msra.mxu0 %v1667
  %1669 = vmatprep.subr.mxu0 0.0
  %1670 = vmatpush1.msra.mxu0 0.0
  %1671 = vmatprep.subr.mxu0 0.0
  %1672 = vmatpush1.msra.mxu0 0.0
  %1673 = vmatprep.subr.mxu0 0.0
  %1674 = vmatpush1.msra.mxu0 0.0
  %1675 = vmatprep.subr.mxu0 0.0
  %1676 = vmatpush1.msra.mxu0 0.0
  %1677 = vmatprep.subr.mxu0 0.0
  %1678 = vmatpush1.msra.mxu0 0.0
  %1679 = vmatprep.subr.mxu0 0.0
  %1680 = vmatpush1.msra.mxu0 0.0
  %1681 = vmatprep.subr.mxu0 0.0
  %1682 = vmatpush1.msra.mxu0 0.0
  %1683 = vmatprep.subr.mxu0 0.0
  %1684 = vmatpush1.msra.mxu0 0.0
  %1685 = vmatprep.subr.mxu0 0.0
  %1686 = vmatpush1.msra.mxu0 0.0
  %1687 = vmatprep.subr.mxu0 0.0
  %1688 = vmatpush1.msra.mxu0 0.0
  %1689 = vmatprep.subr.mxu0 0.0
  %1690 = vmatpush1.msra.mxu0 0.0
  %1691 = vmatprep.subr.mxu0 0.0
  %1692 = vmatpush1.msra.mxu0 0.0
  %1693 = vmatprep.subr.mxu0 0.0
  %1694 = vmatpush1.msra.mxu0 0.0
  %1695 = vmatprep.subr.mxu0 0.0
  %1696 = vmatpush1.msra.mxu0 0.0
  %1697 = vmatprep.subr.mxu0 0.0
  %1698 = vmatpush1.msra.mxu0 0.0
  %1699 = vmatprep.subr.mxu0 0.0
  %1700 = vmatpush1.msra.mxu0 0.0
  %1701 = vmatprep.subr.mxu0 0.0
  %1702 = vmatpush1.msra.mxu0 0.0
  %1703 = vmatprep.subr.mxu0 0.0
  %1704 = vmatpush1.msra.mxu0 0.0
  %1705 = vmatprep.subr.mxu0 0.0
  %1706 = vmatpush1.msra.mxu0 0.0
  %1707 = vmatprep.subr.mxu0 0.0
  %1708 = vmatpush1.msra.mxu0 0.0
  %1709 = vmatprep.subr.mxu0 0.0
  %1710 = vmatpush1.msra.mxu0 0.0
  %1711 = vmatprep.subr.mxu0 0.0
  %1712 = vmatpush1.msra.mxu0 0.0
  %1713 = vmatprep.subr.mxu0 0.0
  %1714 = vmatpush1.msra.mxu0 0.0
  %1715 = vmatprep.subr.mxu0 0.0
  %1716 = vmatpush1.msra.mxu0 0.0
  %1717 = vmatprep.subr.mxu0 0.0
  %1718 = vmatpush1.msra.mxu0 0.0
  %1719 = vmatprep.subr.mxu0 0.0
  %1720 = vmatpush1.msra.mxu0 0.0
  %1721 = vmatprep.subr.mxu0 0.0
  %1722 = vmatpush1.msra.mxu0 0.0
  %1723 = vmatprep.mubr.f32.mxu0 0.0
  %v1724 = vand.u32 %v1018, 4294901760
  %1725 = vmatmul.mubr.f32.gmra.mrb[0].mxu0 %v1724
  %v1726 = vpop.f32.mrb[0].mxu0
  %v1727 = vadd.f32 %v1624, %v1726
  %v1728 = vpop.f32.mrb[0].mxu0
  %v1729 = vadd.f32 %v1626, %v1728
  %1730 = vmatprep.mubr.f32.mxu0 0.0
  %v1731 = vand.u32 %v1021, 4294901760
  %1732 = vmatmul.mubr.f32.gmra.mrb[0].mxu0 %v1731
  %v1733 = vpop.f32.mrb[0].mxu0
  %v1734 = vadd.f32 %v1631, %v1733
  %v1735 = vpop.f32.mrb[0].mxu0
  %v1736 = vadd.f32 %v1633, %v1735
  %1737 = vmatprep.mubr.f32.mxu0 0.0
  %v1738 = vand.u32 %v1024, 4294901760
  %1739 = vmatmul.mubr.f32.gmra.mrb[0].mxu0 %v1738
  %v1740 = vpop.f32.mrb[0].mxu0
  %v1741 = vadd.f32 %v1638, %v1740
  %v1742 = vpop.f32.mrb[0].mxu0
  %v1743 = vadd.f32 %v1640, %v1742
  %1744 = vmatprep.mubr.f32.mxu0 0.0
  %v1745 = vand.u32 %v1027, 4294901760
  %1746 = vmatmul.mubr.f32.gmra.mrb[0].mxu0 %v1745
  %v1747 = vpop.f32.mrb[0].mxu0
  %v1748 = vadd.f32 %v1645, %v1747
  %v1749 = vpop.f32.mrb[0].mxu0
  %v1750 = vadd.f32 %v1647, %v1749
  %1751 = vdwg.mxu0
  %v1752 = vmax.f32 %v1727, 0.0
  %v1753 = vmax.f32 %v1729, 0.0
  %v1754 = vmax.f32 %v1734, 0.0
  %v1755 = vmax.f32 %v1736, 0.0
  %v1756 = vmax.f32 %v1741, 0.0
  %v1757 = vmax.f32 %v1743, 0.0
  %v1758 = vmax.f32 %v1748, 0.0
  %v1759 = vmax.f32 %v1750, 0.0
  %vm1760 = vcmp.ne.f32.partialorder %v1727, %v1727
  %vm1761 = vcmp.ne.f32.partialorder %v1729, %v1729
  %vm1762 = vcmp.ne.f32.partialorder %v1734, %v1734
  %vm1763 = vcmp.ne.f32.partialorder %v1736, %v1736
  %vm1764 = vcmp.ne.f32.partialorder %v1741, %v1741
  %vm1765 = vcmp.ne.f32.partialorder %v1743, %v1743
  %vm1766 = vcmp.ne.f32.partialorder %v1748, %v1748
  %vm1767 = vcmp.ne.f32.partialorder %v1750, %v1750
  %v1768 = vadd.f32 %v1727, 0.0
  %v1769 = vadd.f32 %v1729, 0.0
  %v1770 = vadd.f32 %v1734, 0.0
  %v1771 = vadd.f32 %v1736, 0.0
  %v1772 = vadd.f32 %v1741, 0.0
  %v1773 = vadd.f32 %v1743, 0.0
  %v1774 = vadd.f32 %v1748, 0.0
  %v1775 = vadd.f32 %v1750, 0.0
  %v1776 = vand.u32 2147483647, %v1727
  %v1777 = vand.u32 2147483647, %v1729
  %v1778 = vand.u32 2147483647, %v1734
  %v1779 = vand.u32 2147483647, %v1736
  %v1780 = vand.u32 2147483647, %v1741
  %v1781 = vand.u32 2147483647, %v1743
  %v1782 = vand.u32 2147483647, %v1748
  %v1783 = vand.u32 2147483647, %v1750
  %v1784 = vsub.f32 0.0, %v1776
  %v1785 = vsub.f32 0.0, %v1777
  %v1786 = vsub.f32 0.0, %v1778
  %v1787 = vsub.f32 0.0, %v1779
  %v1788 = vsub.f32 0.0, %v1780
  %v1789 = vsub.f32 0.0, %v1781
  %v1790 = vsub.f32 0.0, %v1782
  %v1791 = vsub.f32 0.0, %v1783
  %v1792 = vmul.f32 %v1784, 1.442695
  %v1793 = vpow.pop %v1792
  %v1794 = vmul.f32 %v1785, 1.442695
  %v1795 = vpow.pop %v1794
  %v1796 = vmul.f32 %v1786, 1.442695
  %v1797 = vpow.pop %v1796
  %v1798 = vmul.f32 %v1787, 1.442695
  %v1799 = vpow.pop %v1798
  %v1800 = vmul.f32 %v1788, 1.442695
  %v1801 = vpow.pop %v1800
  %v1802 = vmul.f32 %v1789, 1.442695
  %v1803 = vpow.pop %v1802
  %v1804 = vmul.f32 %v1790, 1.442695
  %v1805 = vpow.pop %v1804
  %v1806 = vmul.f32 %v1791, 1.442695
  %v1807 = vpow.pop %v1806
  %v1808 = vadd.f32 %v1793, 1.0
  %v1809 = vlog2.pop %v1808
  %v1810 = vmul.f32 %v1809, 0.6931472
  %v1811 = vmul.f32 -0.5, %v1793
  %v1812 = vadd.f32 %v1811, 1.0
  %v1813 = vmul.f32 %v1812, %v1793
  %v1814 = vand.u32 2147483647, %v1793
  %vm1815 = vcmp.lt.f32.partialorder %v1814, 0.0004427343
  %v1816 = vsel %vm1815, %v1813, %v1810
  %v1817 = vadd.f32 %v1795, 1.0
  %v1818 = vlog2.pop %v1817
  %v1819 = vmul.f32 %v1818, 0.6931472
  %v1820 = vmul.f32 -0.5, %v1795
  %v1821 = vadd.f32 %v1820, 1.0
  %v1822 = vmul.f32 %v1821, %v1795
  %v1823 = vand.u32 2147483647, %v1795
  %vm1824 = vcmp.lt.f32.partialorder %v1823, 0.0004427343
  %v1825 = vsel %vm1824, %v1822, %v1819
  %v1826 = vadd.f32 %v1797, 1.0
  %v1827 = vlog2.pop %v1826
  %v1828 = vmul.f32 %v1827, 0.6931472
  %v1829 = vmul.f32 -0.5, %v1797
  %v1830 = vadd.f32 %v1829, 1.0
  %v1831 = vmul.f32 %v1830, %v1797
  %v1832 = vand.u32 2147483647, %v1797
  %vm1833 = vcmp.lt.f32.partialorder %v1832, 0.0004427343
  %v1834 = vsel %vm1833, %v1831, %v1828
  %v1835 = vadd.f32 %v1799, 1.0
  %v1836 = vlog2.pop %v1835
  %v1837 = vmul.f32 %v1836, 0.6931472
  %v1838 = vmul.f32 -0.5, %v1799
  %v1839 = vadd.f32 %v1838, 1.0
  %v1840 = vmul.f32 %v1839, %v1799
  %v1841 = vand.u32 2147483647, %v1799
  %vm1842 = vcmp.lt.f32.partialorder %v1841, 0.0004427343
  %v1843 = vsel %vm1842, %v1840, %v1837
  %v1844 = vadd.f32 %v1801, 1.0
  %v1845 = vlog2.pop %v1844
  %v1846 = vmul.f32 %v1845, 0.6931472
  %v1847 = vmul.f32 -0.5, %v1801
  %v1848 = vadd.f32 %v1847, 1.0
  %v1849 = vmul.f32 %v1848, %v1801
  %v1850 = vand.u32 2147483647, %v1801
  %vm1851 = vcmp.lt.f32.partialorder %v1850, 0.0004427343
  %v1852 = vsel %vm1851, %v1849, %v1846
  %v1853 = vadd.f32 %v1803, 1.0
  %v1854 = vlog2.pop %v1853
  %v1855 = vmul.f32 %v1854, 0.6931472
  %v1856 = vmul.f32 -0.5, %v1803
  %v1857 = vadd.f32 %v1856, 1.0
  %v1858 = vmul.f32 %v1857, %v1803
  %v1859 = vand.u32 2147483647, %v1803
  %vm1860 = vcmp.lt.f32.partialorder %v1859, 0.0004427343
  %v1861 = vsel %vm1860, %v1858, %v1855
  %v1862 = vadd.f32 %v1805, 1.0
  %v1863 = vlog2.pop %v1862
  %v1864 = vmul.f32 %v1863, 0.6931472
  %v1865 = vmul.f32 -0.5, %v1805
  %v1866 = vadd.f32 %v1865, 1.0
  %v1867 = vmul.f32 %v1866, %v1805
  %v1868 = vand.u32 2147483647, %v1805
  %vm1869 = vcmp.lt.f32.partialorder %v1868, 0.0004427343
  %v1870 = vsel %vm1869, %v1867, %v1864
  %v1871 = vadd.f32 %v1807, 1.0
  %v1872 = vlog2.pop %v1871
  %v1873 = vmul.f32 %v1872, 0.6931472
  %v1874 = vmul.f32 -0.5, %v1807
  %v1875 = vadd.f32 %v1874, 1.0
  %v1876 = vmul.f32 %v1875, %v1807
  %v1877 = vand.u32 2147483647, %v1807
  %vm1878 = vcmp.lt.f32.partialorder %v1877, 0.0004427343
  %v1879 = vsel %vm1878, %v1876, %v1873
  %v1880 = vadd.f32 %v1752, %v1816
  %v1881 = vadd.f32 %v1753, %v1825
  %v1882 = vadd.f32 %v1754, %v1834
  %v1883 = vadd.f32 %v1755, %v1843
  %v1884 = vadd.f32 %v1756, %v1852
  %v1885 = vadd.f32 %v1757, %v1861
  %v1886 = vadd.f32 %v1758, %v1870
  %v1887 = vadd.f32 %v1759, %v1879
  %v1888 = vsel %vm1760, %v1768, %v1880
  %v1889 = vsel %vm1761, %v1769, %v1881
  %v1890 = vsel %vm1762, %v1770, %v1882
  %v1891 = vsel %vm1763, %v1771, %v1883
  %v1892 = vsel %vm1764, %v1772, %v1884
  %v1893 = vsel %vm1765, %v1773, %v1885
  %v1894 = vsel %vm1766, %v1774, %v1886
  %v1895 = vsel %vm1767, %v1775, %v1887
  %v1896 = vld [vmem:[%s5] sm:$0xff]
  %v1897 = vld [vmem:[%s5 + $0x8] sm:$0xff]
  %v1898 = vld [vmem:[%s5 + $0x10] sm:$0xff]
  %v1899 = vld [vmem:[%s5 + $0x18] sm:$0xff]
  %v1900 = vld [vmem:[%s6] sm:$0xff]
  %v1901 = vld [vmem:[%s6 + $0x8] sm:$0xff]
  %v1902 = vld [vmem:[%s6 + $0x10] sm:$0xff]
  %v1903 = vld [vmem:[%s6 + $0x18] sm:$0xff]
  %1905 = vset.pattern.permute.xlu0 0
  %1906 = vperm.xlu0 %1905, %v1900
  %v1907 = vpop.permute.xlu0 %1906
  %1910 = vset.pattern.permute.xlu0 0
  %1911 = vperm.xlu0 %1910, %v1901
  %v1912 = vpop.permute.xlu0 %1911
  %1915 = vset.pattern.permute.xlu0 0
  %1916 = vperm.xlu0 %1915, %v1902
  %v1917 = vpop.permute.xlu0 %1916
  %1920 = vset.pattern.permute.xlu0 0
  %1921 = vperm.xlu0 %1920, %v1903
  %v1922 = vpop.permute.xlu0 %1921
  %vm1924 = vcmask 261120
  %v1926 = vsel %vm1924, %v1896, 0
  %v1929 = vsel %vm1924, %v1897, 0
  %v1932 = vsel %vm1924, %v1898, 0
  %v1935 = vsel %vm1924, %v1899, 0
  %v1937 = vand.u32 %v1889, 4294901760
  %1938 = vmatprep.subr.mxu0 %v1937
  %v1939 = vand.u32 %v1888, 4294901760
  %1940 = vmatpush1.msra.mxu0 %v1939
  %v1941 = vand.u32 %v1891, 4294901760
  %1942 = vmatprep.subr.mxu0 %v1941
  %v1943 = vand.u32 %v1890, 4294901760
  %1944 = vmatpush1.msra.mxu0 %v1943
  %v1945 = vand.u32 %v1893, 4294901760
  %1946 = vmatprep.subr.mxu0 %v1945
  %v1947 = vand.u32 %v1892, 4294901760
  %1948 = vmatpush1.msra.mxu0 %v1947
  %v1949 = vand.u32 %v1895, 4294901760
  %1950 = vmatprep.subr.mxu0 %v1949
  %v1951 = vand.u32 %v1894, 4294901760
  %1952 = vmatpush1.msra.mxu0 %v1951
  %1953 = vmatprep.subr.mxu0 0.0
  %1954 = vmatpush1.msra.mxu0 0.0
  %1955 = vmatprep.subr.mxu0 0.0
  %1956 = vmatpush1.msra.mxu0 0.0
  %1957 = vmatprep.subr.mxu0 0.0
  %1958 = vmatpush1.msra.mxu0 0.0
  %1959 = vmatprep.subr.mxu0 0.0
  %1960 = vmatpush1.msra.mxu0 0.0
  %1961 = vmatprep.subr.mxu0 0.0
  %1962 = vmatpush1.msra.mxu0 0.0
  %1963 = vmatprep.subr.mxu0 0.0
  %1964 = vmatpush1.msra.mxu0 0.0
  %1965 = vmatprep.subr.mxu0 0.0
  %1966 = vmatpush1.msra.mxu0 0.0
  %1967 = vmatprep.subr.mxu0 0.0
  %1968 = vmatpush1.msra.mxu0 0.0
  %1969 = vmatprep.subr.mxu0 0.0
  %1970 = vmatpush1.msra.mxu0 0.0
  %1971 = vmatprep.subr.mxu0 0.0
  %1972 = vmatpush1.msra.mxu0 0.0
  %1973 = vmatprep.subr.mxu0 0.0
  %1974 = vmatpush1.msra.mxu0 0.0
  %1975 = vmatprep.subr.mxu0 0.0
  %1976 = vmatpush1.msra.mxu0 0.0
  %1977 = vmatprep.subr.mxu0 0.0
  %1978 = vmatpush1.msra.mxu0 0.0
  %1979 = vmatprep.subr.mxu0 0.0
  %1980 = vmatpush1.msra.mxu0 0.0
  %1981 = vmatprep.subr.mxu0 0.0
  %1982 = vmatpush1.msra.mxu0 0.0
  %1983 = vmatprep.subr.mxu0 0.0
  %1984 = vmatpush1.msra.mxu0 0.0
  %1985 = vmatprep.subr.mxu0 0.0
  %1986 = vmatpush1.msra.mxu0 0.0
  %1987 = vmatprep.subr.mxu0 0.0
  %1988 = vmatpush1.msra.mxu0 0.0
  %1989 = vmatprep.subr.mxu0 0.0
  %1990 = vmatpush1.msra.mxu0 0.0
  %1991 = vmatprep.subr.mxu0 0.0
  %1992 = vmatpush1.msra.mxu0 0.0
  %1993 = vmatprep.subr.mxu0 0.0
  %1994 = vmatpush1.msra.mxu0 0.0
  %1995 = vmatprep.subr.mxu0 0.0
  %1996 = vmatpush1.msra.mxu0 0.0
  %1997 = vmatprep.subr.mxu0 0.0
  %1998 = vmatpush1.msra.mxu0 0.0
  %1999 = vmatprep.subr.mxu0 0.0
  %2000 = vmatpush1.msra.mxu0 0.0
  %2001 = vmatprep.subr.mxu0 0.0
  %2002 = vmatpush1.msra.mxu0 0.0
  %2003 = vmatprep.subr.mxu0 0.0
  %2004 = vmatpush1.msra.mxu0 0.0
  %2005 = vmatprep.subr.mxu0 0.0
  %2006 = vmatpush1.msra.mxu0 0.0
  %2007 = vmatprep.subr.mxu0 0.0
  %2008 = vmatpush1.msra.mxu0 0.0
  %2009 = vmatprep.mubr.f32.mxu0 0.0
  %v2010 = vand.u32 %v1926, 4294901760
  %v2011 = vsub.f32 %v1926, %v2010
  %v2012 = vand.u32 %v2011, 4294901760
  %v2013 = vsub.f32 %v2011, %v2012
  %v2014 = vand.u32 %v2013, 4294901760
  %2015 = vmatmul.mubr.f32.gmra.mrb[0].mxu0 %v2014
  %v2016 = vpop.f32.mrb[0].mxu0
  %v2017 = vadd.f32 %v1907, %v2016
  %v2018 = vpop.f32.mrb[0].mxu0
  %v2019 = vadd.f32 %v1907, %v2018
  %2020 = vmatprep.mubr.f32.mxu0 0.0
  %v2021 = vand.u32 %v1929, 4294901760
  %v2022 = vsub.f32 %v1929, %v2021
  %v2023 = vand.u32 %v2022, 4294901760
  %v2024 = vsub.f32 %v2022, %v2023
  %v2025 = vand.u32 %v2024, 4294901760
  %2026 = vmatmul.mubr.f32.gmra.mrb[0].mxu0 %v2025
  %v2027 = vpop.f32.mrb[0].mxu0
  %v2028 = vadd.f32 %v1912, %v2027
  %v2029 = vpop.f32.mrb[0].mxu0
  %v2030 = vadd.f32 %v1912, %v2029
  %2031 = vmatprep.mubr.f32.mxu0 0.0
  %v2032 = vand.u32 %v1932, 4294901760
  %v2033 = vsub.f32 %v1932, %v2032
  %v2034 = vand.u32 %v2033, 4294901760
  %v2035 = vsub.f32 %v2033, %v2034
  %v2036 = vand.u32 %v2035, 4294901760
  %2037 = vmatmul.mubr.f32.gmra.mrb[0].mxu0 %v2036
  %v2038 = vpop.f32.mrb[0].mxu0
  %v2039 = vadd.f32 %v1917, %v2038
  %v2040 = vpop.f32.mrb[0].mxu0
  %v2041 = vadd.f32 %v1917, %v2040
  %2042 = vmatprep.mubr.f32.mxu0 0.0
  %v2043 = vand.u32 %v1935, 4294901760
  %v2044 = vsub.f32 %v1935, %v2043
  %v2045 = vand.u32 %v2044, 4294901760
  %v2046 = vsub.f32 %v2044, %v2045
  %v2047 = vand.u32 %v2046, 4294901760
  %2048 = vmatmul.mubr.f32.gmra.mrb[0].mxu0 %v2047
  %v2049 = vpop.f32.mrb[0].mxu0
  %v2050 = vadd.f32 %v1922, %v2049
  %v2051 = vpop.f32.mrb[0].mxu0
  %v2052 = vadd.f32 %v1922, %v2051
  %2053 = vdwg.mxu0
  %v2054 = vand.u32 %v1889, 4294901760
  %v2055 = vsub.f32 %v1889, %v2054
  %v2056 = vand.u32 %v2055, 4294901760
  %v2057 = vsub.f32 %v2055, %v2056
  %v2058 = vand.u32 %v2057, 4294901760
  %2059 = vmatprep.subr.mxu0 %v2058
  %v2060 = vand.u32 %v1888, 4294901760
  %v2061 = vsub.f32 %v1888, %v2060
  %v2062 = vand.u32 %v2061, 4294901760
  %v2063 = vsub.f32 %v2061, %v2062
  %v2064 = vand.u32 %v2063, 4294901760
  %2065 = vmatpush1.msra.mxu0 %v2064
  %v2066 = vand.u32 %v1891, 4294901760
  %v2067 = vsub.f32 %v1891, %v2066
  %v2068 = vand.u32 %v2067, 4294901760
  %v2069 = vsub.f32 %v2067, %v2068
  %v2070 = vand.u32 %v2069, 4294901760
  %2071 = vmatprep.subr.mxu0 %v2070
  %v2072 = vand.u32 %v1890, 4294901760
  %v2073 = vsub.f32 %v1890, %v2072
  %v2074 = vand.u32 %v2073, 4294901760
  %v2075 = vsub.f32 %v2073, %v2074
  %v2076 = vand.u32 %v2075, 4294901760
  %2077 = vmatpush1.msra.mxu0 %v2076
  %v2078 = vand.u32 %v1893, 4294901760
  %v2079 = vsub.f32 %v1893, %v2078
  %v2080 = vand.u32 %v2079, 4294901760
  %v2081 = vsub.f32 %v2079, %v2080
  %v2082 = vand.u32 %v2081, 4294901760
  %2083 = vmatprep.subr.mxu0 %v2082
  %v2084 = vand.u32 %v1892, 4294901760
  %v2085 = vsub.f32 %v1892, %v2084
  %v2086 = vand.u32 %v2085, 4294901760
  %v2087 = vsub.f32 %v2085, %v2086
  %v2088 = vand.u32 %v2087, 4294901760
  %2089 = vmatpush1.msra.mxu0 %v2088
  %v2090 = vand.u32 %v1895, 4294901760
  %v2091 = vsub.f32 %v1895, %v2090
  %v2092 = vand.u32 %v2091, 4294901760
  %v2093 = vsub.f32 %v2091, %v2092
  %v2094 = vand.u32 %v2093, 4294901760
  %2095 = vmatprep.subr.mxu0 %v2094
  %v2096 = vand.u32 %v1894, 4294901760
  %v2097 = vsub.f32 %v1894, %v2096
  %v2098 = vand.u32 %v2097, 4294901760
  %v2099 = vsub.f32 %v2097, %v2098
  %v2100 = vand.u32 %v2099, 4294901760
  %2101 = vmatpush1.msra.mxu0 %v2100
  %2102 = vmatprep.subr.mxu0 0.0
  %2103 = vmatpush1.msra.mxu0 0.0
  %2104 = vmatprep.subr.mxu0 0.0
  %2105 = vmatpush1.msra.mxu0 0.0
  %2106 = vmatprep.subr.mxu0 0.0
  %2107 = vmatpush1.msra.mxu0 0.0
  %2108 = vmatprep.subr.mxu0 0.0
  %2109 = vmatpush1.msra.mxu0 0.0
  %2110 = vmatprep.subr.mxu0 0.0
  %2111 = vmatpush1.msra.mxu0 0.0
  %2112 = vmatprep.subr.mxu0 0.0
  %2113 = vmatpush1.msra.mxu0 0.0
  %2114 = vmatprep.subr.mxu0 0.0
  %2115 = vmatpush1.msra.mxu0 0.0
  %2116 = vmatprep.subr.mxu0 0.0
  %2117 = vmatpush1.msra.mxu0 0.0
  %2118 = vmatprep.subr.mxu0 0.0
  %2119 = vmatpush1.msra.mxu0 0.0
  %2120 = vmatprep.subr.mxu0 0.0
  %2121 = vmatpush1.msra.mxu0 0.0
  %2122 = vmatprep.subr.mxu0 0.0
  %2123 = vmatpush1.msra.mxu0 0.0
  %2124 = vmatprep.subr.mxu0 0.0
  %2125 = vmatpush1.msra.mxu0 0.0
  %2126 = vmatprep.subr.mxu0 0.0
  %2127 = vmatpush1.msra.mxu0 0.0
  %2128 = vmatprep.subr.mxu0 0.0
  %2129 = vmatpush1.msra.mxu0 0.0
  %2130 = vmatprep.subr.mxu0 0.0
  %2131 = vmatpush1.msra.mxu0 0.0
  %2132 = vmatprep.subr.mxu0 0.0
  %2133 = vmatpush1.msra.mxu0 0.0
  %2134 = vmatprep.subr.mxu0 0.0
  %2135 = vmatpush1.msra.mxu0 0.0
  %2136 = vmatprep.subr.mxu0 0.0
  %2137 = vmatpush1.msra.mxu0 0.0
  %2138 = vmatprep.subr.mxu0 0.0
  %2139 = vmatpush1.msra.mxu0 0.0
  %2140 = vmatprep.subr.mxu0 0.0
  %2141 = vmatpush1.msra.mxu0 0.0
  %2142 = vmatprep.subr.mxu0 0.0
  %2143 = vmatpush1.msra.mxu0 0.0
  %2144 = vmatprep.subr.mxu0 0.0
  %2145 = vmatpush1.msra.mxu0 0.0
  %2146 = vmatprep.subr.mxu0 0.0
  %2147 = vmatpush1.msra.mxu0 0.0
  %2148 = vmatprep.subr.mxu0 0.0
  %2149 = vmatpush1.msra.mxu0 0.0
  %2150 = vmatprep.subr.mxu0 0.0
  %2151 = vmatpush1.msra.mxu0 0.0
  %2152 = vmatprep.subr.mxu0 0.0
  %2153 = vmatpush1.msra.mxu0 0.0
  %2154 = vmatprep.subr.mxu0 0.0
  %2155 = vmatpush1.msra.mxu0 0.0
  %2156 = vmatprep.subr.mxu0 0.0
  %2157 = vmatpush1.msra.mxu0 0.0
  %2158 = vmatprep.mubr.f32.mxu0 0.0
  %v2159 = vand.u32 %v1926, 4294901760
  %2160 = vmatmul.mubr.f32.gmra.mrb[0].mxu0 %v2159
  %v2161 = vpop.f32.mrb[0].mxu0
  %v2162 = vadd.f32 %v2017, %v2161
  %v2163 = vpop.f32.mrb[0].mxu0
  %v2164 = vadd.f32 %v2019, %v2163
  %2165 = vmatprep.mubr.f32.mxu0 0.0
  %v2166 = vand.u32 %v1929, 4294901760
  %2167 = vmatmul.mubr.f32.gmra.mrb[0].mxu0 %v2166
  %v2168 = vpop.f32.mrb[0].mxu0
  %v2169 = vadd.f32 %v2028, %v2168
  %v2170 = vpop.f32.mrb[0].mxu0
  %v2171 = vadd.f32 %v2030, %v2170
  %2172 = vmatprep.mubr.f32.mxu0 0.0
  %v2173 = vand.u32 %v1932, 4294901760
  %2174 = vmatmul.mubr.f32.gmra.mrb[0].mxu0 %v2173
  %v2175 = vpop.f32.mrb[0].mxu0
  %v2176 = vadd.f32 %v2039, %v2175
  %v2177 = vpop.f32.mrb[0].mxu0
  %v2178 = vadd.f32 %v2041, %v2177
  %2179 = vmatprep.mubr.f32.mxu0 0.0
  %v2180 = vand.u32 %v1935, 4294901760
  %2181 = vmatmul.mubr.f32.gmra.mrb[0].mxu0 %v2180
  %v2182 = vpop.f32.mrb[0].mxu0
  %v2183 = vadd.f32 %v2050, %v2182
  %v2184 = vpop.f32.mrb[0].mxu0
  %v2185 = vadd.f32 %v2052, %v2184
  %2186 = vdwg.mxu0
  %v2187 = vand.u32 %v1889, 4294901760
  %v2188 = vsub.f32 %v1889, %v2187
  %2189 = vmatprep.subr.mxu0 %v2188
  %v2190 = vand.u32 %v1888, 4294901760
  %v2191 = vsub.f32 %v1888, %v2190
  %2192 = vmatpush1.msra.mxu0 %v2191
  %v2193 = vand.u32 %v1891, 4294901760
  %v2194 = vsub.f32 %v1891, %v2193
  %2195 = vmatprep.subr.mxu0 %v2194
  %v2196 = vand.u32 %v1890, 4294901760
  %v2197 = vsub.f32 %v1890, %v2196
  %2198 = vmatpush1.msra.mxu0 %v2197
  %v2199 = vand.u32 %v1893, 4294901760
  %v2200 = vsub.f32 %v1893, %v2199
  %2201 = vmatprep.subr.mxu0 %v2200
  %v2202 = vand.u32 %v1892, 4294901760
  %v2203 = vsub.f32 %v1892, %v2202
  %2204 = vmatpush1.msra.mxu0 %v2203
  %v2205 = vand.u32 %v1895, 4294901760
  %v2206 = vsub.f32 %v1895, %v2205
  %2207 = vmatprep.subr.mxu0 %v2206
  %v2208 = vand.u32 %v1894, 4294901760
  %v2209 = vsub.f32 %v1894, %v2208
  %2210 = vmatpush1.msra.mxu0 %v2209
  %2211 = vmatprep.subr.mxu0 0.0
  %2212 = vmatpush1.msra.mxu0 0.0
  %2213 = vmatprep.subr.mxu0 0.0
  %2214 = vmatpush1.msra.mxu0 0.0
  %2215 = vmatprep.subr.mxu0 0.0
  %2216 = vmatpush1.msra.mxu0 0.0
  %2217 = vmatprep.subr.mxu0 0.0
  %2218 = vmatpush1.msra.mxu0 0.0
  %2219 = vmatprep.subr.mxu0 0.0
  %2220 = vmatpush1.msra.mxu0 0.0
  %2221 = vmatprep.subr.mxu0 0.0
  %2222 = vmatpush1.msra.mxu0 0.0
  %2223 = vmatprep.subr.mxu0 0.0
  %2224 = vmatpush1.msra.mxu0 0.0
  %2225 = vmatprep.subr.mxu0 0.0
  %2226 = vmatpush1.msra.mxu0 0.0
  %2227 = vmatprep.subr.mxu0 0.0
  %2228 = vmatpush1.msra.mxu0 0.0
  %2229 = vmatprep.subr.mxu0 0.0
  %2230 = vmatpush1.msra.mxu0 0.0
  %2231 = vmatprep.subr.mxu0 0.0
  %2232 = vmatpush1.msra.mxu0 0.0
  %2233 = vmatprep.subr.mxu0 0.0
  %2234 = vmatpush1.msra.mxu0 0.0
  %2235 = vmatprep.subr.mxu0 0.0
  %2236 = vmatpush1.msra.mxu0 0.0
  %2237 = vmatprep.subr.mxu0 0.0
  %2238 = vmatpush1.msra.mxu0 0.0
  %2239 = vmatprep.subr.mxu0 0.0
  %2240 = vmatpush1.msra.mxu0 0.0
  %2241 = vmatprep.subr.mxu0 0.0
  %2242 = vmatpush1.msra.mxu0 0.0
  %2243 = vmatprep.subr.mxu0 0.0
  %2244 = vmatpush1.msra.mxu0 0.0
  %2245 = vmatprep.subr.mxu0 0.0
  %2246 = vmatpush1.msra.mxu0 0.0
  %2247 = vmatprep.subr.mxu0 0.0
  %2248 = vmatpush1.msra.mxu0 0.0
  %2249 = vmatprep.subr.mxu0 0.0
  %2250 = vmatpush1.msra.mxu0 0.0
  %2251 = vmatprep.subr.mxu0 0.0
  %2252 = vmatpush1.msra.mxu0 0.0
  %2253 = vmatprep.subr.mxu0 0.0
  %2254 = vmatpush1.msra.mxu0 0.0
  %2255 = vmatprep.subr.mxu0 0.0
  %2256 = vmatpush1.msra.mxu0 0.0
  %2257 = vmatprep.subr.mxu0 0.0
  %2258 = vmatpush1.msra.mxu0 0.0
  %2259 = vmatprep.subr.mxu0 0.0
  %2260 = vmatpush1.msra.mxu0 0.0
  %2261 = vmatprep.subr.mxu0 0.0
  %2262 = vmatpush1.msra.mxu0 0.0
  %2263 = vmatprep.subr.mxu0 0.0
  %2264 = vmatpush1.msra.mxu0 0.0
  %2265 = vmatprep.subr.mxu0 0.0
  %2266 = vmatpush1.msra.mxu0 0.0
  %2267 = vmatprep.mubr.f32.mxu0 0.0
  %v2268 = vand.u32 %v1926, 4294901760
  %v2269 = vsub.f32 %v1926, %v2268
  %2270 = vmatmul.mubr.f32.gmra.mrb[0].mxu0 %v2269
  %v2271 = vpop.f32.mrb[0].mxu0
  %v2272 = vadd.f32 %v2162, %v2271
  %v2273 = vpop.f32.mrb[0].mxu0
  %v2274 = vadd.f32 %v2164, %v2273
  %2275 = vmatprep.mubr.f32.mxu0 0.0
  %v2276 = vand.u32 %v1929, 4294901760
  %v2277 = vsub.f32 %v1929, %v2276
  %2278 = vmatmul.mubr.f32.gmra.mrb[0].mxu0 %v2277
  %v2279 = vpop.f32.mrb[0].mxu0
  %v2280 = vadd.f32 %v2169, %v2279
  %v2281 = vpop.f32.mrb[0].mxu0
  %v2282 = vadd.f32 %v2171, %v2281
  %2283 = vmatprep.mubr.f32.mxu0 0.0
  %v2284 = vand.u32 %v1932, 4294901760
  %v2285 = vsub.f32 %v1932, %v2284
  %2286 = vmatmul.mubr.f32.gmra.mrb[0].mxu0 %v2285
  %v2287 = vpop.f32.mrb[0].mxu0
  %v2288 = vadd.f32 %v2176, %v2287
  %v2289 = vpop.f32.mrb[0].mxu0
  %v2290 = vadd.f32 %v2178, %v2289
  %2291 = vmatprep.mubr.f32.mxu0 0.0
  %v2292 = vand.u32 %v1935, 4294901760
  %v2293 = vsub.f32 %v1935, %v2292
  %2294 = vmatmul.mubr.f32.gmra.mrb[0].mxu0 %v2293
  %v2295 = vpop.f32.mrb[0].mxu0
  %v2296 = vadd.f32 %v2183, %v2295
  %v2297 = vpop.f32.mrb[0].mxu0
  %v2298 = vadd.f32 %v2185, %v2297
  %2299 = vdwg.mxu0
  %v2300 = vand.u32 %v1889, 4294901760
  %2301 = vmatprep.subr.mxu0 %v2300
  %v2302 = vand.u32 %v1888, 4294901760
  %2303 = vmatpush1.msra.mxu0 %v2302
  %v2304 = vand.u32 %v1891, 4294901760
  %2305 = vmatprep.subr.mxu0 %v2304
  %v2306 = vand.u32 %v1890, 4294901760
  %2307 = vmatpush1.msra.mxu0 %v2306
  %v2308 = vand.u32 %v1893, 4294901760
  %2309 = vmatprep.subr.mxu0 %v2308
  %v2310 = vand.u32 %v1892, 4294901760
  %2311 = vmatpush1.msra.mxu0 %v2310
  %v2312 = vand.u32 %v1895, 4294901760
  %2313 = vmatprep.subr.mxu0 %v2312
  %v2314 = vand.u32 %v1894, 4294901760
  %2315 = vmatpush1.msra.mxu0 %v2314
  %2316 = vmatprep.subr.mxu0 0.0
  %2317 = vmatpush1.msra.mxu0 0.0
  %2318 = vmatprep.subr.mxu0 0.0
  %2319 = vmatpush1.msra.mxu0 0.0
  %2320 = vmatprep.subr.mxu0 0.0
  %2321 = vmatpush1.msra.mxu0 0.0
  %2322 = vmatprep.subr.mxu0 0.0
  %2323 = vmatpush1.msra.mxu0 0.0
  %2324 = vmatprep.subr.mxu0 0.0
  %2325 = vmatpush1.msra.mxu0 0.0
  %2326 = vmatprep.subr.mxu0 0.0
  %2327 = vmatpush1.msra.mxu0 0.0
  %2328 = vmatprep.subr.mxu0 0.0
  %2329 = vmatpush1.msra.mxu0 0.0
  %2330 = vmatprep.subr.mxu0 0.0
  %2331 = vmatpush1.msra.mxu0 0.0
  %2332 = vmatprep.subr.mxu0 0.0
  %2333 = vmatpush1.msra.mxu0 0.0
  %2334 = vmatprep.subr.mxu0 0.0
  %2335 = vmatpush1.msra.mxu0 0.0
  %2336 = vmatprep.subr.mxu0 0.0
  %2337 = vmatpush1.msra.mxu0 0.0
  %2338 = vmatprep.subr.mxu0 0.0
  %2339 = vmatpush1.msra.mxu0 0.0
  %2340 = vmatprep.subr.mxu0 0.0
  %2341 = vmatpush1.msra.mxu0 0.0
  %2342 = vmatprep.subr.mxu0 0.0
  %2343 = vmatpush1.msra.mxu0 0.0
  %2344 = vmatprep.subr.mxu0 0.0
  %2345 = vmatpush1.msra.mxu0 0.0
  %2346 = vmatprep.subr.mxu0 0.0
  %2347 = vmatpush1.msra.mxu0 0.0
  %2348 = vmatprep.subr.mxu0 0.0
  %2349 = vmatpush1.msra.mxu0 0.0
  %2350 = vmatprep.subr.mxu0 0.0
  %2351 = vmatpush1.msra.mxu0 0.0
  %2352 = vmatprep.subr.mxu0 0.0
  %2353 = vmatpush1.msra.mxu0 0.0
  %2354 = vmatprep.subr.mxu0 0.0
  %2355 = vmatpush1.msra.mxu0 0.0
  %2356 = vmatprep.subr.mxu0 0.0
  %2357 = vmatpush1.msra.mxu0 0.0
  %2358 = vmatprep.subr.mxu0 0.0
  %2359 = vmatpush1.msra.mxu0 0.0
  %2360 = vmatprep.subr.mxu0 0.0
  %2361 = vmatpush1.msra.mxu0 0.0
  %2362 = vmatprep.subr.mxu0 0.0
  %2363 = vmatpush1.msra.mxu0 0.0
  %2364 = vmatprep.subr.mxu0 0.0
  %2365 = vmatpush1.msra.mxu0 0.0
  %2366 = vmatprep.subr.mxu0 0.0
  %2367 = vmatpush1.msra.mxu0 0.0
  %2368 = vmatprep.subr.mxu0 0.0
  %2369 = vmatpush1.msra.mxu0 0.0
  %2370 = vmatprep.subr.mxu0 0.0
  %2371 = vmatpush1.msra.mxu0 0.0
  %2372 = vmatprep.mubr.f32.mxu0 0.0
  %v2373 = vand.u32 %v1926, 4294901760
  %v2374 = vsub.f32 %v1926, %v2373
  %v2375 = vand.u32 %v2374, 4294901760
  %2376 = vmatmul.mubr.f32.gmra.mrb[0].mxu0 %v2375
  %v2377 = vpop.f32.mrb[0].mxu0
  %v2378 = vadd.f32 %v2272, %v2377
  %v2379 = vpop.f32.mrb[0].mxu0
  %v2380 = vadd.f32 %v2274, %v2379
  %2381 = vmatprep.mubr.f32.mxu0 0.0
  %v2382 = vand.u32 %v1929, 4294901760
  %v2383 = vsub.f32 %v1929, %v2382
  %v2384 = vand.u32 %v2383, 4294901760
  %2385 = vmatmul.mubr.f32.gmra.mrb[0].mxu0 %v2384
  %v2386 = vpop.f32.mrb[0].mxu0
  %v2387 = vadd.f32 %v2280, %v2386
  %v2388 = vpop.f32.mrb[0].mxu0
  %v2389 = vadd.f32 %v2282, %v2388
  %2390 = vmatprep.mubr.f32.mxu0 0.0
  %v2391 = vand.u32 %v1932, 4294901760
  %v2392 = vsub.f32 %v1932, %v2391
  %v2393 = vand.u32 %v2392, 4294901760
  %2394 = vmatmul.mubr.f32.gmra.mrb[0].mxu0 %v2393
  %v2395 = vpop.f32.mrb[0].mxu0
  %v2396 = vadd.f32 %v2288, %v2395
  %v2397 = vpop.f32.mrb[0].mxu0
  %v2398 = vadd.f32 %v2290, %v2397
  %2399 = vmatprep.mubr.f32.mxu0 0.0
  %v2400 = vand.u32 %v1935, 4294901760
  %v2401 = vsub.f32 %v1935, %v2400
  %v2402 = vand.u32 %v2401, 4294901760
  %2403 = vmatmul.mubr.f32.gmra.mrb[0].mxu0 %v2402
  %v2404 = vpop.f32.mrb[0].mxu0
  %v2405 = vadd.f32 %v2296, %v2404
  %v2406 = vpop.f32.mrb[0].mxu0
  %v2407 = vadd.f32 %v2298, %v2406
  %2408 = vdwg.mxu0
  %v2409 = vand.u32 %v1889, 4294901760
  %v2410 = vsub.f32 %v1889, %v2409
  %v2411 = vand.u32 %v2410, 4294901760
  %2412 = vmatprep.subr.mxu0 %v2411
  %v2413 = vand.u32 %v1888, 4294901760
  %v2414 = vsub.f32 %v1888, %v2413
  %v2415 = vand.u32 %v2414, 4294901760
  %2416 = vmatpush1.msra.mxu0 %v2415
  %v2417 = vand.u32 %v1891, 4294901760
  %v2418 = vsub.f32 %v1891, %v2417
  %v2419 = vand.u32 %v2418, 4294901760
  %2420 = vmatprep.subr.mxu0 %v2419
  %v2421 = vand.u32 %v1890, 4294901760
  %v2422 = vsub.f32 %v1890, %v2421
  %v2423 = vand.u32 %v2422, 4294901760
  %2424 = vmatpush1.msra.mxu0 %v2423
  %v2425 = vand.u32 %v1893, 4294901760
  %v2426 = vsub.f32 %v1893, %v2425
  %v2427 = vand.u32 %v2426, 4294901760
  %2428 = vmatprep.subr.mxu0 %v2427
  %v2429 = vand.u32 %v1892, 4294901760
  %v2430 = vsub.f32 %v1892, %v2429
  %v2431 = vand.u32 %v2430, 4294901760
  %2432 = vmatpush1.msra.mxu0 %v2431
  %v2433 = vand.u32 %v1895, 4294901760
  %v2434 = vsub.f32 %v1895, %v2433
  %v2435 = vand.u32 %v2434, 4294901760
  %2436 = vmatprep.subr.mxu0 %v2435
  %v2437 = vand.u32 %v1894, 4294901760
  %v2438 = vsub.f32 %v1894, %v2437
  %v2439 = vand.u32 %v2438, 4294901760
  %2440 = vmatpush1.msra.mxu0 %v2439
  %2441 = vmatprep.subr.mxu0 0.0
  %2442 = vmatpush1.msra.mxu0 0.0
  %2443 = vmatprep.subr.mxu0 0.0
  %2444 = vmatpush1.msra.mxu0 0.0
  %2445 = vmatprep.subr.mxu0 0.0
  %2446 = vmatpush1.msra.mxu0 0.0
  %2447 = vmatprep.subr.mxu0 0.0
  %2448 = vmatpush1.msra.mxu0 0.0
  %2449 = vmatprep.subr.mxu0 0.0
  %2450 = vmatpush1.msra.mxu0 0.0
  %2451 = vmatprep.subr.mxu0 0.0
  %2452 = vmatpush1.msra.mxu0 0.0
  %2453 = vmatprep.subr.mxu0 0.0
  %2454 = vmatpush1.msra.mxu0 0.0
  %2455 = vmatprep.subr.mxu0 0.0
  %2456 = vmatpush1.msra.mxu0 0.0
  %2457 = vmatprep.subr.mxu0 0.0
  %2458 = vmatpush1.msra.mxu0 0.0
  %2459 = vmatprep.subr.mxu0 0.0
  %2460 = vmatpush1.msra.mxu0 0.0
  %2461 = vmatprep.subr.mxu0 0.0
  %2462 = vmatpush1.msra.mxu0 0.0
  %2463 = vmatprep.subr.mxu0 0.0
  %2464 = vmatpush1.msra.mxu0 0.0
  %2465 = vmatprep.subr.mxu0 0.0
  %2466 = vmatpush1.msra.mxu0 0.0
  %2467 = vmatprep.subr.mxu0 0.0
  %2468 = vmatpush1.msra.mxu0 0.0
  %2469 = vmatprep.subr.mxu0 0.0
  %2470 = vmatpush1.msra.mxu0 0.0
  %2471 = vmatprep.subr.mxu0 0.0
  %2472 = vmatpush1.msra.mxu0 0.0
  %2473 = vmatprep.subr.mxu0 0.0
  %2474 = vmatpush1.msra.mxu0 0.0
  %2475 = vmatprep.subr.mxu0 0.0
  %2476 = vmatpush1.msra.mxu0 0.0
  %2477 = vmatprep.subr.mxu0 0.0
  %2478 = vmatpush1.msra.mxu0 0.0
  %2479 = vmatprep.subr.mxu0 0.0
  %2480 = vmatpush1.msra.mxu0 0.0
  %2481 = vmatprep.subr.mxu0 0.0
  %2482 = vmatpush1.msra.mxu0 0.0
  %2483 = vmatprep.subr.mxu0 0.0
  %2484 = vmatpush1.msra.mxu0 0.0
  %2485 = vmatprep.subr.mxu0 0.0
  %2486 = vmatpush1.msra.mxu0 0.0
  %2487 = vmatprep.subr.mxu0 0.0
  %2488 = vmatpush1.msra.mxu0 0.0
  %2489 = vmatprep.subr.mxu0 0.0
  %2490 = vmatpush1.msra.mxu0 0.0
  %2491 = vmatprep.subr.mxu0 0.0
  %2492 = vmatpush1.msra.mxu0 0.0
  %2493 = vmatprep.subr.mxu0 0.0
  %2494 = vmatpush1.msra.mxu0 0.0
  %2495 = vmatprep.subr.mxu0 0.0
  %2496 = vmatpush1.msra.mxu0 0.0
  %2497 = vmatprep.mubr.f32.mxu0 0.0
  %v2498 = vand.u32 %v1926, 4294901760
  %2499 = vmatmul.mubr.f32.gmra.mrb[0].mxu0 %v2498
  %v2500 = vpop.f32.mrb[0].mxu0
  %v2501 = vadd.f32 %v2378, %v2500
  %v2502 = vpop.f32.mrb[0].mxu0
  %v2503 = vadd.f32 %v2380, %v2502
  %2504 = vmatprep.mubr.f32.mxu0 0.0
  %v2505 = vand.u32 %v1929, 4294901760
  %2506 = vmatmul.mubr.f32.gmra.mrb[0].mxu0 %v2505
  %v2507 = vpop.f32.mrb[0].mxu0
  %v2508 = vadd.f32 %v2387, %v2507
  %v2509 = vpop.f32.mrb[0].mxu0
  %v2510 = vadd.f32 %v2389, %v2509
  %2511 = vmatprep.mubr.f32.mxu0 0.0
  %v2512 = vand.u32 %v1932, 4294901760
  %2513 = vmatmul.mubr.f32.gmra.mrb[0].mxu0 %v2512
  %v2514 = vpop.f32.mrb[0].mxu0
  %v2515 = vadd.f32 %v2396, %v2514
  %v2516 = vpop.f32.mrb[0].mxu0
  %v2517 = vadd.f32 %v2398, %v2516
  %2518 = vmatprep.mubr.f32.mxu0 0.0
  %v2519 = vand.u32 %v1935, 4294901760
  %2520 = vmatmul.mubr.f32.gmra.mrb[0].mxu0 %v2519
  %v2521 = vpop.f32.mrb[0].mxu0
  %v2522 = vadd.f32 %v2405, %v2521
  %v2523 = vpop.f32.mrb[0].mxu0
  %v2524 = vadd.f32 %v2407, %v2523
  %2525 = vdwg.mxu0
  %v2526 = vand.u32 %v1889, 4294901760
  %2527 = vmatprep.subr.mxu0 %v2526
  %v2528 = vand.u32 %v1888, 4294901760
  %2529 = vmatpush1.msra.mxu0 %v2528
  %v2530 = vand.u32 %v1891, 4294901760
  %2531 = vmatprep.subr.mxu0 %v2530
  %v2532 = vand.u32 %v1890, 4294901760
  %2533 = vmatpush1.msra.mxu0 %v2532
  %v2534 = vand.u32 %v1893, 4294901760
  %2535 = vmatprep.subr.mxu0 %v2534
  %v2536 = vand.u32 %v1892, 4294901760
  %2537 = vmatpush1.msra.mxu0 %v2536
  %v2538 = vand.u32 %v1895, 4294901760
  %2539 = vmatprep.subr.mxu0 %v2538
  %v2540 = vand.u32 %v1894, 4294901760
  %2541 = vmatpush1.msra.mxu0 %v2540
  %2542 = vmatprep.subr.mxu0 0.0
  %2543 = vmatpush1.msra.mxu0 0.0
  %2544 = vmatprep.subr.mxu0 0.0
  %2545 = vmatpush1.msra.mxu0 0.0
  %2546 = vmatprep.subr.mxu0 0.0
  %2547 = vmatpush1.msra.mxu0 0.0
  %2548 = vmatprep.subr.mxu0 0.0
  %2549 = vmatpush1.msra.mxu0 0.0
  %2550 = vmatprep.subr.mxu0 0.0
  %2551 = vmatpush1.msra.mxu0 0.0
  %2552 = vmatprep.subr.mxu0 0.0
  %2553 = vmatpush1.msra.mxu0 0.0
  %2554 = vmatprep.subr.mxu0 0.0
  %2555 = vmatpush1.msra.mxu0 0.0
  %2556 = vmatprep.subr.mxu0 0.0
  %2557 = vmatpush1.msra.mxu0 0.0
  %2558 = vmatprep.subr.mxu0 0.0
  %2559 = vmatpush1.msra.mxu0 0.0
  %2560 = vmatprep.subr.mxu0 0.0
  %2561 = vmatpush1.msra.mxu0 0.0
  %2562 = vmatprep.subr.mxu0 0.0
  %2563 = vmatpush1.msra.mxu0 0.0
  %2564 = vmatprep.subr.mxu0 0.0
  %2565 = vmatpush1.msra.mxu0 0.0
  %2566 = vmatprep.subr.mxu0 0.0
  %2567 = vmatpush1.msra.mxu0 0.0
  %2568 = vmatprep.subr.mxu0 0.0
  %2569 = vmatpush1.msra.mxu0 0.0
  %2570 = vmatprep.subr.mxu0 0.0
  %2571 = vmatpush1.msra.mxu0 0.0
  %2572 = vmatprep.subr.mxu0 0.0
  %2573 = vmatpush1.msra.mxu0 0.0
  %2574 = vmatprep.subr.mxu0 0.0
  %2575 = vmatpush1.msra.mxu0 0.0
  %2576 = vmatprep.subr.mxu0 0.0
  %2577 = vmatpush1.msra.mxu0 0.0
  %2578 = vmatprep.subr.mxu0 0.0
  %2579 = vmatpush1.msra.mxu0 0.0
  %2580 = vmatprep.subr.mxu0 0.0
  %2581 = vmatpush1.msra.mxu0 0.0
  %2582 = vmatprep.subr.mxu0 0.0
  %2583 = vmatpush1.msra.mxu0 0.0
  %2584 = vmatprep.subr.mxu0 0.0
  %2585 = vmatpush1.msra.mxu0 0.0
  %2586 = vmatprep.subr.mxu0 0.0
  %2587 = vmatpush1.msra.mxu0 0.0
  %2588 = vmatprep.subr.mxu0 0.0
  %2589 = vmatpush1.msra.mxu0 0.0
  %2590 = vmatprep.subr.mxu0 0.0
  %2591 = vmatpush1.msra.mxu0 0.0
  %2592 = vmatprep.subr.mxu0 0.0
  %2593 = vmatpush1.msra.mxu0 0.0
  %2594 = vmatprep.subr.mxu0 0.0
  %2595 = vmatpush1.msra.mxu0 0.0
  %2596 = vmatprep.subr.mxu0 0.0
  %2597 = vmatpush1.msra.mxu0 0.0
  %2598 = vmatprep.mubr.f32.mxu0 0.0
  %v2599 = vand.u32 %v1926, 4294901760
  %2600 = vmatmul.mubr.f32.gmra.mrb[0].mxu0 %v2599
  %v2601 = vpop.f32.mrb[0].mxu0
  %v2602 = vadd.f32 %v2501, %v2601
  %v2603 = vpop.f32.mrb[0].mxu0
  %v2604 = vadd.f32 %v2503, %v2603
  %2605 = vmatprep.mubr.f32.mxu0 0.0
  %v2606 = vand.u32 %v1929, 4294901760
  %2607 = vmatmul.mubr.f32.gmra.mrb[0].mxu0 %v2606
  %v2608 = vpop.f32.mrb[0].mxu0
  %v2609 = vadd.f32 %v2508, %v2608
  %v2610 = vpop.f32.mrb[0].mxu0
  %v2611 = vadd.f32 %v2510, %v2610
  %2612 = vmatprep.mubr.f32.mxu0 0.0
  %v2613 = vand.u32 %v1932, 4294901760
  %2614 = vmatmul.mubr.f32.gmra.mrb[0].mxu0 %v2613
  %v2615 = vpop.f32.mrb[0].mxu0
  %v2616 = vadd.f32 %v2515, %v2615
  %v2617 = vpop.f32.mrb[0].mxu0
  %v2618 = vadd.f32 %v2517, %v2617
  %2619 = vmatprep.mubr.f32.mxu0 0.0
  %v2620 = vand.u32 %v1935, 4294901760
  %2621 = vmatmul.mubr.f32.gmra.mrb[0].mxu0 %v2620
  %v2622 = vpop.f32.mrb[0].mxu0
  %v2623 = vadd.f32 %v2522, %v2622
  %v2624 = vpop.f32.mrb[0].mxu0
  %v2625 = vadd.f32 %v2524, %v2624
  %2626 = vdwg.mxu0
  %v2627 = vmax.f32 %v2602, 0.0
  %v2628 = vmax.f32 %v2604, 0.0
  %v2629 = vmax.f32 %v2609, 0.0
  %v2630 = vmax.f32 %v2611, 0.0
  %v2631 = vmax.f32 %v2616, 0.0
  %v2632 = vmax.f32 %v2618, 0.0
  %v2633 = vmax.f32 %v2623, 0.0
  %v2634 = vmax.f32 %v2625, 0.0
  %vm2635 = vcmp.ne.f32.partialorder %v2602, %v2602
  %vm2636 = vcmp.ne.f32.partialorder %v2604, %v2604
  %vm2637 = vcmp.ne.f32.partialorder %v2609, %v2609
  %vm2638 = vcmp.ne.f32.partialorder %v2611, %v2611
  %vm2639 = vcmp.ne.f32.partialorder %v2616, %v2616
  %vm2640 = vcmp.ne.f32.partialorder %v2618, %v2618
  %vm2641 = vcmp.ne.f32.partialorder %v2623, %v2623
  %vm2642 = vcmp.ne.f32.partialorder %v2625, %v2625
  %v2643 = vadd.f32 %v2602, 0.0
  %v2644 = vadd.f32 %v2604, 0.0
  %v2645 = vadd.f32 %v2609, 0.0
  %v2646 = vadd.f32 %v2611, 0.0
  %v2647 = vadd.f32 %v2616, 0.0
  %v2648 = vadd.f32 %v2618, 0.0
  %v2649 = vadd.f32 %v2623, 0.0
  %v2650 = vadd.f32 %v2625, 0.0
  %v2651 = vand.u32 2147483647, %v2602
  %v2652 = vand.u32 2147483647, %v2604
  %v2653 = vand.u32 2147483647, %v2609
  %v2654 = vand.u32 2147483647, %v2611
  %v2655 = vand.u32 2147483647, %v2616
  %v2656 = vand.u32 2147483647, %v2618
  %v2657 = vand.u32 2147483647, %v2623
  %v2658 = vand.u32 2147483647, %v2625
  %v2659 = vsub.f32 0.0, %v2651
  %v2660 = vsub.f32 0.0, %v2652
  %v2661 = vsub.f32 0.0, %v2653
  %v2662 = vsub.f32 0.0, %v2654
  %v2663 = vsub.f32 0.0, %v2655
  %v2664 = vsub.f32 0.0, %v2656
  %v2665 = vsub.f32 0.0, %v2657
  %v2666 = vsub.f32 0.0, %v2658
  %v2667 = vmul.f32 %v2659, 1.442695
  %v2668 = vpow.pop %v2667
  %v2669 = vmul.f32 %v2660, 1.442695
  %v2670 = vpow.pop %v2669
  %v2671 = vmul.f32 %v2661, 1.442695
  %v2672 = vpow.pop %v2671
  %v2673 = vmul.f32 %v2662, 1.442695
  %v2674 = vpow.pop %v2673
  %v2675 = vmul.f32 %v2663, 1.442695
  %v2676 = vpow.pop %v2675
  %v2677 = vmul.f32 %v2664, 1.442695
  %v2678 = vpow.pop %v2677
  %v2679 = vmul.f32 %v2665, 1.442695
  %v2680 = vpow.pop %v2679
  %v2681 = vmul.f32 %v2666, 1.442695
  %v2682 = vpow.pop %v2681
  %v2683 = vadd.f32 %v2668, 1.0
  %v2684 = vlog2.pop %v2683
  %v2685 = vmul.f32 %v2684, 0.6931472
  %v2686 = vmul.f32 -0.5, %v2668
  %v2687 = vadd.f32 %v2686, 1.0
  %v2688 = vmul.f32 %v2687, %v2668
  %v2689 = vand.u32 2147483647, %v2668
  %vm2690 = vcmp.lt.f32.partialorder %v2689, 0.0004427343
  %v2691 = vsel %vm2690, %v2688, %v2685
  %v2692 = vadd.f32 %v2670, 1.0
  %v2693 = vlog2.pop %v2692
  %v2694 = vmul.f32 %v2693, 0.6931472
  %v2695 = vmul.f32 -0.5, %v2670
  %v2696 = vadd.f32 %v2695, 1.0
  %v2697 = vmul.f32 %v2696, %v2670
  %v2698 = vand.u32 2147483647, %v2670
  %vm2699 = vcmp.lt.f32.partialorder %v2698, 0.0004427343
  %v2700 = vsel %vm2699, %v2697, %v2694
  %v2701 = vadd.f32 %v2672, 1.0
  %v2702 = vlog2.pop %v2701
  %v2703 = vmul.f32 %v2702, 0.6931472
  %v2704 = vmul.f32 -0.5, %v2672
  %v2705 = vadd.f32 %v2704, 1.0
  %v2706 = vmul.f32 %v2705, %v2672
  %v2707 = vand.u32 2147483647, %v2672
  %vm2708 = vcmp.lt.f32.partialorder %v2707, 0.0004427343
  %v2709 = vsel %vm2708, %v2706, %v2703
  %v2710 = vadd.f32 %v2674, 1.0
  %v2711 = vlog2.pop %v2710
  %v2712 = vmul.f32 %v2711, 0.6931472
  %v2713 = vmul.f32 -0.5, %v2674
  %v2714 = vadd.f32 %v2713, 1.0
  %v2715 = vmul.f32 %v2714, %v2674
  %v2716 = vand.u32 2147483647, %v2674
  %vm2717 = vcmp.lt.f32.partialorder %v2716, 0.0004427343
  %v2718 = vsel %vm2717, %v2715, %v2712
  %v2719 = vadd.f32 %v2676, 1.0
  %v2720 = vlog2.pop %v2719
  %v2721 = vmul.f32 %v2720, 0.6931472
  %v2722 = vmul.f32 -0.5, %v2676
  %v2723 = vadd.f32 %v2722, 1.0
  %v2724 = vmul.f32 %v2723, %v2676
  %v2725 = vand.u32 2147483647, %v2676
  %vm2726 = vcmp.lt.f32.partialorder %v2725, 0.0004427343
  %v2727 = vsel %vm2726, %v2724, %v2721
  %v2728 = vadd.f32 %v2678, 1.0
  %v2729 = vlog2.pop %v2728
  %v2730 = vmul.f32 %v2729, 0.6931472
  %v2731 = vmul.f32 -0.5, %v2678
  %v2732 = vadd.f32 %v2731, 1.0
  %v2733 = vmul.f32 %v2732, %v2678
  %v2734 = vand.u32 2147483647, %v2678
  %vm2735 = vcmp.lt.f32.partialorder %v2734, 0.0004427343
  %v2736 = vsel %vm2735, %v2733, %v2730
  %v2737 = vadd.f32 %v2680, 1.0
  %v2738 = vlog2.pop %v2737
  %v2739 = vmul.f32 %v2738, 0.6931472
  %v2740 = vmul.f32 -0.5, %v2680
  %v2741 = vadd.f32 %v2740, 1.0
  %v2742 = vmul.f32 %v2741, %v2680
  %v2743 = vand.u32 2147483647, %v2680
  %vm2744 = vcmp.lt.f32.partialorder %v2743, 0.0004427343
  %v2745 = vsel %vm2744, %v2742, %v2739
  %v2746 = vadd.f32 %v2682, 1.0
  %v2747 = vlog2.pop %v2746
  %v2748 = vmul.f32 %v2747, 0.6931472
  %v2749 = vmul.f32 -0.5, %v2682
  %v2750 = vadd.f32 %v2749, 1.0
  %v2751 = vmul.f32 %v2750, %v2682
  %v2752 = vand.u32 2147483647, %v2682
  %vm2753 = vcmp.lt.f32.partialorder %v2752, 0.0004427343
  %v2754 = vsel %vm2753, %v2751, %v2748
  %v2755 = vadd.f32 %v2627, %v2691
  %v2756 = vadd.f32 %v2628, %v2700
  %v2757 = vadd.f32 %v2629, %v2709
  %v2758 = vadd.f32 %v2630, %v2718
  %v2759 = vadd.f32 %v2631, %v2727
  %v2760 = vadd.f32 %v2632, %v2736
  %v2761 = vadd.f32 %v2633, %v2745
  %v2762 = vadd.f32 %v2634, %v2754
  %v2763 = vsel %vm2635, %v2643, %v2755
  %v2764 = vsel %vm2636, %v2644, %v2756
  %v2765 = vsel %vm2637, %v2645, %v2757
  %v2766 = vsel %vm2638, %v2646, %v2758
  %v2767 = vsel %vm2639, %v2647, %v2759
  %v2768 = vsel %vm2640, %v2648, %v2760
  %v2769 = vsel %vm2641, %v2649, %v2761
  %v2770 = vsel %vm2642, %v2650, %v2762
  %v2771 = vld [vmem:[%s7] sm:$0xf]
  %2773 = vset.pattern.permute.xlu0 0
  %2774 = vperm.xlu0 %2773, %v2771
  %v2775 = vpop.permute.xlu0 %2774
  %v2777 = vlaneseq
  %v2778 = vshrl.u32 %v2777, 7
  %v2779 = vsub.s32 0, %v2778
  %v2780 = vrot.slane %v2763, %v2779
  %v2781 = vlaneseq
  %v2782 = vshrl.u32 %v2781, 7
  %v2783 = vsub.s32 0, %v2782
  %v2784 = vrot.slane %v2764, %v2783
  %v2785 = vmul.f32 %v2775, %v2780
  %v2786 = vmul.f32 %v2775, %v2784
  %2787 = vset.pattern.permute.xlu0 1
  %2788 = vperm.xlu0 %2787, %v2771
  %v2789 = vpop.permute.xlu0 %2788
  %v2791 = vlaneseq
  %v2792 = vshrl.u32 %v2791, 7
  %v2793 = vsub.s32 1, %v2792
  %v2794 = vrot.slane %v2763, %v2793
  %v2795 = vlaneseq
  %v2796 = vshrl.u32 %v2795, 7
  %v2797 = vsub.s32 1, %v2796
  %v2798 = vrot.slane %v2764, %v2797
  %v2799 = vmul.f32 %v2789, %v2794
  %v2800 = vmul.f32 %v2789, %v2798
  %v2801 = vadd.f32 %v2785, %v2799
  %v2802 = vadd.f32 %v2786, %v2800
  %2803 = vset.pattern.permute.xlu0 2
  %2804 = vperm.xlu0 %2803, %v2771
  %v2805 = vpop.permute.xlu0 %2804
  %v2807 = vlaneseq
  %v2808 = vshrl.u32 %v2807, 7
  %v2809 = vsub.s32 2, %v2808
  %v2810 = vrot.slane %v2763, %v2809
  %v2811 = vlaneseq
  %v2812 = vshrl.u32 %v2811, 7
  %v2813 = vsub.s32 2, %v2812
  %v2814 = vrot.slane %v2764, %v2813
  %v2815 = vmul.f32 %v2805, %v2810
  %v2816 = vmul.f32 %v2805, %v2814
  %v2817 = vadd.f32 %v2801, %v2815
  %v2818 = vadd.f32 %v2802, %v2816
  %2819 = vset.pattern.permute.xlu0 3
  %2820 = vperm.xlu0 %2819, %v2771
  %v2821 = vpop.permute.xlu0 %2820
  %v2823 = vlaneseq
  %v2824 = vshrl.u32 %v2823, 7
  %v2825 = vsub.s32 3, %v2824
  %v2826 = vrot.slane %v2763, %v2825
  %v2827 = vlaneseq
  %v2828 = vshrl.u32 %v2827, 7
  %v2829 = vsub.s32 3, %v2828
  %v2830 = vrot.slane %v2764, %v2829
  %v2831 = vmul.f32 %v2821, %v2826
  %v2832 = vmul.f32 %v2821, %v2830
  %v2833 = vadd.f32 %v2817, %v2831
  %v2834 = vadd.f32 %v2818, %v2832
  %2835 = vset.pattern.permute.xlu0 4
  %2836 = vperm.xlu0 %2835, %v2771
  %v2837 = vpop.permute.xlu0 %2836
  %v2839 = vlaneseq
  %v2840 = vshrl.u32 %v2839, 7
  %v2841 = vsub.s32 4, %v2840
  %v2842 = vrot.slane %v2763, %v2841
  %v2843 = vlaneseq
  %v2844 = vshrl.u32 %v2843, 7
  %v2845 = vsub.s32 4, %v2844
  %v2846 = vrot.slane %v2764, %v2845
  %v2847 = vmul.f32 %v2837, %v2842
  %v2848 = vmul.f32 %v2837, %v2846
  %v2849 = vadd.f32 %v2833, %v2847
  %v2850 = vadd.f32 %v2834, %v2848
  %2851 = vset.pattern.permute.xlu0 5
  %2852 = vperm.xlu0 %2851, %v2771
  %v2853 = vpop.permute.xlu0 %2852
  %v2855 = vlaneseq
  %v2856 = vshrl.u32 %v2855, 7
  %v2857 = vsub.s32 5, %v2856
  %v2858 = vrot.slane %v2763, %v2857
  %v2859 = vlaneseq
  %v2860 = vshrl.u32 %v2859, 7
  %v2861 = vsub.s32 5, %v2860
  %v2862 = vrot.slane %v2764, %v2861
  %v2863 = vmul.f32 %v2853, %v2858
  %v2864 = vmul.f32 %v2853, %v2862
  %v2865 = vadd.f32 %v2849, %v2863
  %v2866 = vadd.f32 %v2850, %v2864
  %2867 = vset.pattern.permute.xlu0 6
  %2868 = vperm.xlu0 %2867, %v2771
  %v2869 = vpop.permute.xlu0 %2868
  %v2871 = vlaneseq
  %v2872 = vshrl.u32 %v2871, 7
  %v2873 = vsub.s32 6, %v2872
  %v2874 = vrot.slane %v2763, %v2873
  %v2875 = vlaneseq
  %v2876 = vshrl.u32 %v2875, 7
  %v2877 = vsub.s32 6, %v2876
  %v2878 = vrot.slane %v2764, %v2877
  %v2879 = vmul.f32 %v2869, %v2874
  %v2880 = vmul.f32 %v2869, %v2878
  %v2881 = vadd.f32 %v2865, %v2879
  %v2882 = vadd.f32 %v2866, %v2880
  %2883 = vset.pattern.permute.xlu0 7
  %2884 = vperm.xlu0 %2883, %v2771
  %v2885 = vpop.permute.xlu0 %2884
  %v2887 = vlaneseq
  %v2888 = vshrl.u32 %v2887, 7
  %v2889 = vsub.s32 7, %v2888
  %v2890 = vrot.slane %v2763, %v2889
  %v2891 = vlaneseq
  %v2892 = vshrl.u32 %v2891, 7
  %v2893 = vsub.s32 7, %v2892
  %v2894 = vrot.slane %v2764, %v2893
  %v2895 = vmul.f32 %v2885, %v2890
  %v2896 = vmul.f32 %v2885, %v2894
  %v2897 = vadd.f32 %v2881, %v2895
  %v2898 = vadd.f32 %v2882, %v2896
  %2899 = vset.pattern.permute.xlu0 8
  %2900 = vperm.xlu0 %2899, %v2771
  %v2901 = vpop.permute.xlu0 %2900
  %v2903 = vlaneseq
  %v2904 = vshrl.u32 %v2903, 7
  %v2905 = vsub.s32 0, %v2904
  %v2906 = vrot.slane %v2765, %v2905
  %v2907 = vlaneseq
  %v2908 = vshrl.u32 %v2907, 7
  %v2909 = vsub.s32 0, %v2908
  %v2910 = vrot.slane %v2766, %v2909
  %v2911 = vmul.f32 %v2901, %v2906
  %v2912 = vmul.f32 %v2901, %v2910
  %v2913 = vadd.f32 %v2897, %v2911
  %v2914 = vadd.f32 %v2898, %v2912
  %2915 = vset.pattern.permute.xlu0 9
  %2916 = vperm.xlu0 %2915, %v2771
  %v2917 = vpop.permute.xlu0 %2916
  %v2919 = vlaneseq
  %v2920 = vshrl.u32 %v2919, 7
  %v2921 = vsub.s32 1, %v2920
  %v2922 = vrot.slane %v2765, %v2921
  %v2923 = vlaneseq
  %v2924 = vshrl.u32 %v2923, 7
  %v2925 = vsub.s32 1, %v2924
  %v2926 = vrot.slane %v2766, %v2925
  %v2927 = vmul.f32 %v2917, %v2922
  %v2928 = vmul.f32 %v2917, %v2926
  %v2929 = vadd.f32 %v2913, %v2927
  %v2930 = vadd.f32 %v2914, %v2928
  %2931 = vset.pattern.permute.xlu0 10
  %2932 = vperm.xlu0 %2931, %v2771
  %v2933 = vpop.permute.xlu0 %2932
  %v2935 = vlaneseq
  %v2936 = vshrl.u32 %v2935, 7
  %v2937 = vsub.s32 2, %v2936
  %v2938 = vrot.slane %v2765, %v2937
  %v2939 = vlaneseq
  %v2940 = vshrl.u32 %v2939, 7
  %v2941 = vsub.s32 2, %v2940
  %v2942 = vrot.slane %v2766, %v2941
  %v2943 = vmul.f32 %v2933, %v2938
  %v2944 = vmul.f32 %v2933, %v2942
  %v2945 = vadd.f32 %v2929, %v2943
  %v2946 = vadd.f32 %v2930, %v2944
  %2947 = vset.pattern.permute.xlu0 11
  %2948 = vperm.xlu0 %2947, %v2771
  %v2949 = vpop.permute.xlu0 %2948
  %v2951 = vlaneseq
  %v2952 = vshrl.u32 %v2951, 7
  %v2953 = vsub.s32 3, %v2952
  %v2954 = vrot.slane %v2765, %v2953
  %v2955 = vlaneseq
  %v2956 = vshrl.u32 %v2955, 7
  %v2957 = vsub.s32 3, %v2956
  %v2958 = vrot.slane %v2766, %v2957
  %v2959 = vmul.f32 %v2949, %v2954
  %v2960 = vmul.f32 %v2949, %v2958
  %v2961 = vadd.f32 %v2945, %v2959
  %v2962 = vadd.f32 %v2946, %v2960
  %2963 = vset.pattern.permute.xlu0 12
  %2964 = vperm.xlu0 %2963, %v2771
  %v2965 = vpop.permute.xlu0 %2964
  %v2967 = vlaneseq
  %v2968 = vshrl.u32 %v2967, 7
  %v2969 = vsub.s32 4, %v2968
  %v2970 = vrot.slane %v2765, %v2969
  %v2971 = vlaneseq
  %v2972 = vshrl.u32 %v2971, 7
  %v2973 = vsub.s32 4, %v2972
  %v2974 = vrot.slane %v2766, %v2973
  %v2975 = vmul.f32 %v2965, %v2970
  %v2976 = vmul.f32 %v2965, %v2974
  %v2977 = vadd.f32 %v2961, %v2975
  %v2978 = vadd.f32 %v2962, %v2976
  %2979 = vset.pattern.permute.xlu0 13
  %2980 = vperm.xlu0 %2979, %v2771
  %v2981 = vpop.permute.xlu0 %2980
  %v2983 = vlaneseq
  %v2984 = vshrl.u32 %v2983, 7
  %v2985 = vsub.s32 5, %v2984
  %v2986 = vrot.slane %v2765, %v2985
  %v2987 = vlaneseq
  %v2988 = vshrl.u32 %v2987, 7
  %v2989 = vsub.s32 5, %v2988
  %v2990 = vrot.slane %v2766, %v2989
  %v2991 = vmul.f32 %v2981, %v2986
  %v2992 = vmul.f32 %v2981, %v2990
  %v2993 = vadd.f32 %v2977, %v2991
  %v2994 = vadd.f32 %v2978, %v2992
  %2995 = vset.pattern.permute.xlu0 14
  %2996 = vperm.xlu0 %2995, %v2771
  %v2997 = vpop.permute.xlu0 %2996
  %v2999 = vlaneseq
  %v3000 = vshrl.u32 %v2999, 7
  %v3001 = vsub.s32 6, %v3000
  %v3002 = vrot.slane %v2765, %v3001
  %v3003 = vlaneseq
  %v3004 = vshrl.u32 %v3003, 7
  %v3005 = vsub.s32 6, %v3004
  %v3006 = vrot.slane %v2766, %v3005
  %v3007 = vmul.f32 %v2997, %v3002
  %v3008 = vmul.f32 %v2997, %v3006
  %v3009 = vadd.f32 %v2993, %v3007
  %v3010 = vadd.f32 %v2994, %v3008
  %3011 = vset.pattern.permute.xlu0 15
  %3012 = vperm.xlu0 %3011, %v2771
  %v3013 = vpop.permute.xlu0 %3012
  %v3015 = vlaneseq
  %v3016 = vshrl.u32 %v3015, 7
  %v3017 = vsub.s32 7, %v3016
  %v3018 = vrot.slane %v2765, %v3017
  %v3019 = vlaneseq
  %v3020 = vshrl.u32 %v3019, 7
  %v3021 = vsub.s32 7, %v3020
  %v3022 = vrot.slane %v2766, %v3021
  %v3023 = vmul.f32 %v3013, %v3018
  %v3024 = vmul.f32 %v3013, %v3022
  %v3025 = vadd.f32 %v3009, %v3023
  %v3026 = vadd.f32 %v3010, %v3024
  %3027 = vset.pattern.permute.xlu0 16
  %3028 = vperm.xlu0 %3027, %v2771
  %v3029 = vpop.permute.xlu0 %3028
  %v3031 = vlaneseq
  %v3032 = vshrl.u32 %v3031, 7
  %v3033 = vsub.s32 0, %v3032
  %v3034 = vrot.slane %v2767, %v3033
  %v3035 = vlaneseq
  %v3036 = vshrl.u32 %v3035, 7
  %v3037 = vsub.s32 0, %v3036
  %v3038 = vrot.slane %v2768, %v3037
  %v3039 = vmul.f32 %v3029, %v3034
  %v3040 = vmul.f32 %v3029, %v3038
  %v3041 = vadd.f32 %v3025, %v3039
  %v3042 = vadd.f32 %v3026, %v3040
  %3043 = vset.pattern.permute.xlu0 17
  %3044 = vperm.xlu0 %3043, %v2771
  %v3045 = vpop.permute.xlu0 %3044
  %v3047 = vlaneseq
  %v3048 = vshrl.u32 %v3047, 7
  %v3049 = vsub.s32 1, %v3048
  %v3050 = vrot.slane %v2767, %v3049
  %v3051 = vlaneseq
  %v3052 = vshrl.u32 %v3051, 7
  %v3053 = vsub.s32 1, %v3052
  %v3054 = vrot.slane %v2768, %v3053
  %v3055 = vmul.f32 %v3045, %v3050
  %v3056 = vmul.f32 %v3045, %v3054
  %v3057 = vadd.f32 %v3041, %v3055
  %v3058 = vadd.f32 %v3042, %v3056
  %3059 = vset.pattern.permute.xlu0 18
  %3060 = vperm.xlu0 %3059, %v2771
  %v3061 = vpop.permute.xlu0 %3060
  %v3063 = vlaneseq
  %v3064 = vshrl.u32 %v3063, 7
  %v3065 = vsub.s32 2, %v3064
  %v3066 = vrot.slane %v2767, %v3065
  %v3067 = vlaneseq
  %v3068 = vshrl.u32 %v3067, 7
  %v3069 = vsub.s32 2, %v3068
  %v3070 = vrot.slane %v2768, %v3069
  %v3071 = vmul.f32 %v3061, %v3066
  %v3072 = vmul.f32 %v3061, %v3070
  %v3073 = vadd.f32 %v3057, %v3071
  %v3074 = vadd.f32 %v3058, %v3072
  %3075 = vset.pattern.permute.xlu0 19
  %3076 = vperm.xlu0 %3075, %v2771
  %v3077 = vpop.permute.xlu0 %3076
  %v3079 = vlaneseq
  %v3080 = vshrl.u32 %v3079, 7
  %v3081 = vsub.s32 3, %v3080
  %v3082 = vrot.slane %v2767, %v3081
  %v3083 = vlaneseq
  %v3084 = vshrl.u32 %v3083, 7
  %v3085 = vsub.s32 3, %v3084
  %v3086 = vrot.slane %v2768, %v3085
  %v3087 = vmul.f32 %v3077, %v3082
  %v3088 = vmul.f32 %v3077, %v3086
  %v3089 = vadd.f32 %v3073, %v3087
  %v3090 = vadd.f32 %v3074, %v3088
  %3091 = vset.pattern.permute.xlu0 20
  %3092 = vperm.xlu0 %3091, %v2771
  %v3093 = vpop.permute.xlu0 %3092
  %v3095 = vlaneseq
  %v3096 = vshrl.u32 %v3095, 7
  %v3097 = vsub.s32 4, %v3096
  %v3098 = vrot.slane %v2767, %v3097
  %v3099 = vlaneseq
  %v3100 = vshrl.u32 %v3099, 7
  %v3101 = vsub.s32 4, %v3100
  %v3102 = vrot.slane %v2768, %v3101
  %v3103 = vmul.f32 %v3093, %v3098
  %v3104 = vmul.f32 %v3093, %v3102
  %v3105 = vadd.f32 %v3089, %v3103
  %v3106 = vadd.f32 %v3090, %v3104
  %3107 = vset.pattern.permute.xlu0 21
  %3108 = vperm.xlu0 %3107, %v2771
  %v3109 = vpop.permute.xlu0 %3108
  %v3111 = vlaneseq
  %v3112 = vshrl.u32 %v3111, 7
  %v3113 = vsub.s32 5, %v3112
  %v3114 = vrot.slane %v2767, %v3113
  %v3115 = vlaneseq
  %v3116 = vshrl.u32 %v3115, 7
  %v3117 = vsub.s32 5, %v3116
  %v3118 = vrot.slane %v2768, %v3117
  %v3119 = vmul.f32 %v3109, %v3114
  %v3120 = vmul.f32 %v3109, %v3118
  %v3121 = vadd.f32 %v3105, %v3119
  %v3122 = vadd.f32 %v3106, %v3120
  %3123 = vset.pattern.permute.xlu0 22
  %3124 = vperm.xlu0 %3123, %v2771
  %v3125 = vpop.permute.xlu0 %3124
  %v3127 = vlaneseq
  %v3128 = vshrl.u32 %v3127, 7
  %v3129 = vsub.s32 6, %v3128
  %v3130 = vrot.slane %v2767, %v3129
  %v3131 = vlaneseq
  %v3132 = vshrl.u32 %v3131, 7
  %v3133 = vsub.s32 6, %v3132
  %v3134 = vrot.slane %v2768, %v3133
  %v3135 = vmul.f32 %v3125, %v3130
  %v3136 = vmul.f32 %v3125, %v3134
  %v3137 = vadd.f32 %v3121, %v3135
  %v3138 = vadd.f32 %v3122, %v3136
  %3139 = vset.pattern.permute.xlu0 23
  %3140 = vperm.xlu0 %3139, %v2771
  %v3141 = vpop.permute.xlu0 %3140
  %v3143 = vlaneseq
  %v3144 = vshrl.u32 %v3143, 7
  %v3145 = vsub.s32 7, %v3144
  %v3146 = vrot.slane %v2767, %v3145
  %v3147 = vlaneseq
  %v3148 = vshrl.u32 %v3147, 7
  %v3149 = vsub.s32 7, %v3148
  %v3150 = vrot.slane %v2768, %v3149
  %v3151 = vmul.f32 %v3141, %v3146
  %v3152 = vmul.f32 %v3141, %v3150
  %v3153 = vadd.f32 %v3137, %v3151
  %v3154 = vadd.f32 %v3138, %v3152
  %3155 = vset.pattern.permute.xlu0 24
  %3156 = vperm.xlu0 %3155, %v2771
  %v3157 = vpop.permute.xlu0 %3156
  %v3159 = vlaneseq
  %v3160 = vshrl.u32 %v3159, 7
  %v3161 = vsub.s32 0, %v3160
  %v3162 = vrot.slane %v2769, %v3161
  %v3163 = vlaneseq
  %v3164 = vshrl.u32 %v3163, 7
  %v3165 = vsub.s32 0, %v3164
  %v3166 = vrot.slane %v2770, %v3165
  %v3167 = vmul.f32 %v3157, %v3162
  %v3168 = vmul.f32 %v3157, %v3166
  %v3169 = vadd.f32 %v3153, %v3167
  %v3170 = vadd.f32 %v3154, %v3168
  %3171 = vset.pattern.permute.xlu0 25
  %3172 = vperm.xlu0 %3171, %v2771
  %v3173 = vpop.permute.xlu0 %3172
  %v3175 = vlaneseq
  %v3176 = vshrl.u32 %v3175, 7
  %v3177 = vsub.s32 1, %v3176
  %v3178 = vrot.slane %v2769, %v3177
  %v3179 = vlaneseq
  %v3180 = vshrl.u32 %v3179, 7
  %v3181 = vsub.s32 1, %v3180
  %v3182 = vrot.slane %v2770, %v3181
  %v3183 = vmul.f32 %v3173, %v3178
  %v3184 = vmul.f32 %v3173, %v3182
  %v3185 = vadd.f32 %v3169, %v3183
  %v3186 = vadd.f32 %v3170, %v3184
  %3187 = vset.pattern.permute.xlu0 26
  %3188 = vperm.xlu0 %3187, %v2771
  %v3189 = vpop.permute.xlu0 %3188
  %v3191 = vlaneseq
  %v3192 = vshrl.u32 %v3191, 7
  %v3193 = vsub.s32 2, %v3192
  %v3194 = vrot.slane %v2769, %v3193
  %v3195 = vlaneseq
  %v3196 = vshrl.u32 %v3195, 7
  %v3197 = vsub.s32 2, %v3196
  %v3198 = vrot.slane %v2770, %v3197
  %v3199 = vmul.f32 %v3189, %v3194
  %v3200 = vmul.f32 %v3189, %v3198
  %v3201 = vadd.f32 %v3185, %v3199
  %v3202 = vadd.f32 %v3186, %v3200
  %3203 = vset.pattern.permute.xlu0 27
  %3204 = vperm.xlu0 %3203, %v2771
  %v3205 = vpop.permute.xlu0 %3204
  %v3207 = vlaneseq
  %v3208 = vshrl.u32 %v3207, 7
  %v3209 = vsub.s32 3, %v3208
  %v3210 = vrot.slane %v2769, %v3209
  %v3211 = vlaneseq
  %v3212 = vshrl.u32 %v3211, 7
  %v3213 = vsub.s32 3, %v3212
  %v3214 = vrot.slane %v2770, %v3213
  %v3215 = vmul.f32 %v3205, %v3210
  %v3216 = vmul.f32 %v3205, %v3214
  %v3217 = vadd.f32 %v3201, %v3215
  %v3218 = vadd.f32 %v3202, %v3216
  %3219 = vset.pattern.permute.xlu0 28
  %3220 = vperm.xlu0 %3219, %v2771
  %v3221 = vpop.permute.xlu0 %3220
  %v3223 = vlaneseq
  %v3224 = vshrl.u32 %v3223, 7
  %v3225 = vsub.s32 4, %v3224
  %v3226 = vrot.slane %v2769, %v3225
  %v3227 = vlaneseq
  %v3228 = vshrl.u32 %v3227, 7
  %v3229 = vsub.s32 4, %v3228
  %v3230 = vrot.slane %v2770, %v3229
  %v3231 = vmul.f32 %v3221, %v3226
  %v3232 = vmul.f32 %v3221, %v3230
  %v3233 = vadd.f32 %v3217, %v3231
  %v3234 = vadd.f32 %v3218, %v3232
  %3235 = vset.pattern.permute.xlu0 29
  %3236 = vperm.xlu0 %3235, %v2771
  %v3237 = vpop.permute.xlu0 %3236
  %v3239 = vlaneseq
  %v3240 = vshrl.u32 %v3239, 7
  %v3241 = vsub.s32 5, %v3240
  %v3242 = vrot.slane %v2769, %v3241
  %v3243 = vlaneseq
  %v3244 = vshrl.u32 %v3243, 7
  %v3245 = vsub.s32 5, %v3244
  %v3246 = vrot.slane %v2770, %v3245
  %v3247 = vmul.f32 %v3237, %v3242
  %v3248 = vmul.f32 %v3237, %v3246
  %v3249 = vadd.f32 %v3233, %v3247
  %v3250 = vadd.f32 %v3234, %v3248
  %3251 = vset.pattern.permute.xlu0 30
  %3252 = vperm.xlu0 %3251, %v2771
  %v3253 = vpop.permute.xlu0 %3252
  %v3255 = vlaneseq
  %v3256 = vshrl.u32 %v3255, 7
  %v3257 = vsub.s32 6, %v3256
  %v3258 = vrot.slane %v2769, %v3257
  %v3259 = vlaneseq
  %v3260 = vshrl.u32 %v3259, 7
  %v3261 = vsub.s32 6, %v3260
  %v3262 = vrot.slane %v2770, %v3261
  %v3263 = vmul.f32 %v3253, %v3258
  %v3264 = vmul.f32 %v3253, %v3262
  %v3265 = vadd.f32 %v3249, %v3263
  %v3266 = vadd.f32 %v3250, %v3264
  %3267 = vset.pattern.permute.xlu0 31
  %3268 = vperm.xlu0 %3267, %v2771
  %v3269 = vpop.permute.xlu0 %3268
  %v3271 = vlaneseq
  %v3272 = vshrl.u32 %v3271, 7
  %v3273 = vsub.s32 7, %v3272
  %v3274 = vrot.slane %v2769, %v3273
  %v3275 = vlaneseq
  %v3276 = vshrl.u32 %v3275, 7
  %v3277 = vsub.s32 7, %v3276
  %v3278 = vrot.slane %v2770, %v3277
  %v3279 = vmul.f32 %v3269, %v3274
  %v3280 = vmul.f32 %v3269, %v3278
  %v3281 = vadd.f32 %v3265, %v3279
  %v3282 = vadd.f32 %v3266, %v3280
  %v3283 = vld [vmem:[%s8] sm:$0xf]
  %3285 = vset.pattern.permute.xlu0 0
  %3286 = vperm.xlu0 %3285, %v3283
  %v3287 = vpop.permute.xlu0 %3286
  %v3289 = vadd.f32 %v3281, %v3287
  %v3290 = vadd.f32 %v3282, %v3287
  %v3293 = vcombine.low %v3289, %v3290
  %3295 = vst [vmem:[%s9] sm:$0xff] %v3293
  // Predicated region
  $region38: #{lipschitz_conditional_ffn.1} parent=0 // pred_check
    _
  $region39: #{lipschitz_conditional_ffn.1} parent=0 // pred_check_branch
    %3297 = sbr.rel (0) target = $region41
  $region40: #{lipschitz_conditional_ffn.1} parent=0 // pred_region
    _
  $region41: #{lipschitz_conditional_ffn.1} parent=0 // pred_fallthru
    _
  // Predicated region
  $region42: #{lipschitz_conditional_ffn.1} parent=0 // pred_check
    _
  $region43: #{lipschitz_conditional_ffn.1} parent=0 // pred_check_branch
    %3299 = sbr.rel (0) target = $region45
  $region44: #{lipschitz_conditional_ffn.1} parent=0 // pred_region
    _
  $region45: #{lipschitz_conditional_ffn.1} parent=0 // pred_fallthru
    _

</llo_original>
